<compile_context>
chip_gen: v5e
topology: v5e:2x2
jax: 0.10.0
libtpu: 0.0.40
codegen_flags: <defaults>
</compile_context>

<pallas_src>
import functools

import jax
import jax.numpy as jnp
from jax import lax
from jax.experimental import pallas as pl
from jax.experimental.pallas import tpu as pltpu


# ----------------------------- Pallas kernel ------------------------------


def _shift(q, s, axis):
    """result[i] = q[i - s] along `axis` (static s), zero-filled at the edges."""
    if s == 0:
        return q
    n = q.shape[axis]
    pad_shape = list(q.shape)
    pad_shape[axis] = abs(s)
    zeros = jnp.zeros(tuple(pad_shape), q.dtype)
    idx = [slice(None)] * q.ndim
    if s > 0:
        idx[axis] = slice(0, n - s)
        return jnp.concatenate([zeros, q[tuple(idx)]], axis=axis)
    idx[axis] = slice(-s, n)
    return jnp.concatenate([q[tuple(idx)], zeros], axis=axis)


def _make_kernel(H, W, P, kh, kw, compute_dtype):
    ph, pw = kh // 2, kw // 2

    def kernel(pat_ref, w1_ref, w2_ref, b2_ref, o_ref):
        # pat_ref: [1, H*W, K1]            im2col of x (both branches) + ones col
        # w1_ref : [K1, 2*C_mid]           block-diag first-conv weight (+bias row)
        # w2_ref : [2*C_mid, (kw+kh)*P]    block-diag second-conv weight, taps in N
        # b2_ref : [1, P]                  bl2 + br2 (f32)
        # o_ref  : [1, H, W*P]             lane-dense output
        mid = jnp.dot(pat_ref[0], w1_ref[...],
                      preferred_element_type=jnp.float32)       # [H*W, 2*C_mid]
        mid = mid.astype(compute_dtype)
        q = jnp.dot(mid, w2_ref[...],
                    preferred_element_type=jnp.float32)         # [H*W, (kw+kh)*P]

        # Accumulator initialized with the (summed) second-conv biases.
        acc = jnp.broadcast_to(b2_ref[...].reshape(1, 1, P), (H, W, P))

        # Left branch second conv: taps shift along W (axis=1).
        for t in range(kw):
            qt = q[:, t * P:(t + 1) * P].reshape(H, W, P)
            acc = acc + _shift(qt, pw - t, axis=1)
        # Right branch second conv: taps shift along H (axis=0).
        for t in range(kh):
            qt = q[:, (kw + t) * P:(kw + t + 1) * P].reshape(H, W, P)
            acc = acc + _shift(qt, ph - t, axis=0)

        o_ref[0] = acc.reshape(H, W * P)

    return kernel


# ------------------------------ Host wrapper ------------------------------


@functools.partial(jax.jit, static_argnames=("compute_dtype",))
def gc_forward(x_nchw, params, compute_dtype=jnp.float32):
    """Pallas GC forward.  x_nchw: [B, Cin, H, W] f32 -> [B, P, H, W] f32."""
    wl1, bl1, wl2, bl2, wr1, br1, wr2, br2 = params
    kh, Cin, C_mid = wl1.shape
    kw, _, P = wl2.shape
    B, _, H, W = x_nchw.shape
    ph, pw = kh // 2, kw // 2

    # ---------------- host-side layout plumbing (gathers / packing) --------
    x = jnp.transpose(x_nchw, (0, 2, 3, 1))                     # NHWC
    xpH = jnp.pad(x, ((0, 0), (ph, ph), (0, 0), (0, 0)))
    xpW = jnp.pad(x, ((0, 0), (0, 0), (pw, pw), (0, 0)))
    patH = jnp.stack([xpH[:, t:t + H, :, :] for t in range(kh)], axis=3)
    patW = jnp.stack([xpW[:, :, t:t + W, :] for t in range(kw)], axis=3)
    pat = jnp.concatenate(
        [patH.reshape(B, H * W, kh * Cin),
         patW.reshape(B, H * W, kw * Cin),
         jnp.ones((B, H * W, 1), x.dtype)], axis=-1)            # [B, H*W, K1]
    K1 = kh * Cin + kw * Cin + 1

    # Fused first-conv weight (block-diagonal) with biases folded into the
    # ones-column row -> no separate bias add in the kernel.
    W1 = jnp.concatenate([
        jnp.concatenate([wl1.reshape(kh * Cin, C_mid),
                         jnp.zeros((kh * Cin, C_mid), jnp.float32)], axis=1),
        jnp.concatenate([jnp.zeros((kw * Cin, C_mid), jnp.float32),
                         wr1.reshape(kw * Cin, C_mid)], axis=1),
        jnp.concatenate([bl1, br1], axis=1),
    ], axis=0)                                                  # [K1, 2*C_mid]

    # Fused second-conv weight: taps folded into the output (N) dimension.
    W2l = jnp.transpose(wl2, (1, 0, 2)).reshape(C_mid, kw * P)
    W2r = jnp.transpose(wr2, (1, 0, 2)).reshape(C_mid, kh * P)
    W2 = jnp.concatenate([
        jnp.concatenate([W2l, jnp.zeros((C_mid, kh * P), jnp.float32)], axis=1),
        jnp.concatenate([jnp.zeros((C_mid, kw * P), jnp.float32), W2r], axis=1),
    ], axis=0)                                                  # [2*C_mid, (kw+kh)*P]

    b2 = (bl2 + br2).astype(jnp.float32)                        # [1, P]

    pat = pat.astype(compute_dtype)
    W1 = W1.astype(compute_dtype)
    W2 = W2.astype(compute_dtype)

    kernel = _make_kernel(H, W, P, kh, kw, compute_dtype)

    out = pl.pallas_call(
        kernel,
        out_shape=jax.ShapeDtypeStruct((B, H, W * P), jnp.float32),
        grid_spec=pltpu.PrefetchScalarGridSpec(
            num_scalar_prefetch=0,
            grid=(B,),
            in_specs=[
                pl.BlockSpec((1, H * W, K1), lambda b: (b, 0, 0)),
                pl.BlockSpec((K1, 2 * C_mid), lambda b: (0, 0)),
                pl.BlockSpec((2 * C_mid, (kw + kh) * P), lambda b: (0, 0)),
                pl.BlockSpec((1, P), lambda b: (0, 0)),
            ],
            out_specs=pl.BlockSpec((1, H, W * P), lambda b: (b, 0, 0)),
        ),
        compiler_params=pltpu.CompilerParams(
            dimension_semantics=("parallel",)),
    )(pat, W1, W2, b2)

    out = out.reshape(B, H, W, P)
    return jnp.transpose(out, (0, 3, 1, 2))                     # NHWC -> NCHW


# --------------------------- Reference (plain JAX) -------------------------


def _ref_conv(x, w_taps, b, axis):
    """Plain-JAX reference: w_taps [k, Ci, Co] -> OIHW conv weight."""
    k, ci, co = w_taps.shape
    if axis == 0:   # (k, 1) kernel over H
        w = jnp.transpose(w_taps, (2, 1, 0))[:, :, :, None]     # [Co,Ci,k,1]
        padding = ((k // 2, k // 2), (0, 0))
    else:           # (1, k) kernel over W
        w = jnp.transpose(w_taps, (2, 1, 0))[:, :, None, :]     # [Co,Ci,1,k]
        padding = ((0, 0), (k // 2, k // 2))
    y = lax.conv_general_dilated(
        x, w, window_strides=(1, 1), padding=padding,
        dimension_numbers=("NCHW", "OIHW", "NCHW"))
    return y + b.reshape(1, -1, 1, 1)


def gc_reference(x, params):
    wl1, bl1, wl2, bl2, wr1, br1, wr2, br2 = params
    x_l = _ref_conv(_ref_conv(x, wl1, bl1[0], 0), wl2, bl2[0], 1)
    x_r = _ref_conv(_ref_conv(x, wr1, br1[0], 1), wr2, br2[0], 0)
    return x_l + x_r


# ---------------------------------- Main -----------------------------------


if __name__ == "__main__":
    B, Cin, H, W = 2, 4, 16, 16
    planes, C_mid, kh, kw = 8, 256, 7, 7

    key = jax.random.PRNGKey(0)
    ks = jax.random.split(key, 9)

    # Deterministic synthetic parameters (taps-major layout [k, Cin, Cout]).
    s = 0.05
    wl1 = s * jax.random.normal(ks[0], (kh, Cin, C_mid), jnp.float32)
    bl1 = s * jax.random.normal(ks[1], (1, C_mid), jnp.float32)
    wl2 = s * jax.random.normal(ks[2], (kw, C_mid, planes), jnp.float32)
    bl2 = s * jax.random.normal(ks[3], (1, planes), jnp.float32)
    wr1 = s * jax.random.normal(ks[4], (kw, Cin, C_mid), jnp.float32)
    br1 = s * jax.random.normal(ks[5], (1, C_mid), jnp.float32)
    wr2 = s * jax.random.normal(ks[6], (kh, C_mid, planes), jnp.float32)
    br2 = s * jax.random.normal(ks[7], (1, planes), jnp.float32)
    params = (wl1, bl1, wl2, bl2, wr1, br1, wr2, br2)

    x = jax.random.normal(ks[8], (B, Cin, H, W), jnp.float32)

    ref = jax.block_until_ready(gc_reference(x, params))

    # f32 path (exact semantics, works on all generations incl. v5e).
    out = jax.block_until_ready(gc_forward(x, params))
    assert out.shape == (B, planes, H, W)
    err = float(jnp.max(jnp.abs(out - ref)))
    assert jnp.allclose(out, ref, rtol=1e-4, atol=1e-4), err

    # bf16 MXU operands with f32 accumulation (v6e / v7x fast path).
    out_bf16 = jax.block_until_ready(
        gc_forward(x, params, compute_dtype=jnp.bfloat16))
    err_bf16 = float(jnp.max(jnp.abs(out_bf16 - ref)))
    assert jnp.allclose(out_bf16, ref, rtol=5e-2, atol=5e-2), err_bf16

    print("KERNEL_OK")
</pallas_src>

<mosaic_0001>
module attributes {stable_mosaic.version = 11 : i64} {
  func.func @kernel(%arg0: i32, %arg1: memref<1x256x57xf32, #tpu.memory_space<vmem>>, %arg2: memref<57x512xf32, #tpu.memory_space<vmem>>, %arg3: memref<512x112xf32, #tpu.memory_space<vmem>>, %arg4: memref<1x8xf32, #tpu.memory_space<vmem>>, %arg5: memref<1x16x128xf32, #tpu.memory_space<vmem>>) attributes {dimension_semantics = [#tpu.dimension_semantics<parallel>], iteration_bounds = array<i64: 2>, scalar_prefetch = 0 : i64, scratch_operands = 0 : i64, tpu.core_type = #tpu.core_type<tc>, window_params = [{transform_indices = @transform_0, window_bounds = array<i64: 1, 256, 57>}, {pipeline_mode = #tpu.pipeline_mode<synchronous>, transform_indices = @transform_1, window_bounds = array<i64: 57, 512>}, {pipeline_mode = #tpu.pipeline_mode<synchronous>, transform_indices = @transform_2, window_bounds = array<i64: 512, 112>}, {pipeline_mode = #tpu.pipeline_mode<synchronous>, transform_indices = @transform_3, window_bounds = array<i64: 1, 8>}, {transform_indices = @transform_4, window_bounds = array<i64: 1, 16, 128>}]} {
    %c0 = arith.constant 0 : index
    %c0_0 = arith.constant 0 : index
    %c0_1 = arith.constant 0 : index
    %0 = vector.load %arg1[%c0, %c0_0, %c0_1] : memref<1x256x57xf32, #tpu.memory_space<vmem>>, vector<1x256x57xf32>
    %1 = vector.shape_cast %0 : vector<1x256x57xf32> to vector<256x57xf32>
    %c0_2 = arith.constant 0 : index
    %c0_3 = arith.constant 0 : index
    %2 = vector.load %arg2[%c0_2, %c0_3] : memref<57x512xf32, #tpu.memory_space<vmem>>, vector<57x512xf32>
    %cst = arith.constant dense<0.000000e+00> : vector<256x512xf32>
    %3 = tpu.matmul %1, %2, %cst {dimension_numbers = #tpu.dot_dimension_numbers<[1], [0], [0], [1], [0, 0, 1, 1], [], []>} : vector<256x57xf32>, vector<57x512xf32>, vector<256x512xf32> -> vector<256x512xf32>
    %c0_4 = arith.constant 0 : index
    %c0_5 = arith.constant 0 : index
    %4 = vector.load %arg3[%c0_4, %c0_5] : memref<512x112xf32, #tpu.memory_space<vmem>>, vector<512x112xf32>
    %cst_6 = arith.constant dense<0.000000e+00> : vector<256x112xf32>
    %5 = tpu.matmul %3, %4, %cst_6 {dimension_numbers = #tpu.dot_dimension_numbers<[1], [0], [0], [1], [0, 0, 1, 1], [], []>} : vector<256x512xf32>, vector<512x112xf32>, vector<256x112xf32> -> vector<256x112xf32>
    %c0_7 = arith.constant 0 : index
    %c0_8 = arith.constant 0 : index
    %6 = vector.load %arg4[%c0_7, %c0_8] : memref<1x8xf32, #tpu.memory_space<vmem>>, vector<1x8xf32>
    %7 = vector.shape_cast %6 : vector<1x8xf32> to vector<1x1x8xf32>
    %8 = vector.shape_cast %7 : vector<1x1x8xf32> to vector<1x1x8xf32>
    %9 = vector.broadcast %8 : vector<1x1x8xf32> to vector<16x16x8xf32>
    %10 = vector.extract_strided_slice %5 {offsets = [0, 0], sizes = [256, 8], strides = [1, 1]} : vector<256x112xf32> to vector<256x8xf32>
    %11 = vector.shape_cast %10 : vector<256x8xf32> to vector<16x16x8xf32>
    %cst_9 = arith.constant 0.000000e+00 : f32
    %12 = vector.broadcast %cst_9 : f32 to vector<16x3x8xf32>
    %13 = vector.extract_strided_slice %11 {offsets = [0, 0, 0], sizes = [16, 13, 8], strides = [1, 1, 1]} : vector<16x16x8xf32> to vector<16x13x8xf32>
    %14 = tpu.concatenate %12, %13 in 1 : vector<16x3x8xf32>, vector<16x13x8xf32> -> vector<16x16x8xf32>
    %15 = arith.addf %9, %14 : vector<16x16x8xf32>
    %16 = vector.extract_strided_slice %5 {offsets = [0, 8], sizes = [256, 8], strides = [1, 1]} : vector<256x112xf32> to vector<256x8xf32>
    %17 = vector.shape_cast %16 : vector<256x8xf32> to vector<16x16x8xf32>
    %cst_10 = arith.constant 0.000000e+00 : f32
    %18 = vector.broadcast %cst_10 : f32 to vector<16x2x8xf32>
    %19 = vector.extract_strided_slice %17 {offsets = [0, 0, 0], sizes = [16, 14, 8], strides = [1, 1, 1]} : vector<16x16x8xf32> to vector<16x14x8xf32>
    %20 = tpu.concatenate %18, %19 in 1 : vector<16x2x8xf32>, vector<16x14x8xf32> -> vector<16x16x8xf32>
    %21 = arith.addf %15, %20 : vector<16x16x8xf32>
    %22 = vector.extract_strided_slice %5 {offsets = [0, 16], sizes = [256, 8], strides = [1, 1]} : vector<256x112xf32> to vector<256x8xf32>
    %23 = vector.shape_cast %22 : vector<256x8xf32> to vector<16x16x8xf32>
    %cst_11 = arith.constant 0.000000e+00 : f32
    %24 = vector.broadcast %cst_11 : f32 to vector<16x1x8xf32>
    %25 = vector.extract_strided_slice %23 {offsets = [0, 0, 0], sizes = [16, 15, 8], strides = [1, 1, 1]} : vector<16x16x8xf32> to vector<16x15x8xf32>
    %26 = tpu.concatenate %24, %25 in 1 : vector<16x1x8xf32>, vector<16x15x8xf32> -> vector<16x16x8xf32>
    %27 = arith.addf %21, %26 : vector<16x16x8xf32>
    %28 = vector.extract_strided_slice %5 {offsets = [0, 24], sizes = [256, 8], strides = [1, 1]} : vector<256x112xf32> to vector<256x8xf32>
    %29 = vector.shape_cast %28 : vector<256x8xf32> to vector<16x16x8xf32>
    %30 = arith.addf %27, %29 : vector<16x16x8xf32>
    %31 = vector.extract_strided_slice %5 {offsets = [0, 32], sizes = [256, 8], strides = [1, 1]} : vector<256x112xf32> to vector<256x8xf32>
    %32 = vector.shape_cast %31 : vector<256x8xf32> to vector<16x16x8xf32>
    %cst_12 = arith.constant 0.000000e+00 : f32
    %33 = vector.broadcast %cst_12 : f32 to vector<16x1x8xf32>
    %34 = vector.extract_strided_slice %32 {offsets = [0, 1, 0], sizes = [16, 15, 8], strides = [1, 1, 1]} : vector<16x16x8xf32> to vector<16x15x8xf32>
    %35 = tpu.concatenate %34, %33 in 1 : vector<16x15x8xf32>, vector<16x1x8xf32> -> vector<16x16x8xf32>
    %36 = arith.addf %30, %35 : vector<16x16x8xf32>
    %37 = vector.extract_strided_slice %5 {offsets = [0, 40], sizes = [256, 8], strides = [1, 1]} : vector<256x112xf32> to vector<256x8xf32>
    %38 = vector.shape_cast %37 : vector<256x8xf32> to vector<16x16x8xf32>
    %cst_13 = arith.constant 0.000000e+00 : f32
    %39 = vector.broadcast %cst_13 : f32 to vector<16x2x8xf32>
    %40 = vector.extract_strided_slice %38 {offsets = [0, 2, 0], sizes = [16, 14, 8], strides = [1, 1, 1]} : vector<16x16x8xf32> to vector<16x14x8xf32>
    %41 = tpu.concatenate %40, %39 in 1 : vector<16x14x8xf32>, vector<16x2x8xf32> -> vector<16x16x8xf32>
    %42 = arith.addf %36, %41 : vector<16x16x8xf32>
    %43 = vector.extract_strided_slice %5 {offsets = [0, 48], sizes = [256, 8], strides = [1, 1]} : vector<256x112xf32> to vector<256x8xf32>
    %44 = vector.shape_cast %43 : vector<256x8xf32> to vector<16x16x8xf32>
    %cst_14 = arith.constant 0.000000e+00 : f32
    %45 = vector.broadcast %cst_14 : f32 to vector<16x3x8xf32>
    %46 = vector.extract_strided_slice %44 {offsets = [0, 3, 0], sizes = [16, 13, 8], strides = [1, 1, 1]} : vector<16x16x8xf32> to vector<16x13x8xf32>
    %47 = tpu.concatenate %46, %45 in 1 : vector<16x13x8xf32>, vector<16x3x8xf32> -> vector<16x16x8xf32>
    %48 = arith.addf %42, %47 : vector<16x16x8xf32>
    %49 = vector.extract_strided_slice %5 {offsets = [0, 56], sizes = [256, 8], strides = [1, 1]} : vector<256x112xf32> to vector<256x8xf32>
    %50 = vector.shape_cast %49 : vector<256x8xf32> to vector<16x16x8xf32>
    %cst_15 = arith.constant 0.000000e+00 : f32
    %51 = vector.broadcast %cst_15 : f32 to vector<3x16x8xf32>
    %52 = vector.extract_strided_slice %50 {offsets = [0, 0, 0], sizes = [13, 16, 8], strides = [1, 1, 1]} : vector<16x16x8xf32> to vector<13x16x8xf32>
    %53 = tpu.concatenate %51, %52 in 0 : vector<3x16x8xf32>, vector<13x16x8xf32> -> vector<16x16x8xf32>
    %54 = arith.addf %48, %53 : vector<16x16x8xf32>
    %55 = vector.extract_strided_slice %5 {offsets = [0, 64], sizes = [256, 8], strides = [1, 1]} : vector<256x112xf32> to vector<256x8xf32>
    %56 = vector.shape_cast %55 : vector<256x8xf32> to vector<16x16x8xf32>
    %cst_16 = arith.constant 0.000000e+00 : f32
    %57 = vector.broadcast %cst_16 : f32 to vector<2x16x8xf32>
    %58 = vector.extract_strided_slice %56 {offsets = [0, 0, 0], sizes = [14, 16, 8], strides = [1, 1, 1]} : vector<16x16x8xf32> to vector<14x16x8xf32>
    %59 = tpu.concatenate %57, %58 in 0 : vector<2x16x8xf32>, vector<14x16x8xf32> -> vector<16x16x8xf32>
    %60 = arith.addf %54, %59 : vector<16x16x8xf32>
    %61 = vector.extract_strided_slice %5 {offsets = [0, 72], sizes = [256, 8], strides = [1, 1]} : vector<256x112xf32> to vector<256x8xf32>
    %62 = vector.shape_cast %61 : vector<256x8xf32> to vector<16x16x8xf32>
    %cst_17 = arith.constant 0.000000e+00 : f32
    %63 = vector.broadcast %cst_17 : f32 to vector<1x16x8xf32>
    %64 = vector.extract_strided_slice %62 {offsets = [0, 0, 0], sizes = [15, 16, 8], strides = [1, 1, 1]} : vector<16x16x8xf32> to vector<15x16x8xf32>
    %65 = tpu.concatenate %63, %64 in 0 : vector<1x16x8xf32>, vector<15x16x8xf32> -> vector<16x16x8xf32>
    %66 = arith.addf %60, %65 : vector<16x16x8xf32>
    %67 = vector.extract_strided_slice %5 {offsets = [0, 80], sizes = [256, 8], strides = [1, 1]} : vector<256x112xf32> to vector<256x8xf32>
    %68 = vector.shape_cast %67 : vector<256x8xf32> to vector<16x16x8xf32>
    %69 = arith.addf %66, %68 : vector<16x16x8xf32>
    %70 = vector.extract_strided_slice %5 {offsets = [0, 88], sizes = [256, 8], strides = [1, 1]} : vector<256x112xf32> to vector<256x8xf32>
    %71 = vector.shape_cast %70 : vector<256x8xf32> to vector<16x16x8xf32>
    %cst_18 = arith.constant 0.000000e+00 : f32
    %72 = vector.broadcast %cst_18 : f32 to vector<1x16x8xf32>
    %73 = vector.extract_strided_slice %71 {offsets = [1, 0, 0], sizes = [15, 16, 8], strides = [1, 1, 1]} : vector<16x16x8xf32> to vector<15x16x8xf32>
    %74 = tpu.concatenate %73, %72 in 0 : vector<15x16x8xf32>, vector<1x16x8xf32> -> vector<16x16x8xf32>
    %75 = arith.addf %69, %74 : vector<16x16x8xf32>
    %76 = vector.extract_strided_slice %5 {offsets = [0, 96], sizes = [256, 8], strides = [1, 1]} : vector<256x112xf32> to vector<256x8xf32>
    %77 = vector.shape_cast %76 : vector<256x8xf32> to vector<16x16x8xf32>
    %cst_19 = arith.constant 0.000000e+00 : f32
    %78 = vector.broadcast %cst_19 : f32 to vector<2x16x8xf32>
    %79 = vector.extract_strided_slice %77 {offsets = [2, 0, 0], sizes = [14, 16, 8], strides = [1, 1, 1]} : vector<16x16x8xf32> to vector<14x16x8xf32>
    %80 = tpu.concatenate %79, %78 in 0 : vector<14x16x8xf32>, vector<2x16x8xf32> -> vector<16x16x8xf32>
    %81 = arith.addf %75, %80 : vector<16x16x8xf32>
    %82 = vector.extract_strided_slice %5 {offsets = [0, 104], sizes = [256, 8], strides = [1, 1]} : vector<256x112xf32> to vector<256x8xf32>
    %83 = vector.shape_cast %82 : vector<256x8xf32> to vector<16x16x8xf32>
    %cst_20 = arith.constant 0.000000e+00 : f32
    %84 = vector.broadcast %cst_20 : f32 to vector<3x16x8xf32>
    %85 = vector.extract_strided_slice %83 {offsets = [3, 0, 0], sizes = [13, 16, 8], strides = [1, 1, 1]} : vector<16x16x8xf32> to vector<13x16x8xf32>
    %86 = tpu.concatenate %85, %84 in 0 : vector<13x16x8xf32>, vector<3x16x8xf32> -> vector<16x16x8xf32>
    %87 = arith.addf %81, %86 : vector<16x16x8xf32>
    %88 = vector.shape_cast %87 : vector<16x16x8xf32> to vector<16x128xf32>
    %c0_21 = arith.constant 0 : index
    %c0_22 = arith.constant 0 : index
    %c0_23 = arith.constant 0 : index
    %89 = vector.load %arg5[%c0_21, %c0_22, %c0_23] : memref<1x16x128xf32, #tpu.memory_space<vmem>>, vector<1x16x128xf32>
    %90 = vector.shape_cast %89 : vector<1x16x128xf32> to vector<16x128xf32>
    %91 = vector.shape_cast %88 : vector<16x128xf32> to vector<1x16x128xf32>
    tpu.vector_store %arg5[%c0_21, %c0_22, %c0_23], %91 {strides = array<i32>} : memref<1x16x128xf32, #tpu.memory_space<vmem>>, vector<1x16x128xf32>,
    return
  }
  func.func @transform_0(%arg0: i32) -> (i32, i32, i32) {
    %c0_i32 = arith.constant 0 : i32
    %c0_i32_0 = arith.constant 0 : i32
    %c0_i32_1 = arith.constant 0 : i32
    return %arg0, %c0_i32, %c0_i32_0 : i32, i32, i32
  }
  func.func @transform_1(%arg0: i32) -> (i32, i32) {
    %c0_i32 = arith.constant 0 : i32
    %c0_i32_0 = arith.constant 0 : i32
    %c0_i32_1 = arith.constant 0 : i32
    return %c0_i32, %c0_i32_0 : i32, i32
  }
  func.func @transform_2(%arg0: i32) -> (i32, i32) {
    %c0_i32 = arith.constant 0 : i32
    %c0_i32_0 = arith.constant 0 : i32
    %c0_i32_1 = arith.constant 0 : i32
    return %c0_i32, %c0_i32_0 : i32, i32
  }
  func.func @transform_3(%arg0: i32) -> (i32, i32) {
    %c0_i32 = arith.constant 0 : i32
    %c0_i32_0 = arith.constant 0 : i32
    %c0_i32_1 = arith.constant 0 : i32
    return %c0_i32, %c0_i32_0 : i32, i32
  }
  func.func @transform_4(%arg0: i32) -> (i32, i32, i32) {
    %c0_i32 = arith.constant 0 : i32
    %c0_i32_0 = arith.constant 0 : i32
    %c0_i32_1 = arith.constant 0 : i32
    return %arg0, %c0_i32, %c0_i32_0 : i32, i32, i32
  }
}

</mosaic_0001>

<llo_original>
// kernel: gc_forward.1
$region0: #{gc_forward.1}
  #allocation0 [shape = 'u32[]', space=smem, size = 0x4, offset = 0x4, fixed_abs, tag = 'smem constant byte address 0x4 - core index']
  #allocation1 [shape = 'u32[72,128]{1,0:T(1,128)}', space=vmem, size = 0x9000, scoped, tag = 'internal scratch']
  %s0 = inlined_call_operand.vmem [shape: f32[2,256,57], index: 0, kind: input, shape index: {}]
  %s1 = inlined_call_operand.vmem [shape: f32[57,512], index: 1, kind: input, shape index: {}]
  %s2 = inlined_call_operand.vmem [shape: f32[512,112], index: 2, kind: input, shape index: {}]
  %s3 = inlined_call_operand.vmem [shape: f32[1,8], index: 3, kind: input, shape index: {}]
  %s4 = inlined_call_operand.vmem [shape: f32[2,16,128], index: 4, kind: output, shape index: {}]
  %s5 = sld [smem:[#allocation0]]
  $region49: #{gc_forward.1} parent=0
    _
  %s7 = ssub.s32 1, %s5
  %s8 = scalar_select 0, %s7, %s5
  loop: start=0, step=1, limit=4
  $region2: #{gc_forward.1} parent=0 // loop_pre_header
    _
  $region3: #{gc_forward.1} parent=0 // loop_header
    %s10 = sphi 0, %s14
    %p11 = scmp.ge.s32.totalorder %s10, 4
    %s20 = sphi 0, %s22
    %s23 = sphi 0, %s20
    %s24 = sphi 0, %s23
    %s40 = sphi 0, %s24
    %s44 = sphi 0, %s44
    %s46 = sphi 0, %s44
    %s47 = sphi 0, %s46
    %s61 = sphi 0, %s47
    %s65 = sphi 0, %s65
    %s67 = sphi 0, %s65
    %s68 = sphi 0, %s67
    %s82 = sphi 0, %s68
    %s86 = sphi 0, %s86
    %s88 = sphi 0, %s86
    %s89 = sphi 0, %s88
    %s103 = sphi 0, %s89
    %s109 = sphi 0, %s111
    %s112 = sphi 0, %s109
    %s113 = sphi 0, %s112
    %s129 = sphi 0, %s113
  $region4: #{gc_forward.1} parent=0 // loop_header_branch
    %13 = sbr.rel (%p11) target = $region8
  $region5: #{gc_forward.1} parent=0 // loop_body
    %s15 = ssub.s32 %s10, 1
    %s16 = ssub.s32 %s10, 2
    %s17 = sadd.s32 %s10, 1
    %s18 = ssub.s32 %s10, %s17
    %p19 = scmp.eq.s32.totalorder %s18, 0
    %s21 = sadd.s32 %s20, 1
    %s22 = scalar_select %p19, %s20, %s21
    %p25 = pneg %p19
    %p26 = scmp.eq.s32.totalorder %s10, 1
    %p27 = por %p25, %p26
    %p28 = scmp.ne.s32.totalorder %s20, %s23
    %p29 = scmp.eq.s32.totalorder %s10, 0
    %p30 = por %p28, %p29
    %p31 = scmp.ne.s32.totalorder %s20, %s23
    %p32 = scmp.eq.s32.totalorder %s15, 1
    %p33 = por %p31, %p32
    %p34 = scmp.ne.s32.totalorder %s23, %s24
    %p35 = scmp.eq.s32.totalorder %s15, 0
    %p36 = por %p34, %p35
    %p37 = scmp.ne.s32.totalorder %s23, %s24
    %p38 = scmp.eq.s32.totalorder %s16, 1
    %p39 = por %p37, %p38
    %p41 = scmp.ne.s32.totalorder %s24, %s40
    %p42 = scmp.eq.s32.totalorder %s16, 0
    %p43 = por %p41, %p42
    %s45 = sadd.s32 %s44, 1
    %p48 = scmp.eq.s32.totalorder %s10, 1
    %p49 = scmp.ne.s32.totalorder %s44, %s46
    %p50 = scmp.eq.s32.totalorder %s10, 0
    %p51 = por %p49, %p50
    %p52 = scmp.ne.s32.totalorder %s44, %s46
    %p53 = scmp.eq.s32.totalorder %s15, 1
    %p54 = por %p52, %p53
    %p55 = scmp.ne.s32.totalorder %s46, %s47
    %p56 = scmp.eq.s32.totalorder %s15, 0
    %p57 = por %p55, %p56
    %p58 = scmp.ne.s32.totalorder %s46, %s47
    %p59 = scmp.eq.s32.totalorder %s16, 1
    %p60 = por %p58, %p59
    %p62 = scmp.ne.s32.totalorder %s47, %s61
    %p63 = scmp.eq.s32.totalorder %s16, 0
    %p64 = por %p62, %p63
    %s66 = sadd.s32 %s65, 1
    %p69 = scmp.eq.s32.totalorder %s10, 1
    %p70 = scmp.ne.s32.totalorder %s65, %s67
    %p71 = scmp.eq.s32.totalorder %s10, 0
    %p72 = por %p70, %p71
    %p73 = scmp.ne.s32.totalorder %s65, %s67
    %p74 = scmp.eq.s32.totalorder %s15, 1
    %p75 = por %p73, %p74
    %p76 = scmp.ne.s32.totalorder %s67, %s68
    %p77 = scmp.eq.s32.totalorder %s15, 0
    %p78 = por %p76, %p77
    %p79 = scmp.ne.s32.totalorder %s67, %s68
    %p80 = scmp.eq.s32.totalorder %s16, 1
    %p81 = por %p79, %p80
    %p83 = scmp.ne.s32.totalorder %s68, %s82
    %p84 = scmp.eq.s32.totalorder %s16, 0
    %p85 = por %p83, %p84
    %s87 = sadd.s32 %s86, 1
    %p90 = scmp.eq.s32.totalorder %s10, 1
    %p91 = scmp.ne.s32.totalorder %s86, %s88
    %p92 = scmp.eq.s32.totalorder %s10, 0
    %p93 = por %p91, %p92
    %p94 = scmp.ne.s32.totalorder %s86, %s88
    %p95 = scmp.eq.s32.totalorder %s15, 1
    %p96 = por %p94, %p95
    %p97 = scmp.ne.s32.totalorder %s88, %s89
    %p98 = scmp.eq.s32.totalorder %s15, 0
    %p99 = por %p97, %p98
    %p100 = scmp.ne.s32.totalorder %s88, %s89
    %p101 = scmp.eq.s32.totalorder %s16, 1
    %p102 = por %p100, %p101
    %p104 = scmp.ne.s32.totalorder %s89, %s103
    %p105 = scmp.eq.s32.totalorder %s16, 0
    %p106 = por %p104, %p105
    %s107 = ssub.s32 %s10, %s17
    %p108 = scmp.eq.s32.totalorder %s107, 0
    %s110 = sadd.s32 %s109, 1
    %s111 = scalar_select %p108, %s109, %s110
    %p114 = pneg %p108
    %p115 = scmp.eq.s32.totalorder %s10, 1
    %p116 = por %p114, %p115
    %p117 = scmp.ne.s32.totalorder %s109, %s112
    %p118 = scmp.eq.s32.totalorder %s10, 0
    %p119 = por %p117, %p118
    %p120 = scmp.ne.s32.totalorder %s109, %s112
    %p121 = scmp.eq.s32.totalorder %s15, 1
    %p122 = por %p120, %p121
    %p123 = scmp.ne.s32.totalorder %s112, %s113
    %p124 = scmp.eq.s32.totalorder %s15, 0
    %p125 = por %p123, %p124
    %p126 = scmp.ne.s32.totalorder %s112, %s113
    %p127 = scmp.eq.s32.totalorder %s16, 1
    %p128 = por %p126, %p127
    %p130 = scmp.ne.s32.totalorder %s113, %s129
    %p131 = scmp.eq.s32.totalorder %s16, 0
    %p132 = por %p130, %p131
    %p133 = scmp.le.s32.totalorder 1, %s10
    %p134 = scmp.lt.s32.totalorder %s10, 3
    %p135 = pnand %p133, %p134
    %p136 = pneg %p135
    // Predicated region
    $region9: #{gc_forward.1} parent=5 // pred_check
      _
    $region10: #{gc_forward.1} parent=5 // pred_check_branch
      %138 = sbr.rel (%p135) target = $region12
    $region11: #{gc_forward.1} parent=5 // pred_region
      %s139 = ssub.s32 %s10, 1
      // Predicated region
      $region13: #{gc_forward.1} parent=11 // pred_check
        %p140 = pneg %p57
      $region14: #{gc_forward.1} parent=11 // pred_check_branch
        %142 = sbr.rel (%p140) target = $region16
      $region15: #{gc_forward.1} parent=11 // pred_region
        _
      $region16: #{gc_forward.1} parent=11 // pred_fallthru
        _
      // Predicated region
      $region17: #{gc_forward.1} parent=11 // pred_check
        %p143 = pneg %p78
      $region18: #{gc_forward.1} parent=11 // pred_check_branch
        %145 = sbr.rel (%p143) target = $region20
      $region19: #{gc_forward.1} parent=11 // pred_region
        _
      $region20: #{gc_forward.1} parent=11 // pred_fallthru
        _
      // Predicated region
      $region21: #{gc_forward.1} parent=11 // pred_check
        %p146 = pneg %p99
      $region22: #{gc_forward.1} parent=11 // pred_check_branch
        %148 = sbr.rel (%p146) target = $region24
      $region23: #{gc_forward.1} parent=11 // pred_region
        _
      $region24: #{gc_forward.1} parent=11 // pred_fallthru
        _
    $region12: #{gc_forward.1} parent=5 // pred_fallthru
      _
    %p149 = scmp.lt.s32.totalorder %s10, 2
    // Predicated region
    $region25: #{gc_forward.1} parent=5 // pred_check
      %p150 = pneg %p149
    $region26: #{gc_forward.1} parent=5 // pred_check_branch
      %152 = sbr.rel (%p150) target = $region28
    $region27: #{gc_forward.1} parent=5 // pred_region
      // Predicated region
      $region29: #{gc_forward.1} parent=27 // pred_check
        %p153 = pneg %p30
      $region30: #{gc_forward.1} parent=27 // pred_check_branch
        %155 = sbr.rel (%p153) target = $region32
      $region31: #{gc_forward.1} parent=27 // pred_region
        %p156 = scmp.lt.s32.totalorder %s10, 1
        %s157 = scalar_select %p156, %s10, 1
        %s158 = smul.addr %s157, 32
        %s159 = smul.addr %s158, 8
        %s160 = scalar_lea.vmem %s0, %s159
      $region32: #{gc_forward.1} parent=27 // pred_fallthru
        _
    $region28: #{gc_forward.1} parent=5 // pred_fallthru
      _
    %p161 = scmp.le.s32.totalorder 1, %s10
    %p162 = scmp.lt.s32.totalorder %s10, 3
    %p163 = pnand %p161, %p162
    %p164 = pneg %p163
    // Predicated region
    $region33: #{gc_forward.1} parent=5 // pred_check
      _
    $region34: #{gc_forward.1} parent=5 // pred_check_branch
      %166 = sbr.rel (%p163) target = $region36
    $region35: #{gc_forward.1} parent=5 // pred_region
      %s167 = ssub.s32 %s10, 1
      %p168 = scmp.lt.s32.totalorder %s15, 1
      %s169 = scalar_select %p168, %s15, 1
      %s170 = smul.addr %s169, 32
      %s171 = smul.addr %s170, 8
      %s172 = scalar_lea.vmem %s0, %s171
      %p173 = pneg %p36
      %p174 = pneg %p33
      %p175 = pneg %p57
      %p176 = pneg %p54
      %p177 = pneg %p78
      %p178 = pneg %p75
      %p179 = pneg %p99
      %p180 = pneg %p96
      %p181 = pneg %p125
      %p182 = pneg %p122
      %p183 = scmp.lt.s32.totalorder %s15, 1
      %s184 = scalar_select %p183, %s15, 1
      %s185 = smul.addr %s184, 2
      %s186 = smul.addr %s185, 8
      %s187 = scalar_lea.vmem %s4, %s186
      %p188 = scmp.lt.s32.totalorder %s15, 1
      %s189 = scalar_select %p188, %s15, 1
      %s190 = smul.addr %s189, 32
      %s191 = smul.addr %s190, 8
      %s192 = scalar_lea.vmem %s0, %s191
      %p193 = scmp.lt.s32.totalorder %s15, 1
      %s194 = scalar_select %p193, %s15, 1
      %s195 = smul.addr %s194, 2
      %s196 = smul.addr %s195, 8
      %s197 = scalar_lea.vmem %s4, %s196
      %v198 = vld [vmem:[%s192] sm:$0xff]
      %v199 = vld [vmem:[%s192 + $0x8] sm:$0xff]
      %v200 = vld [vmem:[%s192 + $0x10] sm:$0xff]
      %v201 = vld [vmem:[%s192 + $0x18] sm:$0xff]
      %v202 = vld [vmem:[%s192 + $0x20] sm:$0xff]
      %v203 = vld [vmem:[%s192 + $0x28] sm:$0xff]
      %v204 = vld [vmem:[%s192 + $0x30] sm:$0xff]
      %v205 = vld [vmem:[%s192 + $0x38] sm:$0xff]
      %v206 = vld [vmem:[%s192 + $0x40] sm:$0xff]
      %v207 = vld [vmem:[%s192 + $0x48] sm:$0xff]
      %v208 = vld [vmem:[%s192 + $0x50] sm:$0xff]
      %v209 = vld [vmem:[%s192 + $0x58] sm:$0xff]
      %v210 = vld [vmem:[%s192 + $0x60] sm:$0xff]
      %v211 = vld [vmem:[%s192 + $0x68] sm:$0xff]
      %v212 = vld [vmem:[%s192 + $0x70] sm:$0xff]
      %v213 = vld [vmem:[%s192 + $0x78] sm:$0xff]
      %v214 = vld [vmem:[%s192 + $0x80] sm:$0xff]
      %v215 = vld [vmem:[%s192 + $0x88] sm:$0xff]
      %v216 = vld [vmem:[%s192 + $0x90] sm:$0xff]
      %v217 = vld [vmem:[%s192 + $0x98] sm:$0xff]
      %v218 = vld [vmem:[%s192 + $0xa0] sm:$0xff]
      %v219 = vld [vmem:[%s192 + $0xa8] sm:$0xff]
      %v220 = vld [vmem:[%s192 + $0xb0] sm:$0xff]
      %v221 = vld [vmem:[%s192 + $0xb8] sm:$0xff]
      %v222 = vld [vmem:[%s192 + $0xc0] sm:$0xff]
      %v223 = vld [vmem:[%s192 + $0xc8] sm:$0xff]
      %v224 = vld [vmem:[%s192 + $0xd0] sm:$0xff]
      %v225 = vld [vmem:[%s192 + $0xd8] sm:$0xff]
      %v226 = vld [vmem:[%s192 + $0xe0] sm:$0xff]
      %v227 = vld [vmem:[%s192 + $0xe8] sm:$0xff]
      %v228 = vld [vmem:[%s192 + $0xf0] sm:$0xff]
      %v229 = vld [vmem:[%s192 + $0xf8] sm:$0xff]
      %v230 = vld [vmem:[%s1] sm:$0xff]
      %v231 = vld [vmem:[%s1 + $0x8] sm:$0xff]
      %v232 = vld [vmem:[%s1 + $0x10] sm:$0xff]
      %v233 = vld [vmem:[%s1 + $0x18] sm:$0xff]
      %v234 = vld [vmem:[%s1 + $0x20] sm:$0xff]
      %v235 = vld [vmem:[%s1 + $0x28] sm:$0xff]
      %v236 = vld [vmem:[%s1 + $0x30] sm:$0xff]
      %v237 = vld [vmem:[%s1 + $0x38] sm:$0xff]
      %v238 = vld [vmem:[%s1 + $0x40] sm:$0xff]
      %v239 = vld [vmem:[%s1 + $0x48] sm:$0xff]
      %v240 = vld [vmem:[%s1 + $0x50] sm:$0xff]
      %v241 = vld [vmem:[%s1 + $0x58] sm:$0xff]
      %v242 = vld [vmem:[%s1 + $0x60] sm:$0xff]
      %v243 = vld [vmem:[%s1 + $0x68] sm:$0xff]
      %v244 = vld [vmem:[%s1 + $0x70] sm:$0xff]
      %v245 = vld [vmem:[%s1 + $0x78] sm:$0xff]
      %v246 = vld [vmem:[%s1 + $0x80] sm:$0xff]
      %v247 = vld [vmem:[%s1 + $0x88] sm:$0xff]
      %v248 = vld [vmem:[%s1 + $0x90] sm:$0xff]
      %v249 = vld [vmem:[%s1 + $0x98] sm:$0xff]
      %v250 = vld [vmem:[%s1 + $0xa0] sm:$0xff]
      %v251 = vld [vmem:[%s1 + $0xa8] sm:$0xff]
      %v252 = vld [vmem:[%s1 + $0xb0] sm:$0xff]
      %v253 = vld [vmem:[%s1 + $0xb8] sm:$0xff]
      %v254 = vld [vmem:[%s1 + $0xc0] sm:$0xff]
      %v255 = vld [vmem:[%s1 + $0xc8] sm:$0xff]
      %v256 = vld [vmem:[%s1 + $0xd0] sm:$0xff]
      %v257 = vld [vmem:[%s1 + $0xd8] sm:$0xff]
      %v258 = vld [vmem:[%s1 + $0xe0] sm:$0x1]
      %v259 = vld [vmem:[%s1 + $0xe8] sm:$0x1]
      %v260 = vld [vmem:[%s1 + $0xf0] sm:$0x1]
      %v261 = vld [vmem:[%s1 + $0xf8] sm:$0x1]
      %vm262 = vcmask 465920
      %v264 = vsel %vm262, %v198, 0
      %v267 = vsel %vm262, %v199, 0
      %v270 = vsel %vm262, %v200, 0
      %v273 = vsel %vm262, %v201, 0
      %v276 = vsel %vm262, %v202, 0
      %v279 = vsel %vm262, %v203, 0
      %v282 = vsel %vm262, %v204, 0
      %v285 = vsel %vm262, %v205, 0
      %v288 = vsel %vm262, %v206, 0
      %v291 = vsel %vm262, %v207, 0
      %v294 = vsel %vm262, %v208, 0
      %v297 = vsel %vm262, %v209, 0
      %v300 = vsel %vm262, %v210, 0
      %v303 = vsel %vm262, %v211, 0
      %v306 = vsel %vm262, %v212, 0
      %v309 = vsel %vm262, %v213, 0
      %v312 = vsel %vm262, %v214, 0
      %v315 = vsel %vm262, %v215, 0
      %v318 = vsel %vm262, %v216, 0
      %v321 = vsel %vm262, %v217, 0
      %v324 = vsel %vm262, %v218, 0
      %v327 = vsel %vm262, %v219, 0
      %v330 = vsel %vm262, %v220, 0
      %v333 = vsel %vm262, %v221, 0
      %v336 = vsel %vm262, %v222, 0
      %v339 = vsel %vm262, %v223, 0
      %v342 = vsel %vm262, %v224, 0
      %v345 = vsel %vm262, %v225, 0
      %v348 = vsel %vm262, %v226, 0
      %v351 = vsel %vm262, %v227, 0
      %v354 = vsel %vm262, %v228, 0
      %v357 = vsel %vm262, %v229, 0
      %vm359 = vcmask 1040384
      %v361 = vsel %vm359, %v258, 0
      %v364 = vsel %vm359, %v259, 0
      %v367 = vsel %vm359, %v260, 0
      %v370 = vsel %vm359, %v261, 0
      %372 = vmatpush.msra.mxu0 0.0
      %373 = vmatpush.msra.mxu0 0.0
      %374 = vmatpush.msra.mxu0 0.0
      %375 = vmatpush.msra.mxu0 0.0
      %376 = vmatpush.msra.mxu0 0.0
      %377 = vmatpush.msra.mxu0 0.0
      %378 = vmatpush.msra.mxu0 0.0
      %379 = vmatpush.msra.mxu0 0.0
      %380 = vmatpush.msra.mxu0 %v361
      %381 = vmatpush.msra.mxu0 %v254
      %382 = vmatpush.msra.mxu0 %v250
      %383 = vmatpush.msra.mxu0 %v246
      %384 = vmatpush.msra.mxu0 %v242
      %385 = vmatpush.msra.mxu0 %v238
      %386 = vmatpush.msra.mxu0 %v234
      %387 = vmatpush.msra.mxu0 %v230
      %388 = vmatmul.f32.gmra.mxu0 %v264
      %v389 = vpop.f32.mrf.mxu0
      %v390 = vadd.f32 0.0, %v389
      %391 = vmatmul.f32.gmra.mxu0 %v267
      %v392 = vpop.f32.mrf.mxu0
      %v393 = vadd.f32 0.0, %v392
      %394 = vmatmul.f32.gmra.mxu0 %v270
      %v395 = vpop.f32.mrf.mxu0
      %v396 = vadd.f32 0.0, %v395
      %397 = vmatmul.f32.gmra.mxu0 %v273
      %v398 = vpop.f32.mrf.mxu0
      %v399 = vadd.f32 0.0, %v398
      %400 = vmatmul.f32.gmra.mxu0 %v276
      %v401 = vpop.f32.mrf.mxu0
      %v402 = vadd.f32 0.0, %v401
      %403 = vmatmul.f32.gmra.mxu0 %v279
      %v404 = vpop.f32.mrf.mxu0
      %v405 = vadd.f32 0.0, %v404
      %406 = vmatmul.f32.gmra.mxu0 %v282
      %v407 = vpop.f32.mrf.mxu0
      %v408 = vadd.f32 0.0, %v407
      %409 = vmatmul.f32.gmra.mxu0 %v285
      %v410 = vpop.f32.mrf.mxu0
      %v411 = vadd.f32 0.0, %v410
      %412 = vmatmul.f32.gmra.mxu0 %v288
      %v413 = vpop.f32.mrf.mxu0
      %v414 = vadd.f32 0.0, %v413
      %415 = vmatmul.f32.gmra.mxu0 %v291
      %v416 = vpop.f32.mrf.mxu0
      %v417 = vadd.f32 0.0, %v416
      %418 = vmatmul.f32.gmra.mxu0 %v294
      %v419 = vpop.f32.mrf.mxu0
      %v420 = vadd.f32 0.0, %v419
      %421 = vmatmul.f32.gmra.mxu0 %v297
      %v422 = vpop.f32.mrf.mxu0
      %v423 = vadd.f32 0.0, %v422
      %424 = vmatmul.f32.gmra.mxu0 %v300
      %v425 = vpop.f32.mrf.mxu0
      %v426 = vadd.f32 0.0, %v425
      %427 = vmatmul.f32.gmra.mxu0 %v303
      %v428 = vpop.f32.mrf.mxu0
      %v429 = vadd.f32 0.0, %v428
      %430 = vmatmul.f32.gmra.mxu0 %v306
      %v431 = vpop.f32.mrf.mxu0
      %v432 = vadd.f32 0.0, %v431
      %433 = vmatmul.f32.gmra.mxu0 %v309
      %v434 = vpop.f32.mrf.mxu0
      %v435 = vadd.f32 0.0, %v434
      %436 = vmatmul.f32.gmra.mxu0 %v312
      %v437 = vpop.f32.mrf.mxu0
      %v438 = vadd.f32 0.0, %v437
      %439 = vmatmul.f32.gmra.mxu0 %v315
      %v440 = vpop.f32.mrf.mxu0
      %v441 = vadd.f32 0.0, %v440
      %442 = vmatmul.f32.gmra.mxu0 %v318
      %v443 = vpop.f32.mrf.mxu0
      %v444 = vadd.f32 0.0, %v443
      %445 = vmatmul.f32.gmra.mxu0 %v321
      %v446 = vpop.f32.mrf.mxu0
      %v447 = vadd.f32 0.0, %v446
      %448 = vmatmul.f32.gmra.mxu0 %v324
      %v449 = vpop.f32.mrf.mxu0
      %v450 = vadd.f32 0.0, %v449
      %451 = vmatmul.f32.gmra.mxu0 %v327
      %v452 = vpop.f32.mrf.mxu0
      %v453 = vadd.f32 0.0, %v452
      %454 = vmatmul.f32.gmra.mxu0 %v330
      %v455 = vpop.f32.mrf.mxu0
      %v456 = vadd.f32 0.0, %v455
      %457 = vmatmul.f32.gmra.mxu0 %v333
      %v458 = vpop.f32.mrf.mxu0
      %v459 = vadd.f32 0.0, %v458
      %460 = vmatmul.f32.gmra.mxu0 %v336
      %v461 = vpop.f32.mrf.mxu0
      %v462 = vadd.f32 0.0, %v461
      %463 = vmatmul.f32.gmra.mxu0 %v339
      %v464 = vpop.f32.mrf.mxu0
      %v465 = vadd.f32 0.0, %v464
      %466 = vmatmul.f32.gmra.mxu0 %v342
      %v467 = vpop.f32.mrf.mxu0
      %v468 = vadd.f32 0.0, %v467
      %469 = vmatmul.f32.gmra.mxu0 %v345
      %v470 = vpop.f32.mrf.mxu0
      %v471 = vadd.f32 0.0, %v470
      %472 = vmatmul.f32.gmra.mxu0 %v348
      %v473 = vpop.f32.mrf.mxu0
      %v474 = vadd.f32 0.0, %v473
      %475 = vmatmul.f32.gmra.mxu0 %v351
      %v476 = vpop.f32.mrf.mxu0
      %v477 = vadd.f32 0.0, %v476
      %478 = vmatmul.f32.gmra.mxu0 %v354
      %v479 = vpop.f32.mrf.mxu0
      %v480 = vadd.f32 0.0, %v479
      %481 = vmatmul.f32.gmra.mxu0 %v357
      %v482 = vpop.f32.mrf.mxu0
      %v483 = vadd.f32 0.0, %v482
      %484 = vdwg.mxu0
      %485 = vmatpush.msra.mxu0 0.0
      %486 = vmatpush.msra.mxu0 0.0
      %487 = vmatpush.msra.mxu0 0.0
      %488 = vmatpush.msra.mxu0 0.0
      %489 = vmatpush.msra.mxu0 0.0
      %490 = vmatpush.msra.mxu0 0.0
      %491 = vmatpush.msra.mxu0 0.0
      %492 = vmatpush.msra.mxu0 0.0
      %493 = vmatpush.msra.mxu0 %v364
      %494 = vmatpush.msra.mxu0 %v255
      %495 = vmatpush.msra.mxu0 %v251
      %496 = vmatpush.msra.mxu0 %v247
      %497 = vmatpush.msra.mxu0 %v243
      %498 = vmatpush.msra.mxu0 %v239
      %499 = vmatpush.msra.mxu0 %v235
      %500 = vmatpush.msra.mxu0 %v231
      %501 = vmatmul.f32.gmra.mxu0 %v264
      %v502 = vpop.f32.mrf.mxu0
      %v503 = vadd.f32 0.0, %v502
      %504 = vmatmul.f32.gmra.mxu0 %v267
      %v505 = vpop.f32.mrf.mxu0
      %v506 = vadd.f32 0.0, %v505
      %507 = vmatmul.f32.gmra.mxu0 %v270
      %v508 = vpop.f32.mrf.mxu0
      %v509 = vadd.f32 0.0, %v508
      %510 = vmatmul.f32.gmra.mxu0 %v273
      %v511 = vpop.f32.mrf.mxu0
      %v512 = vadd.f32 0.0, %v511
      %513 = vmatmul.f32.gmra.mxu0 %v276
      %v514 = vpop.f32.mrf.mxu0
      %v515 = vadd.f32 0.0, %v514
      %516 = vmatmul.f32.gmra.mxu0 %v279
      %v517 = vpop.f32.mrf.mxu0
      %v518 = vadd.f32 0.0, %v517
      %519 = vmatmul.f32.gmra.mxu0 %v282
      %v520 = vpop.f32.mrf.mxu0
      %v521 = vadd.f32 0.0, %v520
      %522 = vmatmul.f32.gmra.mxu0 %v285
      %v523 = vpop.f32.mrf.mxu0
      %v524 = vadd.f32 0.0, %v523
      %525 = vmatmul.f32.gmra.mxu0 %v288
      %v526 = vpop.f32.mrf.mxu0
      %v527 = vadd.f32 0.0, %v526
      %528 = vmatmul.f32.gmra.mxu0 %v291
      %v529 = vpop.f32.mrf.mxu0
      %v530 = vadd.f32 0.0, %v529
      %531 = vmatmul.f32.gmra.mxu0 %v294
      %v532 = vpop.f32.mrf.mxu0
      %v533 = vadd.f32 0.0, %v532
      %534 = vmatmul.f32.gmra.mxu0 %v297
      %v535 = vpop.f32.mrf.mxu0
      %v536 = vadd.f32 0.0, %v535
      %537 = vmatmul.f32.gmra.mxu0 %v300
      %v538 = vpop.f32.mrf.mxu0
      %v539 = vadd.f32 0.0, %v538
      %540 = vmatmul.f32.gmra.mxu0 %v303
      %v541 = vpop.f32.mrf.mxu0
      %v542 = vadd.f32 0.0, %v541
      %543 = vmatmul.f32.gmra.mxu0 %v306
      %v544 = vpop.f32.mrf.mxu0
      %v545 = vadd.f32 0.0, %v544
      %546 = vmatmul.f32.gmra.mxu0 %v309
      %v547 = vpop.f32.mrf.mxu0
      %v548 = vadd.f32 0.0, %v547
      %549 = vmatmul.f32.gmra.mxu0 %v312
      %v550 = vpop.f32.mrf.mxu0
      %v551 = vadd.f32 0.0, %v550
      %552 = vmatmul.f32.gmra.mxu0 %v315
      %v553 = vpop.f32.mrf.mxu0
      %v554 = vadd.f32 0.0, %v553
      %555 = vmatmul.f32.gmra.mxu0 %v318
      %v556 = vpop.f32.mrf.mxu0
      %v557 = vadd.f32 0.0, %v556
      %558 = vmatmul.f32.gmra.mxu0 %v321
      %v559 = vpop.f32.mrf.mxu0
      %v560 = vadd.f32 0.0, %v559
      %561 = vmatmul.f32.gmra.mxu0 %v324
      %v562 = vpop.f32.mrf.mxu0
      %v563 = vadd.f32 0.0, %v562
      %564 = vmatmul.f32.gmra.mxu0 %v327
      %v565 = vpop.f32.mrf.mxu0
      %v566 = vadd.f32 0.0, %v565
      %567 = vmatmul.f32.gmra.mxu0 %v330
      %v568 = vpop.f32.mrf.mxu0
      %v569 = vadd.f32 0.0, %v568
      %570 = vmatmul.f32.gmra.mxu0 %v333
      %v571 = vpop.f32.mrf.mxu0
      %v572 = vadd.f32 0.0, %v571
      %573 = vmatmul.f32.gmra.mxu0 %v336
      %v574 = vpop.f32.mrf.mxu0
      %v575 = vadd.f32 0.0, %v574
      %576 = vmatmul.f32.gmra.mxu0 %v339
      %v577 = vpop.f32.mrf.mxu0
      %v578 = vadd.f32 0.0, %v577
      %579 = vmatmul.f32.gmra.mxu0 %v342
      %v580 = vpop.f32.mrf.mxu0
      %v581 = vadd.f32 0.0, %v580
      %582 = vmatmul.f32.gmra.mxu0 %v345
      %v583 = vpop.f32.mrf.mxu0
      %v584 = vadd.f32 0.0, %v583
      %585 = vmatmul.f32.gmra.mxu0 %v348
      %v586 = vpop.f32.mrf.mxu0
      %v587 = vadd.f32 0.0, %v586
      %588 = vmatmul.f32.gmra.mxu0 %v351
      %v589 = vpop.f32.mrf.mxu0
      %v590 = vadd.f32 0.0, %v589
      %591 = vmatmul.f32.gmra.mxu0 %v354
      %v592 = vpop.f32.mrf.mxu0
      %v593 = vadd.f32 0.0, %v592
      %594 = vmatmul.f32.gmra.mxu0 %v357
      %v595 = vpop.f32.mrf.mxu0
      %v596 = vadd.f32 0.0, %v595
      %597 = vdwg.mxu0
      %598 = vmatpush.msra.mxu0 0.0
      %599 = vmatpush.msra.mxu0 0.0
      %600 = vmatpush.msra.mxu0 0.0
      %601 = vmatpush.msra.mxu0 0.0
      %602 = vmatpush.msra.mxu0 0.0
      %603 = vmatpush.msra.mxu0 0.0
      %604 = vmatpush.msra.mxu0 0.0
      %605 = vmatpush.msra.mxu0 0.0
      %606 = vmatpush.msra.mxu0 %v367
      %607 = vmatpush.msra.mxu0 %v256
      %608 = vmatpush.msra.mxu0 %v252
      %609 = vmatpush.msra.mxu0 %v248
      %610 = vmatpush.msra.mxu0 %v244
      %611 = vmatpush.msra.mxu0 %v240
      %612 = vmatpush.msra.mxu0 %v236
      %613 = vmatpush.msra.mxu0 %v232
      %614 = vmatmul.f32.gmra.mxu0 %v264
      %v615 = vpop.f32.mrf.mxu0
      %v616 = vadd.f32 0.0, %v615
      %617 = vmatmul.f32.gmra.mxu0 %v267
      %v618 = vpop.f32.mrf.mxu0
      %v619 = vadd.f32 0.0, %v618
      %620 = vmatmul.f32.gmra.mxu0 %v270
      %v621 = vpop.f32.mrf.mxu0
      %v622 = vadd.f32 0.0, %v621
      %623 = vmatmul.f32.gmra.mxu0 %v273
      %v624 = vpop.f32.mrf.mxu0
      %v625 = vadd.f32 0.0, %v624
      %626 = vmatmul.f32.gmra.mxu0 %v276
      %v627 = vpop.f32.mrf.mxu0
      %v628 = vadd.f32 0.0, %v627
      %629 = vmatmul.f32.gmra.mxu0 %v279
      %v630 = vpop.f32.mrf.mxu0
      %v631 = vadd.f32 0.0, %v630
      %632 = vmatmul.f32.gmra.mxu0 %v282
      %v633 = vpop.f32.mrf.mxu0
      %v634 = vadd.f32 0.0, %v633
      %635 = vmatmul.f32.gmra.mxu0 %v285
      %v636 = vpop.f32.mrf.mxu0
      %v637 = vadd.f32 0.0, %v636
      %638 = vmatmul.f32.gmra.mxu0 %v288
      %v639 = vpop.f32.mrf.mxu0
      %v640 = vadd.f32 0.0, %v639
      %641 = vmatmul.f32.gmra.mxu0 %v291
      %v642 = vpop.f32.mrf.mxu0
      %v643 = vadd.f32 0.0, %v642
      %644 = vmatmul.f32.gmra.mxu0 %v294
      %v645 = vpop.f32.mrf.mxu0
      %v646 = vadd.f32 0.0, %v645
      %647 = vmatmul.f32.gmra.mxu0 %v297
      %v648 = vpop.f32.mrf.mxu0
      %v649 = vadd.f32 0.0, %v648
      %650 = vmatmul.f32.gmra.mxu0 %v300
      %v651 = vpop.f32.mrf.mxu0
      %v652 = vadd.f32 0.0, %v651
      %653 = vmatmul.f32.gmra.mxu0 %v303
      %v654 = vpop.f32.mrf.mxu0
      %v655 = vadd.f32 0.0, %v654
      %656 = vmatmul.f32.gmra.mxu0 %v306
      %v657 = vpop.f32.mrf.mxu0
      %v658 = vadd.f32 0.0, %v657
      %659 = vmatmul.f32.gmra.mxu0 %v309
      %v660 = vpop.f32.mrf.mxu0
      %v661 = vadd.f32 0.0, %v660
      %662 = vmatmul.f32.gmra.mxu0 %v312
      %v663 = vpop.f32.mrf.mxu0
      %v664 = vadd.f32 0.0, %v663
      %665 = vmatmul.f32.gmra.mxu0 %v315
      %v666 = vpop.f32.mrf.mxu0
      %v667 = vadd.f32 0.0, %v666
      %668 = vmatmul.f32.gmra.mxu0 %v318
      %v669 = vpop.f32.mrf.mxu0
      %v670 = vadd.f32 0.0, %v669
      %671 = vmatmul.f32.gmra.mxu0 %v321
      %v672 = vpop.f32.mrf.mxu0
      %v673 = vadd.f32 0.0, %v672
      %674 = vmatmul.f32.gmra.mxu0 %v324
      %v675 = vpop.f32.mrf.mxu0
      %v676 = vadd.f32 0.0, %v675
      %677 = vmatmul.f32.gmra.mxu0 %v327
      %v678 = vpop.f32.mrf.mxu0
      %v679 = vadd.f32 0.0, %v678
      %680 = vmatmul.f32.gmra.mxu0 %v330
      %v681 = vpop.f32.mrf.mxu0
      %v682 = vadd.f32 0.0, %v681
      %683 = vmatmul.f32.gmra.mxu0 %v333
      %v684 = vpop.f32.mrf.mxu0
      %v685 = vadd.f32 0.0, %v684
      %686 = vmatmul.f32.gmra.mxu0 %v336
      %v687 = vpop.f32.mrf.mxu0
      %v688 = vadd.f32 0.0, %v687
      %689 = vmatmul.f32.gmra.mxu0 %v339
      %v690 = vpop.f32.mrf.mxu0
      %v691 = vadd.f32 0.0, %v690
      %692 = vmatmul.f32.gmra.mxu0 %v342
      %v693 = vpop.f32.mrf.mxu0
      %v694 = vadd.f32 0.0, %v693
      %695 = vmatmul.f32.gmra.mxu0 %v345
      %v696 = vpop.f32.mrf.mxu0
      %v697 = vadd.f32 0.0, %v696
      %698 = vmatmul.f32.gmra.mxu0 %v348
      %v699 = vpop.f32.mrf.mxu0
      %v700 = vadd.f32 0.0, %v699
      %701 = vmatmul.f32.gmra.mxu0 %v351
      %v702 = vpop.f32.mrf.mxu0
      %v703 = vadd.f32 0.0, %v702
      %704 = vmatmul.f32.gmra.mxu0 %v354
      %v705 = vpop.f32.mrf.mxu0
      %v706 = vadd.f32 0.0, %v705
      %707 = vmatmul.f32.gmra.mxu0 %v357
      %v708 = vpop.f32.mrf.mxu0
      %v709 = vadd.f32 0.0, %v708
      %710 = vdwg.mxu0
      %711 = vmatpush.msra.mxu0 0.0
      %712 = vmatpush.msra.mxu0 0.0
      %713 = vmatpush.msra.mxu0 0.0
      %714 = vmatpush.msra.mxu0 0.0
      %715 = vmatpush.msra.mxu0 0.0
      %716 = vmatpush.msra.mxu0 0.0
      %717 = vmatpush.msra.mxu0 0.0
      %718 = vmatpush.msra.mxu0 0.0
      %719 = vmatpush.msra.mxu0 %v370
      %720 = vmatpush.msra.mxu0 %v257
      %721 = vmatpush.msra.mxu0 %v253
      %722 = vmatpush.msra.mxu0 %v249
      %723 = vmatpush.msra.mxu0 %v245
      %724 = vmatpush.msra.mxu0 %v241
      %725 = vmatpush.msra.mxu0 %v237
      %726 = vmatpush.msra.mxu0 %v233
      %727 = vmatmul.f32.gmra.mxu0 %v264
      %v728 = vpop.f32.mrf.mxu0
      %v729 = vadd.f32 0.0, %v728
      %730 = vmatmul.f32.gmra.mxu0 %v267
      %v731 = vpop.f32.mrf.mxu0
      %v732 = vadd.f32 0.0, %v731
      %733 = vmatmul.f32.gmra.mxu0 %v270
      %v734 = vpop.f32.mrf.mxu0
      %v735 = vadd.f32 0.0, %v734
      %736 = vmatmul.f32.gmra.mxu0 %v273
      %v737 = vpop.f32.mrf.mxu0
      %v738 = vadd.f32 0.0, %v737
      %739 = vmatmul.f32.gmra.mxu0 %v276
      %v740 = vpop.f32.mrf.mxu0
      %v741 = vadd.f32 0.0, %v740
      %742 = vmatmul.f32.gmra.mxu0 %v279
      %v743 = vpop.f32.mrf.mxu0
      %v744 = vadd.f32 0.0, %v743
      %745 = vmatmul.f32.gmra.mxu0 %v282
      %v746 = vpop.f32.mrf.mxu0
      %v747 = vadd.f32 0.0, %v746
      %748 = vmatmul.f32.gmra.mxu0 %v285
      %v749 = vpop.f32.mrf.mxu0
      %v750 = vadd.f32 0.0, %v749
      %751 = vmatmul.f32.gmra.mxu0 %v288
      %v752 = vpop.f32.mrf.mxu0
      %v753 = vadd.f32 0.0, %v752
      %754 = vmatmul.f32.gmra.mxu0 %v291
      %v755 = vpop.f32.mrf.mxu0
      %v756 = vadd.f32 0.0, %v755
      %757 = vmatmul.f32.gmra.mxu0 %v294
      %v758 = vpop.f32.mrf.mxu0
      %v759 = vadd.f32 0.0, %v758
      %760 = vmatmul.f32.gmra.mxu0 %v297
      %v761 = vpop.f32.mrf.mxu0
      %v762 = vadd.f32 0.0, %v761
      %763 = vmatmul.f32.gmra.mxu0 %v300
      %v764 = vpop.f32.mrf.mxu0
      %v765 = vadd.f32 0.0, %v764
      %766 = vmatmul.f32.gmra.mxu0 %v303
      %v767 = vpop.f32.mrf.mxu0
      %v768 = vadd.f32 0.0, %v767
      %769 = vmatmul.f32.gmra.mxu0 %v306
      %v770 = vpop.f32.mrf.mxu0
      %v771 = vadd.f32 0.0, %v770
      %772 = vmatmul.f32.gmra.mxu0 %v309
      %v773 = vpop.f32.mrf.mxu0
      %v774 = vadd.f32 0.0, %v773
      %775 = vmatmul.f32.gmra.mxu0 %v312
      %v776 = vpop.f32.mrf.mxu0
      %v777 = vadd.f32 0.0, %v776
      %778 = vmatmul.f32.gmra.mxu0 %v315
      %v779 = vpop.f32.mrf.mxu0
      %v780 = vadd.f32 0.0, %v779
      %781 = vmatmul.f32.gmra.mxu0 %v318
      %v782 = vpop.f32.mrf.mxu0
      %v783 = vadd.f32 0.0, %v782
      %784 = vmatmul.f32.gmra.mxu0 %v321
      %v785 = vpop.f32.mrf.mxu0
      %v786 = vadd.f32 0.0, %v785
      %787 = vmatmul.f32.gmra.mxu0 %v324
      %v788 = vpop.f32.mrf.mxu0
      %v789 = vadd.f32 0.0, %v788
      %790 = vmatmul.f32.gmra.mxu0 %v327
      %v791 = vpop.f32.mrf.mxu0
      %v792 = vadd.f32 0.0, %v791
      %793 = vmatmul.f32.gmra.mxu0 %v330
      %v794 = vpop.f32.mrf.mxu0
      %v795 = vadd.f32 0.0, %v794
      %796 = vmatmul.f32.gmra.mxu0 %v333
      %v797 = vpop.f32.mrf.mxu0
      %v798 = vadd.f32 0.0, %v797
      %799 = vmatmul.f32.gmra.mxu0 %v336
      %v800 = vpop.f32.mrf.mxu0
      %v801 = vadd.f32 0.0, %v800
      %802 = vmatmul.f32.gmra.mxu0 %v339
      %v803 = vpop.f32.mrf.mxu0
      %v804 = vadd.f32 0.0, %v803
      %805 = vmatmul.f32.gmra.mxu0 %v342
      %v806 = vpop.f32.mrf.mxu0
      %v807 = vadd.f32 0.0, %v806
      %808 = vmatmul.f32.gmra.mxu0 %v345
      %v809 = vpop.f32.mrf.mxu0
      %v810 = vadd.f32 0.0, %v809
      %811 = vmatmul.f32.gmra.mxu0 %v348
      %v812 = vpop.f32.mrf.mxu0
      %v813 = vadd.f32 0.0, %v812
      %814 = vmatmul.f32.gmra.mxu0 %v351
      %v815 = vpop.f32.mrf.mxu0
      %v816 = vadd.f32 0.0, %v815
      %817 = vmatmul.f32.gmra.mxu0 %v354
      %v818 = vpop.f32.mrf.mxu0
      %v819 = vadd.f32 0.0, %v818
      %820 = vmatmul.f32.gmra.mxu0 %v357
      %v821 = vpop.f32.mrf.mxu0
      %v822 = vadd.f32 0.0, %v821
      %823 = vdwg.mxu0
      %v824 = vld [vmem:[%s2] sm:$0xff]
      %v825 = vld [vmem:[%s2 + $0x8] sm:$0xff]
      %v826 = vld [vmem:[%s2 + $0x10] sm:$0xff]
      %v827 = vld [vmem:[%s2 + $0x18] sm:$0xff]
      %v828 = vld [vmem:[%s2 + $0x20] sm:$0xff]
      %v829 = vld [vmem:[%s2 + $0x28] sm:$0xff]
      %v830 = vld [vmem:[%s2 + $0x30] sm:$0xff]
      %v831 = vld [vmem:[%s2 + $0x38] sm:$0xff]
      %v832 = vld [vmem:[%s2 + $0x40] sm:$0xff]
      %v833 = vld [vmem:[%s2 + $0x48] sm:$0xff]
      %v834 = vld [vmem:[%s2 + $0x50] sm:$0xff]
      %v835 = vld [vmem:[%s2 + $0x58] sm:$0xff]
      %v836 = vld [vmem:[%s2 + $0x60] sm:$0xff]
      %v837 = vld [vmem:[%s2 + $0x68] sm:$0xff]
      %v838 = vld [vmem:[%s2 + $0x70] sm:$0xff]
      %v839 = vld [vmem:[%s2 + $0x78] sm:$0xff]
      %v840 = vld [vmem:[%s2 + $0x80] sm:$0xff]
      %v841 = vld [vmem:[%s2 + $0x88] sm:$0xff]
      %v842 = vld [vmem:[%s2 + $0x90] sm:$0xff]
      %v843 = vld [vmem:[%s2 + $0x98] sm:$0xff]
      %v844 = vld [vmem:[%s2 + $0xa0] sm:$0xff]
      %v845 = vld [vmem:[%s2 + $0xa8] sm:$0xff]
      %v846 = vld [vmem:[%s2 + $0xb0] sm:$0xff]
      %v847 = vld [vmem:[%s2 + $0xb8] sm:$0xff]
      %v848 = vld [vmem:[%s2 + $0xc0] sm:$0xff]
      %v849 = vld [vmem:[%s2 + $0xc8] sm:$0xff]
      %v850 = vld [vmem:[%s2 + $0xd0] sm:$0xff]
      %v851 = vld [vmem:[%s2 + $0xd8] sm:$0xff]
      %v852 = vld [vmem:[%s2 + $0xe0] sm:$0xff]
      %v853 = vld [vmem:[%s2 + $0xe8] sm:$0xff]
      %v854 = vld [vmem:[%s2 + $0xf0] sm:$0xff]
      %v855 = vld [vmem:[%s2 + $0xf8] sm:$0xff]
      %v856 = vld [vmem:[%s2 + $0x100] sm:$0xff]
      %v857 = vld [vmem:[%s2 + $0x108] sm:$0xff]
      %v858 = vld [vmem:[%s2 + $0x110] sm:$0xff]
      %v859 = vld [vmem:[%s2 + $0x118] sm:$0xff]
      %v860 = vld [vmem:[%s2 + $0x120] sm:$0xff]
      %v861 = vld [vmem:[%s2 + $0x128] sm:$0xff]
      %v862 = vld [vmem:[%s2 + $0x130] sm:$0xff]
      %v863 = vld [vmem:[%s2 + $0x138] sm:$0xff]
      %v864 = vld [vmem:[%s2 + $0x140] sm:$0xff]
      %v865 = vld [vmem:[%s2 + $0x148] sm:$0xff]
      %v866 = vld [vmem:[%s2 + $0x150] sm:$0xff]
      %v867 = vld [vmem:[%s2 + $0x158] sm:$0xff]
      %v868 = vld [vmem:[%s2 + $0x160] sm:$0xff]
      %v869 = vld [vmem:[%s2 + $0x168] sm:$0xff]
      %v870 = vld [vmem:[%s2 + $0x170] sm:$0xff]
      %v871 = vld [vmem:[%s2 + $0x178] sm:$0xff]
      %v872 = vld [vmem:[%s2 + $0x180] sm:$0xff]
      %v873 = vld [vmem:[%s2 + $0x188] sm:$0xff]
      %v874 = vld [vmem:[%s2 + $0x190] sm:$0xff]
      %v875 = vld [vmem:[%s2 + $0x198] sm:$0xff]
      %v876 = vld [vmem:[%s2 + $0x1a0] sm:$0xff]
      %v877 = vld [vmem:[%s2 + $0x1a8] sm:$0xff]
      %v878 = vld [vmem:[%s2 + $0x1b0] sm:$0xff]
      %v879 = vld [vmem:[%s2 + $0x1b8] sm:$0xff]
      %v880 = vld [vmem:[%s2 + $0x1c0] sm:$0xff]
      %v881 = vld [vmem:[%s2 + $0x1c8] sm:$0xff]
      %v882 = vld [vmem:[%s2 + $0x1d0] sm:$0xff]
      %v883 = vld [vmem:[%s2 + $0x1d8] sm:$0xff]
      %v884 = vld [vmem:[%s2 + $0x1e0] sm:$0xff]
      %v885 = vld [vmem:[%s2 + $0x1e8] sm:$0xff]
      %v886 = vld [vmem:[%s2 + $0x1f0] sm:$0xff]
      %v887 = vld [vmem:[%s2 + $0x1f8] sm:$0xff]
      %888 = vmatpush.msra.mxu0 %v839
      %889 = vmatpush.msra.mxu0 %v838
      %890 = vmatpush.msra.mxu0 %v837
      %891 = vmatpush.msra.mxu0 %v836
      %892 = vmatpush.msra.mxu0 %v835
      %893 = vmatpush.msra.mxu0 %v834
      %894 = vmatpush.msra.mxu0 %v833
      %895 = vmatpush.msra.mxu0 %v832
      %896 = vmatpush.msra.mxu0 %v831
      %897 = vmatpush.msra.mxu0 %v830
      %898 = vmatpush.msra.mxu0 %v829
      %899 = vmatpush.msra.mxu0 %v828
      %900 = vmatpush.msra.mxu0 %v827
      %901 = vmatpush.msra.mxu0 %v826
      %902 = vmatpush.msra.mxu0 %v825
      %903 = vmatpush.msra.mxu0 %v824
      %904 = vmatmul.f32.gmra.mxu0 %v390
      %v905 = vpop.f32.mrf.mxu0
      %v906 = vadd.f32 0.0, %v905
      %907 = vmatmul.f32.gmra.mxu0 %v393
      %v908 = vpop.f32.mrf.mxu0
      %v909 = vadd.f32 0.0, %v908
      %910 = vmatmul.f32.gmra.mxu0 %v396
      %v911 = vpop.f32.mrf.mxu0
      %v912 = vadd.f32 0.0, %v911
      %913 = vmatmul.f32.gmra.mxu0 %v399
      %v914 = vpop.f32.mrf.mxu0
      %v915 = vadd.f32 0.0, %v914
      %916 = vmatmul.f32.gmra.mxu0 %v402
      %v917 = vpop.f32.mrf.mxu0
      %v918 = vadd.f32 0.0, %v917
      %919 = vmatmul.f32.gmra.mxu0 %v405
      %v920 = vpop.f32.mrf.mxu0
      %v921 = vadd.f32 0.0, %v920
      %922 = vmatmul.f32.gmra.mxu0 %v408
      %v923 = vpop.f32.mrf.mxu0
      %v924 = vadd.f32 0.0, %v923
      %925 = vmatmul.f32.gmra.mxu0 %v411
      %v926 = vpop.f32.mrf.mxu0
      %v927 = vadd.f32 0.0, %v926
      %928 = vmatmul.f32.gmra.mxu0 %v414
      %v929 = vpop.f32.mrf.mxu0
      %v930 = vadd.f32 0.0, %v929
      %931 = vmatmul.f32.gmra.mxu0 %v417
      %v932 = vpop.f32.mrf.mxu0
      %v933 = vadd.f32 0.0, %v932
      %934 = vmatmul.f32.gmra.mxu0 %v420
      %v935 = vpop.f32.mrf.mxu0
      %v936 = vadd.f32 0.0, %v935
      %937 = vmatmul.f32.gmra.mxu0 %v423
      %v938 = vpop.f32.mrf.mxu0
      %v939 = vadd.f32 0.0, %v938
      %940 = vmatmul.f32.gmra.mxu0 %v426
      %v941 = vpop.f32.mrf.mxu0
      %v942 = vadd.f32 0.0, %v941
      %943 = vmatmul.f32.gmra.mxu0 %v429
      %v944 = vpop.f32.mrf.mxu0
      %v945 = vadd.f32 0.0, %v944
      %946 = vmatmul.f32.gmra.mxu0 %v432
      %v947 = vpop.f32.mrf.mxu0
      %v948 = vadd.f32 0.0, %v947
      %949 = vmatmul.f32.gmra.mxu0 %v435
      %v950 = vpop.f32.mrf.mxu0
      %v951 = vadd.f32 0.0, %v950
      %952 = vmatmul.f32.gmra.mxu0 %v438
      %v953 = vpop.f32.mrf.mxu0
      %v954 = vadd.f32 0.0, %v953
      %955 = vmatmul.f32.gmra.mxu0 %v441
      %v956 = vpop.f32.mrf.mxu0
      %v957 = vadd.f32 0.0, %v956
      %958 = vmatmul.f32.gmra.mxu0 %v444
      %v959 = vpop.f32.mrf.mxu0
      %v960 = vadd.f32 0.0, %v959
      %961 = vmatmul.f32.gmra.mxu0 %v447
      %v962 = vpop.f32.mrf.mxu0
      %v963 = vadd.f32 0.0, %v962
      %964 = vmatmul.f32.gmra.mxu0 %v450
      %v965 = vpop.f32.mrf.mxu0
      %v966 = vadd.f32 0.0, %v965
      %967 = vmatmul.f32.gmra.mxu0 %v453
      %v968 = vpop.f32.mrf.mxu0
      %v969 = vadd.f32 0.0, %v968
      %970 = vmatmul.f32.gmra.mxu0 %v456
      %v971 = vpop.f32.mrf.mxu0
      %v972 = vadd.f32 0.0, %v971
      %973 = vmatmul.f32.gmra.mxu0 %v459
      %v974 = vpop.f32.mrf.mxu0
      %v975 = vadd.f32 0.0, %v974
      %976 = vmatmul.f32.gmra.mxu0 %v462
      %v977 = vpop.f32.mrf.mxu0
      %v978 = vadd.f32 0.0, %v977
      %979 = vmatmul.f32.gmra.mxu0 %v465
      %v980 = vpop.f32.mrf.mxu0
      %v981 = vadd.f32 0.0, %v980
      %982 = vmatmul.f32.gmra.mxu0 %v468
      %v983 = vpop.f32.mrf.mxu0
      %v984 = vadd.f32 0.0, %v983
      %985 = vmatmul.f32.gmra.mxu0 %v471
      %v986 = vpop.f32.mrf.mxu0
      %v987 = vadd.f32 0.0, %v986
      %988 = vmatmul.f32.gmra.mxu0 %v474
      %v989 = vpop.f32.mrf.mxu0
      %v990 = vadd.f32 0.0, %v989
      %991 = vmatmul.f32.gmra.mxu0 %v477
      %v992 = vpop.f32.mrf.mxu0
      %v993 = vadd.f32 0.0, %v992
      %994 = vmatmul.f32.gmra.mxu0 %v480
      %v995 = vpop.f32.mrf.mxu0
      %v996 = vadd.f32 0.0, %v995
      %997 = vmatmul.f32.gmra.mxu0 %v483
      %v998 = vpop.f32.mrf.mxu0
      %v999 = vadd.f32 0.0, %v998
      %1000 = vdwg.mxu0
      %1001 = vmatpush.msra.mxu0 %v855
      %1002 = vmatpush.msra.mxu0 %v854
      %1003 = vmatpush.msra.mxu0 %v853
      %1004 = vmatpush.msra.mxu0 %v852
      %1005 = vmatpush.msra.mxu0 %v851
      %1006 = vmatpush.msra.mxu0 %v850
      %1007 = vmatpush.msra.mxu0 %v849
      %1008 = vmatpush.msra.mxu0 %v848
      %1009 = vmatpush.msra.mxu0 %v847
      %1010 = vmatpush.msra.mxu0 %v846
      %1011 = vmatpush.msra.mxu0 %v845
      %1012 = vmatpush.msra.mxu0 %v844
      %1013 = vmatpush.msra.mxu0 %v843
      %1014 = vmatpush.msra.mxu0 %v842
      %1015 = vmatpush.msra.mxu0 %v841
      %1016 = vmatpush.msra.mxu0 %v840
      %1017 = vmatmul.f32.gmra.mxu0 %v503
      %v1018 = vpop.f32.mrf.mxu0
      %v1019 = vadd.f32 %v906, %v1018
      %1020 = vmatmul.f32.gmra.mxu0 %v506
      %v1021 = vpop.f32.mrf.mxu0
      %v1022 = vadd.f32 %v909, %v1021
      %1023 = vmatmul.f32.gmra.mxu0 %v509
      %v1024 = vpop.f32.mrf.mxu0
      %v1025 = vadd.f32 %v912, %v1024
      %1026 = vmatmul.f32.gmra.mxu0 %v512
      %v1027 = vpop.f32.mrf.mxu0
      %v1028 = vadd.f32 %v915, %v1027
      %1029 = vmatmul.f32.gmra.mxu0 %v515
      %v1030 = vpop.f32.mrf.mxu0
      %v1031 = vadd.f32 %v918, %v1030
      %1032 = vmatmul.f32.gmra.mxu0 %v518
      %v1033 = vpop.f32.mrf.mxu0
      %v1034 = vadd.f32 %v921, %v1033
      %1035 = vmatmul.f32.gmra.mxu0 %v521
      %v1036 = vpop.f32.mrf.mxu0
      %v1037 = vadd.f32 %v924, %v1036
      %1038 = vmatmul.f32.gmra.mxu0 %v524
      %v1039 = vpop.f32.mrf.mxu0
      %v1040 = vadd.f32 %v927, %v1039
      %1041 = vmatmul.f32.gmra.mxu0 %v527
      %v1042 = vpop.f32.mrf.mxu0
      %v1043 = vadd.f32 %v930, %v1042
      %1044 = vmatmul.f32.gmra.mxu0 %v530
      %v1045 = vpop.f32.mrf.mxu0
      %v1046 = vadd.f32 %v933, %v1045
      %1047 = vmatmul.f32.gmra.mxu0 %v533
      %v1048 = vpop.f32.mrf.mxu0
      %v1049 = vadd.f32 %v936, %v1048
      %1050 = vmatmul.f32.gmra.mxu0 %v536
      %v1051 = vpop.f32.mrf.mxu0
      %v1052 = vadd.f32 %v939, %v1051
      %1053 = vmatmul.f32.gmra.mxu0 %v539
      %v1054 = vpop.f32.mrf.mxu0
      %v1055 = vadd.f32 %v942, %v1054
      %1056 = vmatmul.f32.gmra.mxu0 %v542
      %v1057 = vpop.f32.mrf.mxu0
      %v1058 = vadd.f32 %v945, %v1057
      %1059 = vmatmul.f32.gmra.mxu0 %v545
      %v1060 = vpop.f32.mrf.mxu0
      %v1061 = vadd.f32 %v948, %v1060
      %1062 = vmatmul.f32.gmra.mxu0 %v548
      %v1063 = vpop.f32.mrf.mxu0
      %v1064 = vadd.f32 %v951, %v1063
      %1065 = vmatmul.f32.gmra.mxu0 %v551
      %v1066 = vpop.f32.mrf.mxu0
      %v1067 = vadd.f32 %v954, %v1066
      %1068 = vmatmul.f32.gmra.mxu0 %v554
      %v1069 = vpop.f32.mrf.mxu0
      %v1070 = vadd.f32 %v957, %v1069
      %1071 = vmatmul.f32.gmra.mxu0 %v557
      %v1072 = vpop.f32.mrf.mxu0
      %v1073 = vadd.f32 %v960, %v1072
      %1074 = vmatmul.f32.gmra.mxu0 %v560
      %v1075 = vpop.f32.mrf.mxu0
      %v1076 = vadd.f32 %v963, %v1075
      %1077 = vmatmul.f32.gmra.mxu0 %v563
      %v1078 = vpop.f32.mrf.mxu0
      %v1079 = vadd.f32 %v966, %v1078
      %1080 = vmatmul.f32.gmra.mxu0 %v566
      %v1081 = vpop.f32.mrf.mxu0
      %v1082 = vadd.f32 %v969, %v1081
      %1083 = vmatmul.f32.gmra.mxu0 %v569
      %v1084 = vpop.f32.mrf.mxu0
      %v1085 = vadd.f32 %v972, %v1084
      %1086 = vmatmul.f32.gmra.mxu0 %v572
      %v1087 = vpop.f32.mrf.mxu0
      %v1088 = vadd.f32 %v975, %v1087
      %1089 = vmatmul.f32.gmra.mxu0 %v575
      %v1090 = vpop.f32.mrf.mxu0
      %v1091 = vadd.f32 %v978, %v1090
      %1092 = vmatmul.f32.gmra.mxu0 %v578
      %v1093 = vpop.f32.mrf.mxu0
      %v1094 = vadd.f32 %v981, %v1093
      %1095 = vmatmul.f32.gmra.mxu0 %v581
      %v1096 = vpop.f32.mrf.mxu0
      %v1097 = vadd.f32 %v984, %v1096
      %1098 = vmatmul.f32.gmra.mxu0 %v584
      %v1099 = vpop.f32.mrf.mxu0
      %v1100 = vadd.f32 %v987, %v1099
      %1101 = vmatmul.f32.gmra.mxu0 %v587
      %v1102 = vpop.f32.mrf.mxu0
      %v1103 = vadd.f32 %v990, %v1102
      %1104 = vmatmul.f32.gmra.mxu0 %v590
      %v1105 = vpop.f32.mrf.mxu0
      %v1106 = vadd.f32 %v993, %v1105
      %1107 = vmatmul.f32.gmra.mxu0 %v593
      %v1108 = vpop.f32.mrf.mxu0
      %v1109 = vadd.f32 %v996, %v1108
      %1110 = vmatmul.f32.gmra.mxu0 %v596
      %v1111 = vpop.f32.mrf.mxu0
      %v1112 = vadd.f32 %v999, %v1111
      %1113 = vdwg.mxu0
      %1114 = vmatpush.msra.mxu0 %v871
      %1115 = vmatpush.msra.mxu0 %v870
      %1116 = vmatpush.msra.mxu0 %v869
      %1117 = vmatpush.msra.mxu0 %v868
      %1118 = vmatpush.msra.mxu0 %v867
      %1119 = vmatpush.msra.mxu0 %v866
      %1120 = vmatpush.msra.mxu0 %v865
      %1121 = vmatpush.msra.mxu0 %v864
      %1122 = vmatpush.msra.mxu0 %v863
      %1123 = vmatpush.msra.mxu0 %v862
      %1124 = vmatpush.msra.mxu0 %v861
      %1125 = vmatpush.msra.mxu0 %v860
      %1126 = vmatpush.msra.mxu0 %v859
      %1127 = vmatpush.msra.mxu0 %v858
      %1128 = vmatpush.msra.mxu0 %v857
      %1129 = vmatpush.msra.mxu0 %v856
      %1130 = vmatmul.f32.gmra.mxu0 %v616
      %v1131 = vpop.f32.mrf.mxu0
      %v1132 = vadd.f32 %v1019, %v1131
      %1133 = vmatmul.f32.gmra.mxu0 %v619
      %v1134 = vpop.f32.mrf.mxu0
      %v1135 = vadd.f32 %v1022, %v1134
      %1136 = vmatmul.f32.gmra.mxu0 %v622
      %v1137 = vpop.f32.mrf.mxu0
      %v1138 = vadd.f32 %v1025, %v1137
      %1139 = vmatmul.f32.gmra.mxu0 %v625
      %v1140 = vpop.f32.mrf.mxu0
      %v1141 = vadd.f32 %v1028, %v1140
      %1142 = vmatmul.f32.gmra.mxu0 %v628
      %v1143 = vpop.f32.mrf.mxu0
      %v1144 = vadd.f32 %v1031, %v1143
      %1145 = vmatmul.f32.gmra.mxu0 %v631
      %v1146 = vpop.f32.mrf.mxu0
      %v1147 = vadd.f32 %v1034, %v1146
      %1148 = vmatmul.f32.gmra.mxu0 %v634
      %v1149 = vpop.f32.mrf.mxu0
      %v1150 = vadd.f32 %v1037, %v1149
      %1151 = vmatmul.f32.gmra.mxu0 %v637
      %v1152 = vpop.f32.mrf.mxu0
      %v1153 = vadd.f32 %v1040, %v1152
      %1154 = vmatmul.f32.gmra.mxu0 %v640
      %v1155 = vpop.f32.mrf.mxu0
      %v1156 = vadd.f32 %v1043, %v1155
      %1157 = vmatmul.f32.gmra.mxu0 %v643
      %v1158 = vpop.f32.mrf.mxu0
      %v1159 = vadd.f32 %v1046, %v1158
      %1160 = vmatmul.f32.gmra.mxu0 %v646
      %v1161 = vpop.f32.mrf.mxu0
      %v1162 = vadd.f32 %v1049, %v1161
      %1163 = vmatmul.f32.gmra.mxu0 %v649
      %v1164 = vpop.f32.mrf.mxu0
      %v1165 = vadd.f32 %v1052, %v1164
      %1166 = vmatmul.f32.gmra.mxu0 %v652
      %v1167 = vpop.f32.mrf.mxu0
      %v1168 = vadd.f32 %v1055, %v1167
      %1169 = vmatmul.f32.gmra.mxu0 %v655
      %v1170 = vpop.f32.mrf.mxu0
      %v1171 = vadd.f32 %v1058, %v1170
      %1172 = vmatmul.f32.gmra.mxu0 %v658
      %v1173 = vpop.f32.mrf.mxu0
      %v1174 = vadd.f32 %v1061, %v1173
      %1175 = vmatmul.f32.gmra.mxu0 %v661
      %v1176 = vpop.f32.mrf.mxu0
      %v1177 = vadd.f32 %v1064, %v1176
      %1178 = vmatmul.f32.gmra.mxu0 %v664
      %v1179 = vpop.f32.mrf.mxu0
      %v1180 = vadd.f32 %v1067, %v1179
      %1181 = vmatmul.f32.gmra.mxu0 %v667
      %v1182 = vpop.f32.mrf.mxu0
      %v1183 = vadd.f32 %v1070, %v1182
      %1184 = vmatmul.f32.gmra.mxu0 %v670
      %v1185 = vpop.f32.mrf.mxu0
      %v1186 = vadd.f32 %v1073, %v1185
      %1187 = vmatmul.f32.gmra.mxu0 %v673
      %v1188 = vpop.f32.mrf.mxu0
      %v1189 = vadd.f32 %v1076, %v1188
      %1190 = vmatmul.f32.gmra.mxu0 %v676
      %v1191 = vpop.f32.mrf.mxu0
      %v1192 = vadd.f32 %v1079, %v1191
      %1193 = vmatmul.f32.gmra.mxu0 %v679
      %v1194 = vpop.f32.mrf.mxu0
      %v1195 = vadd.f32 %v1082, %v1194
      %1196 = vmatmul.f32.gmra.mxu0 %v682
      %v1197 = vpop.f32.mrf.mxu0
      %v1198 = vadd.f32 %v1085, %v1197
      %1199 = vmatmul.f32.gmra.mxu0 %v685
      %v1200 = vpop.f32.mrf.mxu0
      %v1201 = vadd.f32 %v1088, %v1200
      %1202 = vmatmul.f32.gmra.mxu0 %v688
      %v1203 = vpop.f32.mrf.mxu0
      %v1204 = vadd.f32 %v1091, %v1203
      %1205 = vmatmul.f32.gmra.mxu0 %v691
      %v1206 = vpop.f32.mrf.mxu0
      %v1207 = vadd.f32 %v1094, %v1206
      %1208 = vmatmul.f32.gmra.mxu0 %v694
      %v1209 = vpop.f32.mrf.mxu0
      %v1210 = vadd.f32 %v1097, %v1209
      %1211 = vmatmul.f32.gmra.mxu0 %v697
      %v1212 = vpop.f32.mrf.mxu0
      %v1213 = vadd.f32 %v1100, %v1212
      %1214 = vmatmul.f32.gmra.mxu0 %v700
      %v1215 = vpop.f32.mrf.mxu0
      %v1216 = vadd.f32 %v1103, %v1215
      %1217 = vmatmul.f32.gmra.mxu0 %v703
      %v1218 = vpop.f32.mrf.mxu0
      %v1219 = vadd.f32 %v1106, %v1218
      %1220 = vmatmul.f32.gmra.mxu0 %v706
      %v1221 = vpop.f32.mrf.mxu0
      %v1222 = vadd.f32 %v1109, %v1221
      %1223 = vmatmul.f32.gmra.mxu0 %v709
      %v1224 = vpop.f32.mrf.mxu0
      %v1225 = vadd.f32 %v1112, %v1224
      %1226 = vdwg.mxu0
      %1227 = vmatpush.msra.mxu0 %v887
      %1228 = vmatpush.msra.mxu0 %v886
      %1229 = vmatpush.msra.mxu0 %v885
      %1230 = vmatpush.msra.mxu0 %v884
      %1231 = vmatpush.msra.mxu0 %v883
      %1232 = vmatpush.msra.mxu0 %v882
      %1233 = vmatpush.msra.mxu0 %v881
      %1234 = vmatpush.msra.mxu0 %v880
      %1235 = vmatpush.msra.mxu0 %v879
      %1236 = vmatpush.msra.mxu0 %v878
      %1237 = vmatpush.msra.mxu0 %v877
      %1238 = vmatpush.msra.mxu0 %v876
      %1239 = vmatpush.msra.mxu0 %v875
      %1240 = vmatpush.msra.mxu0 %v874
      %1241 = vmatpush.msra.mxu0 %v873
      %1242 = vmatpush.msra.mxu0 %v872
      %1243 = vmatmul.f32.gmra.mxu0 %v729
      %v1244 = vpop.f32.mrf.mxu0
      %v1245 = vadd.f32 %v1132, %v1244
      %1246 = vmatmul.f32.gmra.mxu0 %v732
      %v1247 = vpop.f32.mrf.mxu0
      %v1248 = vadd.f32 %v1135, %v1247
      %1249 = vmatmul.f32.gmra.mxu0 %v735
      %v1250 = vpop.f32.mrf.mxu0
      %v1251 = vadd.f32 %v1138, %v1250
      %1252 = vmatmul.f32.gmra.mxu0 %v738
      %v1253 = vpop.f32.mrf.mxu0
      %v1254 = vadd.f32 %v1141, %v1253
      %1255 = vmatmul.f32.gmra.mxu0 %v741
      %v1256 = vpop.f32.mrf.mxu0
      %v1257 = vadd.f32 %v1144, %v1256
      %1258 = vmatmul.f32.gmra.mxu0 %v744
      %v1259 = vpop.f32.mrf.mxu0
      %v1260 = vadd.f32 %v1147, %v1259
      %1261 = vmatmul.f32.gmra.mxu0 %v747
      %v1262 = vpop.f32.mrf.mxu0
      %v1263 = vadd.f32 %v1150, %v1262
      %1264 = vmatmul.f32.gmra.mxu0 %v750
      %v1265 = vpop.f32.mrf.mxu0
      %v1266 = vadd.f32 %v1153, %v1265
      %1267 = vmatmul.f32.gmra.mxu0 %v753
      %v1268 = vpop.f32.mrf.mxu0
      %v1269 = vadd.f32 %v1156, %v1268
      %1270 = vmatmul.f32.gmra.mxu0 %v756
      %v1271 = vpop.f32.mrf.mxu0
      %v1272 = vadd.f32 %v1159, %v1271
      %1273 = vmatmul.f32.gmra.mxu0 %v759
      %v1274 = vpop.f32.mrf.mxu0
      %v1275 = vadd.f32 %v1162, %v1274
      %1276 = vmatmul.f32.gmra.mxu0 %v762
      %v1277 = vpop.f32.mrf.mxu0
      %v1278 = vadd.f32 %v1165, %v1277
      %1279 = vmatmul.f32.gmra.mxu0 %v765
      %v1280 = vpop.f32.mrf.mxu0
      %v1281 = vadd.f32 %v1168, %v1280
      %1282 = vmatmul.f32.gmra.mxu0 %v768
      %v1283 = vpop.f32.mrf.mxu0
      %v1284 = vadd.f32 %v1171, %v1283
      %1285 = vmatmul.f32.gmra.mxu0 %v771
      %v1286 = vpop.f32.mrf.mxu0
      %v1287 = vadd.f32 %v1174, %v1286
      %1288 = vmatmul.f32.gmra.mxu0 %v774
      %v1289 = vpop.f32.mrf.mxu0
      %v1290 = vadd.f32 %v1177, %v1289
      %1291 = vmatmul.f32.gmra.mxu0 %v777
      %v1292 = vpop.f32.mrf.mxu0
      %v1293 = vadd.f32 %v1180, %v1292
      %1294 = vmatmul.f32.gmra.mxu0 %v780
      %v1295 = vpop.f32.mrf.mxu0
      %v1296 = vadd.f32 %v1183, %v1295
      %1297 = vmatmul.f32.gmra.mxu0 %v783
      %v1298 = vpop.f32.mrf.mxu0
      %v1299 = vadd.f32 %v1186, %v1298
      %1300 = vmatmul.f32.gmra.mxu0 %v786
      %v1301 = vpop.f32.mrf.mxu0
      %v1302 = vadd.f32 %v1189, %v1301
      %1303 = vmatmul.f32.gmra.mxu0 %v789
      %v1304 = vpop.f32.mrf.mxu0
      %v1305 = vadd.f32 %v1192, %v1304
      %1306 = vmatmul.f32.gmra.mxu0 %v792
      %v1307 = vpop.f32.mrf.mxu0
      %v1308 = vadd.f32 %v1195, %v1307
      %1309 = vmatmul.f32.gmra.mxu0 %v795
      %v1310 = vpop.f32.mrf.mxu0
      %v1311 = vadd.f32 %v1198, %v1310
      %1312 = vmatmul.f32.gmra.mxu0 %v798
      %v1313 = vpop.f32.mrf.mxu0
      %v1314 = vadd.f32 %v1201, %v1313
      %1315 = vmatmul.f32.gmra.mxu0 %v801
      %v1316 = vpop.f32.mrf.mxu0
      %v1317 = vadd.f32 %v1204, %v1316
      %1318 = vmatmul.f32.gmra.mxu0 %v804
      %v1319 = vpop.f32.mrf.mxu0
      %v1320 = vadd.f32 %v1207, %v1319
      %1321 = vmatmul.f32.gmra.mxu0 %v807
      %v1322 = vpop.f32.mrf.mxu0
      %v1323 = vadd.f32 %v1210, %v1322
      %1324 = vmatmul.f32.gmra.mxu0 %v810
      %v1325 = vpop.f32.mrf.mxu0
      %v1326 = vadd.f32 %v1213, %v1325
      %1327 = vmatmul.f32.gmra.mxu0 %v813
      %v1328 = vpop.f32.mrf.mxu0
      %v1329 = vadd.f32 %v1216, %v1328
      %1330 = vmatmul.f32.gmra.mxu0 %v816
      %v1331 = vpop.f32.mrf.mxu0
      %v1332 = vadd.f32 %v1219, %v1331
      %1333 = vmatmul.f32.gmra.mxu0 %v819
      %v1334 = vpop.f32.mrf.mxu0
      %v1335 = vadd.f32 %v1222, %v1334
      %1336 = vmatmul.f32.gmra.mxu0 %v822
      %v1337 = vpop.f32.mrf.mxu0
      %v1338 = vadd.f32 %v1225, %v1337
      %1339 = vdwg.mxu0
      %v1340 = vld [vmem:[%s3] sm:$0x1]
      %v1342 = vperm.slane %v1340, 0
      %vm1376 = vcmask 1042432
      %v1377 = vrot.slane %v1245, 5
      %v1378 = vrot.slane %v1248, 5
      %v1379 = vsel %vm1376, %v1377, %v1378
      %v1380 = vrot.slane %v1251, 5
      %v1381 = vrot.slane %v1254, 5
      %v1382 = vsel %vm1376, %v1380, %v1381
      %v1383 = vrot.slane %v1257, 5
      %v1384 = vrot.slane %v1260, 5
      %v1385 = vsel %vm1376, %v1383, %v1384
      %v1386 = vrot.slane %v1263, 5
      %v1387 = vrot.slane %v1266, 5
      %v1388 = vsel %vm1376, %v1386, %v1387
      %v1389 = vrot.slane %v1269, 5
      %v1390 = vrot.slane %v1272, 5
      %v1391 = vsel %vm1376, %v1389, %v1390
      %v1392 = vrot.slane %v1275, 5
      %v1393 = vrot.slane %v1278, 5
      %v1394 = vsel %vm1376, %v1392, %v1393
      %v1395 = vrot.slane %v1281, 5
      %v1396 = vrot.slane %v1284, 5
      %v1397 = vsel %vm1376, %v1395, %v1396
      %v1398 = vrot.slane %v1287, 5
      %v1399 = vrot.slane %v1290, 5
      %v1400 = vsel %vm1376, %v1398, %v1399
      %v1401 = vrot.slane %v1293, 5
      %v1402 = vrot.slane %v1296, 5
      %v1403 = vsel %vm1376, %v1401, %v1402
      %v1404 = vrot.slane %v1299, 5
      %v1405 = vrot.slane %v1302, 5
      %v1406 = vsel %vm1376, %v1404, %v1405
      %v1407 = vrot.slane %v1305, 5
      %v1408 = vrot.slane %v1308, 5
      %v1409 = vsel %vm1376, %v1407, %v1408
      %v1410 = vrot.slane %v1311, 5
      %v1411 = vrot.slane %v1314, 5
      %v1412 = vsel %vm1376, %v1410, %v1411
      %v1413 = vrot.slane %v1317, 5
      %v1414 = vrot.slane %v1320, 5
      %v1415 = vsel %vm1376, %v1413, %v1414
      %v1416 = vrot.slane %v1323, 5
      %v1417 = vrot.slane %v1326, 5
      %v1418 = vsel %vm1376, %v1416, %v1417
      %v1419 = vrot.slane %v1329, 5
      %v1420 = vrot.slane %v1332, 5
      %v1421 = vsel %vm1376, %v1419, %v1420
      %v1422 = vrot.slane %v1335, 5
      %v1423 = vrot.slane %v1338, 5
      %v1424 = vsel %vm1376, %v1422, %v1423
      %v1457 = vsel %vm1376, 0.0, %v1377
      %v1458 = vsel %vm1376, 0.0, %v1380
      %v1459 = vsel %vm1376, 0.0, %v1383
      %v1460 = vsel %vm1376, 0.0, %v1386
      %v1461 = vsel %vm1376, 0.0, %v1389
      %v1462 = vsel %vm1376, 0.0, %v1392
      %v1463 = vsel %vm1376, 0.0, %v1395
      %v1464 = vsel %vm1376, 0.0, %v1398
      %v1465 = vsel %vm1376, 0.0, %v1401
      %v1466 = vsel %vm1376, 0.0, %v1404
      %v1467 = vsel %vm1376, 0.0, %v1407
      %v1468 = vsel %vm1376, 0.0, %v1410
      %v1469 = vsel %vm1376, 0.0, %v1413
      %v1470 = vsel %vm1376, 0.0, %v1416
      %v1471 = vsel %vm1376, 0.0, %v1419
      %v1472 = vsel %vm1376, 0.0, %v1422
      %v1473 = vadd.f32 %v1342, %v1457
      %v1474 = vadd.f32 %v1342, %v1379
      %v1475 = vadd.f32 %v1342, %v1458
      %v1476 = vadd.f32 %v1342, %v1382
      %v1477 = vadd.f32 %v1342, %v1459
      %v1478 = vadd.f32 %v1342, %v1385
      %v1479 = vadd.f32 %v1342, %v1460
      %v1480 = vadd.f32 %v1342, %v1388
      %v1481 = vadd.f32 %v1342, %v1461
      %v1482 = vadd.f32 %v1342, %v1391
      %v1483 = vadd.f32 %v1342, %v1462
      %v1484 = vadd.f32 %v1342, %v1394
      %v1485 = vadd.f32 %v1342, %v1463
      %v1486 = vadd.f32 %v1342, %v1397
      %v1487 = vadd.f32 %v1342, %v1464
      %v1488 = vadd.f32 %v1342, %v1400
      %v1489 = vadd.f32 %v1342, %v1465
      %v1490 = vadd.f32 %v1342, %v1403
      %v1491 = vadd.f32 %v1342, %v1466
      %v1492 = vadd.f32 %v1342, %v1406
      %v1493 = vadd.f32 %v1342, %v1467
      %v1494 = vadd.f32 %v1342, %v1409
      %v1495 = vadd.f32 %v1342, %v1468
      %v1496 = vadd.f32 %v1342, %v1412
      %v1497 = vadd.f32 %v1342, %v1469
      %v1498 = vadd.f32 %v1342, %v1415
      %v1499 = vadd.f32 %v1342, %v1470
      %v1500 = vadd.f32 %v1342, %v1418
      %v1501 = vadd.f32 %v1342, %v1471
      %v1502 = vadd.f32 %v1342, %v1421
      %v1503 = vadd.f32 %v1342, %v1472
      %v1504 = vadd.f32 %v1342, %v1424
      %vm1505 = vcmask 1041408
      %v1506 = vrot.slane %v1245, 6
      %v1507 = vrot.slane %v1248, 6
      %v1508 = vsel %vm1505, %v1506, %v1507
      %v1509 = vrot.slane %v1251, 6
      %v1510 = vrot.slane %v1254, 6
      %v1511 = vsel %vm1505, %v1509, %v1510
      %v1512 = vrot.slane %v1257, 6
      %v1513 = vrot.slane %v1260, 6
      %v1514 = vsel %vm1505, %v1512, %v1513
      %v1515 = vrot.slane %v1263, 6
      %v1516 = vrot.slane %v1266, 6
      %v1517 = vsel %vm1505, %v1515, %v1516
      %v1518 = vrot.slane %v1269, 6
      %v1519 = vrot.slane %v1272, 6
      %v1520 = vsel %vm1505, %v1518, %v1519
      %v1521 = vrot.slane %v1275, 6
      %v1522 = vrot.slane %v1278, 6
      %v1523 = vsel %vm1505, %v1521, %v1522
      %v1524 = vrot.slane %v1281, 6
      %v1525 = vrot.slane %v1284, 6
      %v1526 = vsel %vm1505, %v1524, %v1525
      %v1527 = vrot.slane %v1287, 6
      %v1528 = vrot.slane %v1290, 6
      %v1529 = vsel %vm1505, %v1527, %v1528
      %v1530 = vrot.slane %v1293, 6
      %v1531 = vrot.slane %v1296, 6
      %v1532 = vsel %vm1505, %v1530, %v1531
      %v1533 = vrot.slane %v1299, 6
      %v1534 = vrot.slane %v1302, 6
      %v1535 = vsel %vm1505, %v1533, %v1534
      %v1536 = vrot.slane %v1305, 6
      %v1537 = vrot.slane %v1308, 6
      %v1538 = vsel %vm1505, %v1536, %v1537
      %v1539 = vrot.slane %v1311, 6
      %v1540 = vrot.slane %v1314, 6
      %v1541 = vsel %vm1505, %v1539, %v1540
      %v1542 = vrot.slane %v1317, 6
      %v1543 = vrot.slane %v1320, 6
      %v1544 = vsel %vm1505, %v1542, %v1543
      %v1545 = vrot.slane %v1323, 6
      %v1546 = vrot.slane %v1326, 6
      %v1547 = vsel %vm1505, %v1545, %v1546
      %v1548 = vrot.slane %v1329, 6
      %v1549 = vrot.slane %v1332, 6
      %v1550 = vsel %vm1505, %v1548, %v1549
      %v1551 = vrot.slane %v1335, 6
      %v1552 = vrot.slane %v1338, 6
      %v1553 = vsel %vm1505, %v1551, %v1552
      %1554 = vrot.lane.b32.xlu0 %v1506, 120
      %v1555 = vpop.permute.xlu0 %1554
      %1556 = vrot.lane.b32.xlu0 %v1508, 120
      %v1557 = vpop.permute.xlu0 %1556
      %1558 = vrot.lane.b32.xlu0 %v1509, 120
      %v1559 = vpop.permute.xlu0 %1558
      %1560 = vrot.lane.b32.xlu0 %v1511, 120
      %v1561 = vpop.permute.xlu0 %1560
      %1562 = vrot.lane.b32.xlu0 %v1512, 120
      %v1563 = vpop.permute.xlu0 %1562
      %1564 = vrot.lane.b32.xlu0 %v1514, 120
      %v1565 = vpop.permute.xlu0 %1564
      %1566 = vrot.lane.b32.xlu0 %v1515, 120
      %v1567 = vpop.permute.xlu0 %1566
      %1568 = vrot.lane.b32.xlu0 %v1517, 120
      %v1569 = vpop.permute.xlu0 %1568
      %1570 = vrot.lane.b32.xlu0 %v1518, 120
      %v1571 = vpop.permute.xlu0 %1570
      %1572 = vrot.lane.b32.xlu0 %v1520, 120
      %v1573 = vpop.permute.xlu0 %1572
      %1574 = vrot.lane.b32.xlu0 %v1521, 120
      %v1575 = vpop.permute.xlu0 %1574
      %1576 = vrot.lane.b32.xlu0 %v1523, 120
      %v1577 = vpop.permute.xlu0 %1576
      %1578 = vrot.lane.b32.xlu0 %v1524, 120
      %v1579 = vpop.permute.xlu0 %1578
      %1580 = vrot.lane.b32.xlu0 %v1526, 120
      %v1581 = vpop.permute.xlu0 %1580
      %1582 = vrot.lane.b32.xlu0 %v1527, 120
      %v1583 = vpop.permute.xlu0 %1582
      %1584 = vrot.lane.b32.xlu0 %v1529, 120
      %v1585 = vpop.permute.xlu0 %1584
      %1586 = vrot.lane.b32.xlu0 %v1530, 120
      %v1587 = vpop.permute.xlu0 %1586
      %1588 = vrot.lane.b32.xlu0 %v1532, 120
      %v1589 = vpop.permute.xlu0 %1588
      %1590 = vrot.lane.b32.xlu0 %v1533, 120
      %v1591 = vpop.permute.xlu0 %1590
      %1592 = vrot.lane.b32.xlu0 %v1535, 120
      %v1593 = vpop.permute.xlu0 %1592
      %1594 = vrot.lane.b32.xlu0 %v1536, 120
      %v1595 = vpop.permute.xlu0 %1594
      %1596 = vrot.lane.b32.xlu0 %v1538, 120
      %v1597 = vpop.permute.xlu0 %1596
      %1598 = vrot.lane.b32.xlu0 %v1539, 120
      %v1599 = vpop.permute.xlu0 %1598
      %1600 = vrot.lane.b32.xlu0 %v1541, 120
      %v1601 = vpop.permute.xlu0 %1600
      %1602 = vrot.lane.b32.xlu0 %v1542, 120
      %v1603 = vpop.permute.xlu0 %1602
      %1604 = vrot.lane.b32.xlu0 %v1544, 120
      %v1605 = vpop.permute.xlu0 %1604
      %1606 = vrot.lane.b32.xlu0 %v1545, 120
      %v1607 = vpop.permute.xlu0 %1606
      %1608 = vrot.lane.b32.xlu0 %v1547, 120
      %v1609 = vpop.permute.xlu0 %1608
      %1610 = vrot.lane.b32.xlu0 %v1548, 120
      %v1611 = vpop.permute.xlu0 %1610
      %1612 = vrot.lane.b32.xlu0 %v1550, 120
      %v1613 = vpop.permute.xlu0 %1612
      %1614 = vrot.lane.b32.xlu0 %v1551, 120
      %v1615 = vpop.permute.xlu0 %1614
      %1616 = vrot.lane.b32.xlu0 %v1553, 120
      %v1617 = vpop.permute.xlu0 %1616
      %v1650 = vsel %vm1505, 0.0, %v1555
      %v1651 = vsel %vm1505, 0.0, %v1559
      %v1652 = vsel %vm1505, 0.0, %v1563
      %v1653 = vsel %vm1505, 0.0, %v1567
      %v1654 = vsel %vm1505, 0.0, %v1571
      %v1655 = vsel %vm1505, 0.0, %v1575
      %v1656 = vsel %vm1505, 0.0, %v1579
      %v1657 = vsel %vm1505, 0.0, %v1583
      %v1658 = vsel %vm1505, 0.0, %v1587
      %v1659 = vsel %vm1505, 0.0, %v1591
      %v1660 = vsel %vm1505, 0.0, %v1595
      %v1661 = vsel %vm1505, 0.0, %v1599
      %v1662 = vsel %vm1505, 0.0, %v1603
      %v1663 = vsel %vm1505, 0.0, %v1607
      %v1664 = vsel %vm1505, 0.0, %v1611
      %v1665 = vsel %vm1505, 0.0, %v1615
      %v1666 = vadd.f32 %v1473, %v1650
      %v1667 = vadd.f32 %v1474, %v1557
      %v1668 = vadd.f32 %v1475, %v1651
      %v1669 = vadd.f32 %v1476, %v1561
      %v1670 = vadd.f32 %v1477, %v1652
      %v1671 = vadd.f32 %v1478, %v1565
      %v1672 = vadd.f32 %v1479, %v1653
      %v1673 = vadd.f32 %v1480, %v1569
      %v1674 = vadd.f32 %v1481, %v1654
      %v1675 = vadd.f32 %v1482, %v1573
      %v1676 = vadd.f32 %v1483, %v1655
      %v1677 = vadd.f32 %v1484, %v1577
      %v1678 = vadd.f32 %v1485, %v1656
      %v1679 = vadd.f32 %v1486, %v1581
      %v1680 = vadd.f32 %v1487, %v1657
      %v1681 = vadd.f32 %v1488, %v1585
      %v1682 = vadd.f32 %v1489, %v1658
      %v1683 = vadd.f32 %v1490, %v1589
      %v1684 = vadd.f32 %v1491, %v1659
      %v1685 = vadd.f32 %v1492, %v1593
      %v1686 = vadd.f32 %v1493, %v1660
      %v1687 = vadd.f32 %v1494, %v1597
      %v1688 = vadd.f32 %v1495, %v1661
      %v1689 = vadd.f32 %v1496, %v1601
      %v1690 = vadd.f32 %v1497, %v1662
      %v1691 = vadd.f32 %v1498, %v1605
      %v1692 = vadd.f32 %v1499, %v1663
      %v1693 = vadd.f32 %v1500, %v1609
      %v1694 = vadd.f32 %v1501, %v1664
      %v1695 = vadd.f32 %v1502, %v1613
      %v1696 = vadd.f32 %v1503, %v1665
      %v1697 = vadd.f32 %v1504, %v1617
      %v1698 = vrot.slane %v1245, 7
      %v1699 = vrot.slane %v1248, 7
      %v1700 = vsel %vm359, %v1698, %v1699
      %v1701 = vrot.slane %v1251, 7
      %v1702 = vrot.slane %v1254, 7
      %v1703 = vsel %vm359, %v1701, %v1702
      %v1704 = vrot.slane %v1257, 7
      %v1705 = vrot.slane %v1260, 7
      %v1706 = vsel %vm359, %v1704, %v1705
      %v1707 = vrot.slane %v1263, 7
      %v1708 = vrot.slane %v1266, 7
      %v1709 = vsel %vm359, %v1707, %v1708
      %v1710 = vrot.slane %v1269, 7
      %v1711 = vrot.slane %v1272, 7
      %v1712 = vsel %vm359, %v1710, %v1711
      %v1713 = vrot.slane %v1275, 7
      %v1714 = vrot.slane %v1278, 7
      %v1715 = vsel %vm359, %v1713, %v1714
      %v1716 = vrot.slane %v1281, 7
      %v1717 = vrot.slane %v1284, 7
      %v1718 = vsel %vm359, %v1716, %v1717
      %v1719 = vrot.slane %v1287, 7
      %v1720 = vrot.slane %v1290, 7
      %v1721 = vsel %vm359, %v1719, %v1720
      %v1722 = vrot.slane %v1293, 7
      %v1723 = vrot.slane %v1296, 7
      %v1724 = vsel %vm359, %v1722, %v1723
      %v1725 = vrot.slane %v1299, 7
      %v1726 = vrot.slane %v1302, 7
      %v1727 = vsel %vm359, %v1725, %v1726
      %v1728 = vrot.slane %v1305, 7
      %v1729 = vrot.slane %v1308, 7
      %v1730 = vsel %vm359, %v1728, %v1729
      %v1731 = vrot.slane %v1311, 7
      %v1732 = vrot.slane %v1314, 7
      %v1733 = vsel %vm359, %v1731, %v1732
      %v1734 = vrot.slane %v1317, 7
      %v1735 = vrot.slane %v1320, 7
      %v1736 = vsel %vm359, %v1734, %v1735
      %v1737 = vrot.slane %v1323, 7
      %v1738 = vrot.slane %v1326, 7
      %v1739 = vsel %vm359, %v1737, %v1738
      %v1740 = vrot.slane %v1329, 7
      %v1741 = vrot.slane %v1332, 7
      %v1742 = vsel %vm359, %v1740, %v1741
      %v1743 = vrot.slane %v1335, 7
      %v1744 = vrot.slane %v1338, 7
      %v1745 = vsel %vm359, %v1743, %v1744
      %1746 = vrot.lane.b32.xlu0 %v1698, 112
      %v1747 = vpop.permute.xlu0 %1746
      %1748 = vrot.lane.b32.xlu0 %v1700, 112
      %v1749 = vpop.permute.xlu0 %1748
      %1750 = vrot.lane.b32.xlu0 %v1701, 112
      %v1751 = vpop.permute.xlu0 %1750
      %1752 = vrot.lane.b32.xlu0 %v1703, 112
      %v1753 = vpop.permute.xlu0 %1752
      %1754 = vrot.lane.b32.xlu0 %v1704, 112
      %v1755 = vpop.permute.xlu0 %1754
      %1756 = vrot.lane.b32.xlu0 %v1706, 112
      %v1757 = vpop.permute.xlu0 %1756
      %1758 = vrot.lane.b32.xlu0 %v1707, 112
      %v1759 = vpop.permute.xlu0 %1758
      %1760 = vrot.lane.b32.xlu0 %v1709, 112
      %v1761 = vpop.permute.xlu0 %1760
      %1762 = vrot.lane.b32.xlu0 %v1710, 112
      %v1763 = vpop.permute.xlu0 %1762
      %1764 = vrot.lane.b32.xlu0 %v1712, 112
      %v1765 = vpop.permute.xlu0 %1764
      %1766 = vrot.lane.b32.xlu0 %v1713, 112
      %v1767 = vpop.permute.xlu0 %1766
      %1768 = vrot.lane.b32.xlu0 %v1715, 112
      %v1769 = vpop.permute.xlu0 %1768
      %1770 = vrot.lane.b32.xlu0 %v1716, 112
      %v1771 = vpop.permute.xlu0 %1770
      %1772 = vrot.lane.b32.xlu0 %v1718, 112
      %v1773 = vpop.permute.xlu0 %1772
      %1774 = vrot.lane.b32.xlu0 %v1719, 112
      %v1775 = vpop.permute.xlu0 %1774
      %1776 = vrot.lane.b32.xlu0 %v1721, 112
      %v1777 = vpop.permute.xlu0 %1776
      %1778 = vrot.lane.b32.xlu0 %v1722, 112
      %v1779 = vpop.permute.xlu0 %1778
      %1780 = vrot.lane.b32.xlu0 %v1724, 112
      %v1781 = vpop.permute.xlu0 %1780
      %1782 = vrot.lane.b32.xlu0 %v1725, 112
      %v1783 = vpop.permute.xlu0 %1782
      %1784 = vrot.lane.b32.xlu0 %v1727, 112
      %v1785 = vpop.permute.xlu0 %1784
      %1786 = vrot.lane.b32.xlu0 %v1728, 112
      %v1787 = vpop.permute.xlu0 %1786
      %1788 = vrot.lane.b32.xlu0 %v1730, 112
      %v1789 = vpop.permute.xlu0 %1788
      %1790 = vrot.lane.b32.xlu0 %v1731, 112
      %v1791 = vpop.permute.xlu0 %1790
      %1792 = vrot.lane.b32.xlu0 %v1733, 112
      %v1793 = vpop.permute.xlu0 %1792
      %1794 = vrot.lane.b32.xlu0 %v1734, 112
      %v1795 = vpop.permute.xlu0 %1794
      %1796 = vrot.lane.b32.xlu0 %v1736, 112
      %v1797 = vpop.permute.xlu0 %1796
      %1798 = vrot.lane.b32.xlu0 %v1737, 112
      %v1799 = vpop.permute.xlu0 %1798
      %1800 = vrot.lane.b32.xlu0 %v1739, 112
      %v1801 = vpop.permute.xlu0 %1800
      %1802 = vrot.lane.b32.xlu0 %v1740, 112
      %v1803 = vpop.permute.xlu0 %1802
      %1804 = vrot.lane.b32.xlu0 %v1742, 112
      %v1805 = vpop.permute.xlu0 %1804
      %1806 = vrot.lane.b32.xlu0 %v1743, 112
      %v1807 = vpop.permute.xlu0 %1806
      %1808 = vrot.lane.b32.xlu0 %v1745, 112
      %v1809 = vpop.permute.xlu0 %1808
      %v1842 = vsel %vm359, 0.0, %v1747
      %v1843 = vsel %vm359, 0.0, %v1751
      %v1844 = vsel %vm359, 0.0, %v1755
      %v1845 = vsel %vm359, 0.0, %v1759
      %v1846 = vsel %vm359, 0.0, %v1763
      %v1847 = vsel %vm359, 0.0, %v1767
      %v1848 = vsel %vm359, 0.0, %v1771
      %v1849 = vsel %vm359, 0.0, %v1775
      %v1850 = vsel %vm359, 0.0, %v1779
      %v1851 = vsel %vm359, 0.0, %v1783
      %v1852 = vsel %vm359, 0.0, %v1787
      %v1853 = vsel %vm359, 0.0, %v1791
      %v1854 = vsel %vm359, 0.0, %v1795
      %v1855 = vsel %vm359, 0.0, %v1799
      %v1856 = vsel %vm359, 0.0, %v1803
      %v1857 = vsel %vm359, 0.0, %v1807
      %v1858 = vadd.f32 %v1666, %v1842
      %v1859 = vadd.f32 %v1667, %v1749
      %v1860 = vadd.f32 %v1668, %v1843
      %v1861 = vadd.f32 %v1669, %v1753
      %v1862 = vadd.f32 %v1670, %v1844
      %v1863 = vadd.f32 %v1671, %v1757
      %v1864 = vadd.f32 %v1672, %v1845
      %v1865 = vadd.f32 %v1673, %v1761
      %v1866 = vadd.f32 %v1674, %v1846
      %v1867 = vadd.f32 %v1675, %v1765
      %v1868 = vadd.f32 %v1676, %v1847
      %v1869 = vadd.f32 %v1677, %v1769
      %v1870 = vadd.f32 %v1678, %v1848
      %v1871 = vadd.f32 %v1679, %v1773
      %v1872 = vadd.f32 %v1680, %v1849
      %v1873 = vadd.f32 %v1681, %v1777
      %v1874 = vadd.f32 %v1682, %v1850
      %v1875 = vadd.f32 %v1683, %v1781
      %v1876 = vadd.f32 %v1684, %v1851
      %v1877 = vadd.f32 %v1685, %v1785
      %v1878 = vadd.f32 %v1686, %v1852
      %v1879 = vadd.f32 %v1687, %v1789
      %v1880 = vadd.f32 %v1688, %v1853
      %v1881 = vadd.f32 %v1689, %v1793
      %v1882 = vadd.f32 %v1690, %v1854
      %v1883 = vadd.f32 %v1691, %v1797
      %v1884 = vadd.f32 %v1692, %v1855
      %v1885 = vadd.f32 %v1693, %v1801
      %v1886 = vadd.f32 %v1694, %v1856
      %v1887 = vadd.f32 %v1695, %v1805
      %v1888 = vadd.f32 %v1696, %v1857
      %v1889 = vadd.f32 %v1697, %v1809
      %1890 = vrot.lane.b32.xlu0 %v1245, 104
      %v1891 = vpop.permute.xlu0 %1890
      %1892 = vrot.lane.b32.xlu0 %v1248, 104
      %v1893 = vpop.permute.xlu0 %1892
      %1894 = vrot.lane.b32.xlu0 %v1251, 104
      %v1895 = vpop.permute.xlu0 %1894
      %1896 = vrot.lane.b32.xlu0 %v1254, 104
      %v1897 = vpop.permute.xlu0 %1896
      %1898 = vrot.lane.b32.xlu0 %v1257, 104
      %v1899 = vpop.permute.xlu0 %1898
      %1900 = vrot.lane.b32.xlu0 %v1260, 104
      %v1901 = vpop.permute.xlu0 %1900
      %1902 = vrot.lane.b32.xlu0 %v1263, 104
      %v1903 = vpop.permute.xlu0 %1902
      %1904 = vrot.lane.b32.xlu0 %v1266, 104
      %v1905 = vpop.permute.xlu0 %1904
      %1906 = vrot.lane.b32.xlu0 %v1269, 104
      %v1907 = vpop.permute.xlu0 %1906
      %1908 = vrot.lane.b32.xlu0 %v1272, 104
      %v1909 = vpop.permute.xlu0 %1908
      %1910 = vrot.lane.b32.xlu0 %v1275, 104
      %v1911 = vpop.permute.xlu0 %1910
      %1912 = vrot.lane.b32.xlu0 %v1278, 104
      %v1913 = vpop.permute.xlu0 %1912
      %1914 = vrot.lane.b32.xlu0 %v1281, 104
      %v1915 = vpop.permute.xlu0 %1914
      %1916 = vrot.lane.b32.xlu0 %v1284, 104
      %v1917 = vpop.permute.xlu0 %1916
      %1918 = vrot.lane.b32.xlu0 %v1287, 104
      %v1919 = vpop.permute.xlu0 %1918
      %1920 = vrot.lane.b32.xlu0 %v1290, 104
      %v1921 = vpop.permute.xlu0 %1920
      %1922 = vrot.lane.b32.xlu0 %v1293, 104
      %v1923 = vpop.permute.xlu0 %1922
      %1924 = vrot.lane.b32.xlu0 %v1296, 104
      %v1925 = vpop.permute.xlu0 %1924
      %1926 = vrot.lane.b32.xlu0 %v1299, 104
      %v1927 = vpop.permute.xlu0 %1926
      %1928 = vrot.lane.b32.xlu0 %v1302, 104
      %v1929 = vpop.permute.xlu0 %1928
      %1930 = vrot.lane.b32.xlu0 %v1305, 104
      %v1931 = vpop.permute.xlu0 %1930
      %1932 = vrot.lane.b32.xlu0 %v1308, 104
      %v1933 = vpop.permute.xlu0 %1932
      %1934 = vrot.lane.b32.xlu0 %v1311, 104
      %v1935 = vpop.permute.xlu0 %1934
      %1936 = vrot.lane.b32.xlu0 %v1314, 104
      %v1937 = vpop.permute.xlu0 %1936
      %1938 = vrot.lane.b32.xlu0 %v1317, 104
      %v1939 = vpop.permute.xlu0 %1938
      %1940 = vrot.lane.b32.xlu0 %v1320, 104
      %v1941 = vpop.permute.xlu0 %1940
      %1942 = vrot.lane.b32.xlu0 %v1323, 104
      %v1943 = vpop.permute.xlu0 %1942
      %1944 = vrot.lane.b32.xlu0 %v1326, 104
      %v1945 = vpop.permute.xlu0 %1944
      %1946 = vrot.lane.b32.xlu0 %v1329, 104
      %v1947 = vpop.permute.xlu0 %1946
      %1948 = vrot.lane.b32.xlu0 %v1332, 104
      %v1949 = vpop.permute.xlu0 %1948
      %1950 = vrot.lane.b32.xlu0 %v1335, 104
      %v1951 = vpop.permute.xlu0 %1950
      %1952 = vrot.lane.b32.xlu0 %v1338, 104
      %v1953 = vpop.permute.xlu0 %1952
      %v1986 = vadd.f32 %v1858, %v1891
      %v1987 = vadd.f32 %v1859, %v1893
      %v1988 = vadd.f32 %v1860, %v1895
      %v1989 = vadd.f32 %v1861, %v1897
      %v1990 = vadd.f32 %v1862, %v1899
      %v1991 = vadd.f32 %v1863, %v1901
      %v1992 = vadd.f32 %v1864, %v1903
      %v1993 = vadd.f32 %v1865, %v1905
      %v1994 = vadd.f32 %v1866, %v1907
      %v1995 = vadd.f32 %v1867, %v1909
      %v1996 = vadd.f32 %v1868, %v1911
      %v1997 = vadd.f32 %v1869, %v1913
      %v1998 = vadd.f32 %v1870, %v1915
      %v1999 = vadd.f32 %v1871, %v1917
      %v2000 = vadd.f32 %v1872, %v1919
      %v2001 = vadd.f32 %v1873, %v1921
      %v2002 = vadd.f32 %v1874, %v1923
      %v2003 = vadd.f32 %v1875, %v1925
      %v2004 = vadd.f32 %v1876, %v1927
      %v2005 = vadd.f32 %v1877, %v1929
      %v2006 = vadd.f32 %v1878, %v1931
      %v2007 = vadd.f32 %v1879, %v1933
      %v2008 = vadd.f32 %v1880, %v1935
      %v2009 = vadd.f32 %v1881, %v1937
      %v2010 = vadd.f32 %v1882, %v1939
      %v2011 = vadd.f32 %v1883, %v1941
      %v2012 = vadd.f32 %v1884, %v1943
      %v2013 = vadd.f32 %v1885, %v1945
      %v2014 = vadd.f32 %v1886, %v1947
      %v2015 = vadd.f32 %v1887, %v1949
      %v2016 = vadd.f32 %v1888, %v1951
      %v2017 = vadd.f32 %v1889, %v1953
      %vm2018 = vcmask 1046528
      %v2019 = vrot.slane %v1245, 1
      %v2020 = vrot.slane %v1248, 1
      %v2021 = vsel %vm2018, %v2019, %v2020
      %v2022 = vrot.slane %v1251, 1
      %v2023 = vrot.slane %v1254, 1
      %v2024 = vsel %vm2018, %v2022, %v2023
      %v2025 = vrot.slane %v1257, 1
      %v2026 = vrot.slane %v1260, 1
      %v2027 = vsel %vm2018, %v2025, %v2026
      %v2028 = vrot.slane %v1263, 1
      %v2029 = vrot.slane %v1266, 1
      %v2030 = vsel %vm2018, %v2028, %v2029
      %v2031 = vrot.slane %v1269, 1
      %v2032 = vrot.slane %v1272, 1
      %v2033 = vsel %vm2018, %v2031, %v2032
      %v2034 = vrot.slane %v1275, 1
      %v2035 = vrot.slane %v1278, 1
      %v2036 = vsel %vm2018, %v2034, %v2035
      %v2037 = vrot.slane %v1281, 1
      %v2038 = vrot.slane %v1284, 1
      %v2039 = vsel %vm2018, %v2037, %v2038
      %v2040 = vrot.slane %v1287, 1
      %v2041 = vrot.slane %v1290, 1
      %v2042 = vsel %vm2018, %v2040, %v2041
      %v2043 = vrot.slane %v1293, 1
      %v2044 = vrot.slane %v1296, 1
      %v2045 = vsel %vm2018, %v2043, %v2044
      %v2046 = vrot.slane %v1299, 1
      %v2047 = vrot.slane %v1302, 1
      %v2048 = vsel %vm2018, %v2046, %v2047
      %v2049 = vrot.slane %v1305, 1
      %v2050 = vrot.slane %v1308, 1
      %v2051 = vsel %vm2018, %v2049, %v2050
      %v2052 = vrot.slane %v1311, 1
      %v2053 = vrot.slane %v1314, 1
      %v2054 = vsel %vm2018, %v2052, %v2053
      %v2055 = vrot.slane %v1317, 1
      %v2056 = vrot.slane %v1320, 1
      %v2057 = vsel %vm2018, %v2055, %v2056
      %v2058 = vrot.slane %v1323, 1
      %v2059 = vrot.slane %v1326, 1
      %v2060 = vsel %vm2018, %v2058, %v2059
      %v2061 = vrot.slane %v1329, 1
      %v2062 = vrot.slane %v1332, 1
      %v2063 = vsel %vm2018, %v2061, %v2062
      %v2064 = vrot.slane %v1335, 1
      %v2065 = vrot.slane %v1338, 1
      %v2066 = vsel %vm2018, %v2064, %v2065
      %v2083 = vsel %vm2018, %v2020, 0.0
      %v2084 = vsel %vm2018, %v2023, 0.0
      %v2085 = vsel %vm2018, %v2026, 0.0
      %v2086 = vsel %vm2018, %v2029, 0.0
      %v2087 = vsel %vm2018, %v2032, 0.0
      %v2088 = vsel %vm2018, %v2035, 0.0
      %v2089 = vsel %vm2018, %v2038, 0.0
      %v2090 = vsel %vm2018, %v2041, 0.0
      %v2091 = vsel %vm2018, %v2044, 0.0
      %v2092 = vsel %vm2018, %v2047, 0.0
      %v2093 = vsel %vm2018, %v2050, 0.0
      %v2094 = vsel %vm2018, %v2053, 0.0
      %v2095 = vsel %vm2018, %v2056, 0.0
      %v2096 = vsel %vm2018, %v2059, 0.0
      %v2097 = vsel %vm2018, %v2062, 0.0
      %v2098 = vsel %vm2018, %v2065, 0.0
      %2115 = vrot.lane.b32.xlu0 %v2021, 96
      %v2116 = vpop.permute.xlu0 %2115
      %2117 = vrot.lane.b32.xlu0 %v2083, 96
      %v2118 = vpop.permute.xlu0 %2117
      %2119 = vrot.lane.b32.xlu0 %v2024, 96
      %v2120 = vpop.permute.xlu0 %2119
      %2121 = vrot.lane.b32.xlu0 %v2084, 96
      %v2122 = vpop.permute.xlu0 %2121
      %2123 = vrot.lane.b32.xlu0 %v2027, 96
      %v2124 = vpop.permute.xlu0 %2123
      %2125 = vrot.lane.b32.xlu0 %v2085, 96
      %v2126 = vpop.permute.xlu0 %2125
      %2127 = vrot.lane.b32.xlu0 %v2030, 96
      %v2128 = vpop.permute.xlu0 %2127
      %2129 = vrot.lane.b32.xlu0 %v2086, 96
      %v2130 = vpop.permute.xlu0 %2129
      %2131 = vrot.lane.b32.xlu0 %v2033, 96
      %v2132 = vpop.permute.xlu0 %2131
      %2133 = vrot.lane.b32.xlu0 %v2087, 96
      %v2134 = vpop.permute.xlu0 %2133
      %2135 = vrot.lane.b32.xlu0 %v2036, 96
      %v2136 = vpop.permute.xlu0 %2135
      %2137 = vrot.lane.b32.xlu0 %v2088, 96
      %v2138 = vpop.permute.xlu0 %2137
      %2139 = vrot.lane.b32.xlu0 %v2039, 96
      %v2140 = vpop.permute.xlu0 %2139
      %2141 = vrot.lane.b32.xlu0 %v2089, 96
      %v2142 = vpop.permute.xlu0 %2141
      %2143 = vrot.lane.b32.xlu0 %v2042, 96
      %v2144 = vpop.permute.xlu0 %2143
      %2145 = vrot.lane.b32.xlu0 %v2090, 96
      %v2146 = vpop.permute.xlu0 %2145
      %2147 = vrot.lane.b32.xlu0 %v2045, 96
      %v2148 = vpop.permute.xlu0 %2147
      %2149 = vrot.lane.b32.xlu0 %v2091, 96
      %v2150 = vpop.permute.xlu0 %2149
      %2151 = vrot.lane.b32.xlu0 %v2048, 96
      %v2152 = vpop.permute.xlu0 %2151
      %2153 = vrot.lane.b32.xlu0 %v2092, 96
      %v2154 = vpop.permute.xlu0 %2153
      %2155 = vrot.lane.b32.xlu0 %v2051, 96
      %v2156 = vpop.permute.xlu0 %2155
      %2157 = vrot.lane.b32.xlu0 %v2093, 96
      %v2158 = vpop.permute.xlu0 %2157
      %2159 = vrot.lane.b32.xlu0 %v2054, 96
      %v2160 = vpop.permute.xlu0 %2159
      %2161 = vrot.lane.b32.xlu0 %v2094, 96
      %v2162 = vpop.permute.xlu0 %2161
      %2163 = vrot.lane.b32.xlu0 %v2057, 96
      %v2164 = vpop.permute.xlu0 %2163
      %2165 = vrot.lane.b32.xlu0 %v2095, 96
      %v2166 = vpop.permute.xlu0 %2165
      %2167 = vrot.lane.b32.xlu0 %v2060, 96
      %v2168 = vpop.permute.xlu0 %2167
      %2169 = vrot.lane.b32.xlu0 %v2096, 96
      %v2170 = vpop.permute.xlu0 %2169
      %2171 = vrot.lane.b32.xlu0 %v2063, 96
      %v2172 = vpop.permute.xlu0 %2171
      %2173 = vrot.lane.b32.xlu0 %v2097, 96
      %v2174 = vpop.permute.xlu0 %2173
      %2175 = vrot.lane.b32.xlu0 %v2066, 96
      %v2176 = vpop.permute.xlu0 %2175
      %2177 = vrot.lane.b32.xlu0 %v2098, 96
      %v2178 = vpop.permute.xlu0 %2177
      %v2211 = vadd.f32 %v1986, %v2116
      %v2212 = vadd.f32 %v1987, %v2118
      %v2213 = vadd.f32 %v1988, %v2120
      %v2214 = vadd.f32 %v1989, %v2122
      %v2215 = vadd.f32 %v1990, %v2124
      %v2216 = vadd.f32 %v1991, %v2126
      %v2217 = vadd.f32 %v1992, %v2128
      %v2218 = vadd.f32 %v1993, %v2130
      %v2219 = vadd.f32 %v1994, %v2132
      %v2220 = vadd.f32 %v1995, %v2134
      %v2221 = vadd.f32 %v1996, %v2136
      %v2222 = vadd.f32 %v1997, %v2138
      %v2223 = vadd.f32 %v1998, %v2140
      %v2224 = vadd.f32 %v1999, %v2142
      %v2225 = vadd.f32 %v2000, %v2144
      %v2226 = vadd.f32 %v2001, %v2146
      %v2227 = vadd.f32 %v2002, %v2148
      %v2228 = vadd.f32 %v2003, %v2150
      %v2229 = vadd.f32 %v2004, %v2152
      %v2230 = vadd.f32 %v2005, %v2154
      %v2231 = vadd.f32 %v2006, %v2156
      %v2232 = vadd.f32 %v2007, %v2158
      %v2233 = vadd.f32 %v2008, %v2160
      %v2234 = vadd.f32 %v2009, %v2162
      %v2235 = vadd.f32 %v2010, %v2164
      %v2236 = vadd.f32 %v2011, %v2166
      %v2237 = vadd.f32 %v2012, %v2168
      %v2238 = vadd.f32 %v2013, %v2170
      %v2239 = vadd.f32 %v2014, %v2172
      %v2240 = vadd.f32 %v2015, %v2174
      %v2241 = vadd.f32 %v2016, %v2176
      %v2242 = vadd.f32 %v2017, %v2178
      %vm2243 = vcmask 1045504
      %v2244 = vrot.slane %v1245, 2
      %v2245 = vrot.slane %v1248, 2
      %v2246 = vsel %vm2243, %v2244, %v2245
      %v2247 = vrot.slane %v1251, 2
      %v2248 = vrot.slane %v1254, 2
      %v2249 = vsel %vm2243, %v2247, %v2248
      %v2250 = vrot.slane %v1257, 2
      %v2251 = vrot.slane %v1260, 2
      %v2252 = vsel %vm2243, %v2250, %v2251
      %v2253 = vrot.slane %v1263, 2
      %v2254 = vrot.slane %v1266, 2
      %v2255 = vsel %vm2243, %v2253, %v2254
      %v2256 = vrot.slane %v1269, 2
      %v2257 = vrot.slane %v1272, 2
      %v2258 = vsel %vm2243, %v2256, %v2257
      %v2259 = vrot.slane %v1275, 2
      %v2260 = vrot.slane %v1278, 2
      %v2261 = vsel %vm2243, %v2259, %v2260
      %v2262 = vrot.slane %v1281, 2
      %v2263 = vrot.slane %v1284, 2
      %v2264 = vsel %vm2243, %v2262, %v2263
      %v2265 = vrot.slane %v1287, 2
      %v2266 = vrot.slane %v1290, 2
      %v2267 = vsel %vm2243, %v2265, %v2266
      %v2268 = vrot.slane %v1293, 2
      %v2269 = vrot.slane %v1296, 2
      %v2270 = vsel %vm2243, %v2268, %v2269
      %v2271 = vrot.slane %v1299, 2
      %v2272 = vrot.slane %v1302, 2
      %v2273 = vsel %vm2243, %v2271, %v2272
      %v2274 = vrot.slane %v1305, 2
      %v2275 = vrot.slane %v1308, 2
      %v2276 = vsel %vm2243, %v2274, %v2275
      %v2277 = vrot.slane %v1311, 2
      %v2278 = vrot.slane %v1314, 2
      %v2279 = vsel %vm2243, %v2277, %v2278
      %v2280 = vrot.slane %v1317, 2
      %v2281 = vrot.slane %v1320, 2
      %v2282 = vsel %vm2243, %v2280, %v2281
      %v2283 = vrot.slane %v1323, 2
      %v2284 = vrot.slane %v1326, 2
      %v2285 = vsel %vm2243, %v2283, %v2284
      %v2286 = vrot.slane %v1329, 2
      %v2287 = vrot.slane %v1332, 2
      %v2288 = vsel %vm2243, %v2286, %v2287
      %v2289 = vrot.slane %v1335, 2
      %v2290 = vrot.slane %v1338, 2
      %v2291 = vsel %vm2243, %v2289, %v2290
      %v2308 = vsel %vm2243, %v2245, 0.0
      %v2309 = vsel %vm2243, %v2248, 0.0
      %v2310 = vsel %vm2243, %v2251, 0.0
      %v2311 = vsel %vm2243, %v2254, 0.0
      %v2312 = vsel %vm2243, %v2257, 0.0
      %v2313 = vsel %vm2243, %v2260, 0.0
      %v2314 = vsel %vm2243, %v2263, 0.0
      %v2315 = vsel %vm2243, %v2266, 0.0
      %v2316 = vsel %vm2243, %v2269, 0.0
      %v2317 = vsel %vm2243, %v2272, 0.0
      %v2318 = vsel %vm2243, %v2275, 0.0
      %v2319 = vsel %vm2243, %v2278, 0.0
      %v2320 = vsel %vm2243, %v2281, 0.0
      %v2321 = vsel %vm2243, %v2284, 0.0
      %v2322 = vsel %vm2243, %v2287, 0.0
      %v2323 = vsel %vm2243, %v2290, 0.0
      %2340 = vrot.lane.b32.xlu0 %v2246, 88
      %v2341 = vpop.permute.xlu0 %2340
      %2342 = vrot.lane.b32.xlu0 %v2308, 88
      %v2343 = vpop.permute.xlu0 %2342
      %2344 = vrot.lane.b32.xlu0 %v2249, 88
      %v2345 = vpop.permute.xlu0 %2344
      %2346 = vrot.lane.b32.xlu0 %v2309, 88
      %v2347 = vpop.permute.xlu0 %2346
      %2348 = vrot.lane.b32.xlu0 %v2252, 88
      %v2349 = vpop.permute.xlu0 %2348
      %2350 = vrot.lane.b32.xlu0 %v2310, 88
      %v2351 = vpop.permute.xlu0 %2350
      %2352 = vrot.lane.b32.xlu0 %v2255, 88
      %v2353 = vpop.permute.xlu0 %2352
      %2354 = vrot.lane.b32.xlu0 %v2311, 88
      %v2355 = vpop.permute.xlu0 %2354
      %2356 = vrot.lane.b32.xlu0 %v2258, 88
      %v2357 = vpop.permute.xlu0 %2356
      %2358 = vrot.lane.b32.xlu0 %v2312, 88
      %v2359 = vpop.permute.xlu0 %2358
      %2360 = vrot.lane.b32.xlu0 %v2261, 88
      %v2361 = vpop.permute.xlu0 %2360
      %2362 = vrot.lane.b32.xlu0 %v2313, 88
      %v2363 = vpop.permute.xlu0 %2362
      %2364 = vrot.lane.b32.xlu0 %v2264, 88
      %v2365 = vpop.permute.xlu0 %2364
      %2366 = vrot.lane.b32.xlu0 %v2314, 88
      %v2367 = vpop.permute.xlu0 %2366
      %2368 = vrot.lane.b32.xlu0 %v2267, 88
      %v2369 = vpop.permute.xlu0 %2368
      %2370 = vrot.lane.b32.xlu0 %v2315, 88
      %v2371 = vpop.permute.xlu0 %2370
      %2372 = vrot.lane.b32.xlu0 %v2270, 88
      %v2373 = vpop.permute.xlu0 %2372
      %2374 = vrot.lane.b32.xlu0 %v2316, 88
      %v2375 = vpop.permute.xlu0 %2374
      %2376 = vrot.lane.b32.xlu0 %v2273, 88
      %v2377 = vpop.permute.xlu0 %2376
      %2378 = vrot.lane.b32.xlu0 %v2317, 88
      %v2379 = vpop.permute.xlu0 %2378
      %2380 = vrot.lane.b32.xlu0 %v2276, 88
      %v2381 = vpop.permute.xlu0 %2380
      %2382 = vrot.lane.b32.xlu0 %v2318, 88
      %v2383 = vpop.permute.xlu0 %2382
      %2384 = vrot.lane.b32.xlu0 %v2279, 88
      %v2385 = vpop.permute.xlu0 %2384
      %2386 = vrot.lane.b32.xlu0 %v2319, 88
      %v2387 = vpop.permute.xlu0 %2386
      %2388 = vrot.lane.b32.xlu0 %v2282, 88
      %v2389 = vpop.permute.xlu0 %2388
      %2390 = vrot.lane.b32.xlu0 %v2320, 88
      %v2391 = vpop.permute.xlu0 %2390
      %2392 = vrot.lane.b32.xlu0 %v2285, 88
      %v2393 = vpop.permute.xlu0 %2392
      %2394 = vrot.lane.b32.xlu0 %v2321, 88
      %v2395 = vpop.permute.xlu0 %2394
      %2396 = vrot.lane.b32.xlu0 %v2288, 88
      %v2397 = vpop.permute.xlu0 %2396
      %2398 = vrot.lane.b32.xlu0 %v2322, 88
      %v2399 = vpop.permute.xlu0 %2398
      %2400 = vrot.lane.b32.xlu0 %v2291, 88
      %v2401 = vpop.permute.xlu0 %2400
      %2402 = vrot.lane.b32.xlu0 %v2323, 88
      %v2403 = vpop.permute.xlu0 %2402
      %v2436 = vadd.f32 %v2211, %v2341
      %v2437 = vadd.f32 %v2212, %v2343
      %v2438 = vadd.f32 %v2213, %v2345
      %v2439 = vadd.f32 %v2214, %v2347
      %v2440 = vadd.f32 %v2215, %v2349
      %v2441 = vadd.f32 %v2216, %v2351
      %v2442 = vadd.f32 %v2217, %v2353
      %v2443 = vadd.f32 %v2218, %v2355
      %v2444 = vadd.f32 %v2219, %v2357
      %v2445 = vadd.f32 %v2220, %v2359
      %v2446 = vadd.f32 %v2221, %v2361
      %v2447 = vadd.f32 %v2222, %v2363
      %v2448 = vadd.f32 %v2223, %v2365
      %v2449 = vadd.f32 %v2224, %v2367
      %v2450 = vadd.f32 %v2225, %v2369
      %v2451 = vadd.f32 %v2226, %v2371
      %v2452 = vadd.f32 %v2227, %v2373
      %v2453 = vadd.f32 %v2228, %v2375
      %v2454 = vadd.f32 %v2229, %v2377
      %v2455 = vadd.f32 %v2230, %v2379
      %v2456 = vadd.f32 %v2231, %v2381
      %v2457 = vadd.f32 %v2232, %v2383
      %v2458 = vadd.f32 %v2233, %v2385
      %v2459 = vadd.f32 %v2234, %v2387
      %v2460 = vadd.f32 %v2235, %v2389
      %v2461 = vadd.f32 %v2236, %v2391
      %v2462 = vadd.f32 %v2237, %v2393
      %v2463 = vadd.f32 %v2238, %v2395
      %v2464 = vadd.f32 %v2239, %v2397
      %v2465 = vadd.f32 %v2240, %v2399
      %v2466 = vadd.f32 %v2241, %v2401
      %v2467 = vadd.f32 %v2242, %v2403
      %vm2468 = vcmask 1044480
      %v2469 = vrot.slane %v1245, 3
      %v2470 = vrot.slane %v1248, 3
      %v2471 = vsel %vm2468, %v2469, %v2470
      %v2472 = vrot.slane %v1251, 3
      %v2473 = vrot.slane %v1254, 3
      %v2474 = vsel %vm2468, %v2472, %v2473
      %v2475 = vrot.slane %v1257, 3
      %v2476 = vrot.slane %v1260, 3
      %v2477 = vsel %vm2468, %v2475, %v2476
      %v2478 = vrot.slane %v1263, 3
      %v2479 = vrot.slane %v1266, 3
      %v2480 = vsel %vm2468, %v2478, %v2479
      %v2481 = vrot.slane %v1269, 3
      %v2482 = vrot.slane %v1272, 3
      %v2483 = vsel %vm2468, %v2481, %v2482
      %v2484 = vrot.slane %v1275, 3
      %v2485 = vrot.slane %v1278, 3
      %v2486 = vsel %vm2468, %v2484, %v2485
      %v2487 = vrot.slane %v1281, 3
      %v2488 = vrot.slane %v1284, 3
      %v2489 = vsel %vm2468, %v2487, %v2488
      %v2490 = vrot.slane %v1287, 3
      %v2491 = vrot.slane %v1290, 3
      %v2492 = vsel %vm2468, %v2490, %v2491
      %v2493 = vrot.slane %v1293, 3
      %v2494 = vrot.slane %v1296, 3
      %v2495 = vsel %vm2468, %v2493, %v2494
      %v2496 = vrot.slane %v1299, 3
      %v2497 = vrot.slane %v1302, 3
      %v2498 = vsel %vm2468, %v2496, %v2497
      %v2499 = vrot.slane %v1305, 3
      %v2500 = vrot.slane %v1308, 3
      %v2501 = vsel %vm2468, %v2499, %v2500
      %v2502 = vrot.slane %v1311, 3
      %v2503 = vrot.slane %v1314, 3
      %v2504 = vsel %vm2468, %v2502, %v2503
      %v2505 = vrot.slane %v1317, 3
      %v2506 = vrot.slane %v1320, 3
      %v2507 = vsel %vm2468, %v2505, %v2506
      %v2508 = vrot.slane %v1323, 3
      %v2509 = vrot.slane %v1326, 3
      %v2510 = vsel %vm2468, %v2508, %v2509
      %v2511 = vrot.slane %v1329, 3
      %v2512 = vrot.slane %v1332, 3
      %v2513 = vsel %vm2468, %v2511, %v2512
      %v2514 = vrot.slane %v1335, 3
      %v2515 = vrot.slane %v1338, 3
      %v2516 = vsel %vm2468, %v2514, %v2515
      %v2533 = vsel %vm2468, %v2470, 0.0
      %v2534 = vsel %vm2468, %v2473, 0.0
      %v2535 = vsel %vm2468, %v2476, 0.0
      %v2536 = vsel %vm2468, %v2479, 0.0
      %v2537 = vsel %vm2468, %v2482, 0.0
      %v2538 = vsel %vm2468, %v2485, 0.0
      %v2539 = vsel %vm2468, %v2488, 0.0
      %v2540 = vsel %vm2468, %v2491, 0.0
      %v2541 = vsel %vm2468, %v2494, 0.0
      %v2542 = vsel %vm2468, %v2497, 0.0
      %v2543 = vsel %vm2468, %v2500, 0.0
      %v2544 = vsel %vm2468, %v2503, 0.0
      %v2545 = vsel %vm2468, %v2506, 0.0
      %v2546 = vsel %vm2468, %v2509, 0.0
      %v2547 = vsel %vm2468, %v2512, 0.0
      %v2548 = vsel %vm2468, %v2515, 0.0
      %2565 = vrot.lane.b32.xlu0 %v2471, 80
      %v2566 = vpop.permute.xlu0 %2565
      %2567 = vrot.lane.b32.xlu0 %v2533, 80
      %v2568 = vpop.permute.xlu0 %2567
      %2569 = vrot.lane.b32.xlu0 %v2474, 80
      %v2570 = vpop.permute.xlu0 %2569
      %2571 = vrot.lane.b32.xlu0 %v2534, 80
      %v2572 = vpop.permute.xlu0 %2571
      %2573 = vrot.lane.b32.xlu0 %v2477, 80
      %v2574 = vpop.permute.xlu0 %2573
      %2575 = vrot.lane.b32.xlu0 %v2535, 80
      %v2576 = vpop.permute.xlu0 %2575
      %2577 = vrot.lane.b32.xlu0 %v2480, 80
      %v2578 = vpop.permute.xlu0 %2577
      %2579 = vrot.lane.b32.xlu0 %v2536, 80
      %v2580 = vpop.permute.xlu0 %2579
      %2581 = vrot.lane.b32.xlu0 %v2483, 80
      %v2582 = vpop.permute.xlu0 %2581
      %2583 = vrot.lane.b32.xlu0 %v2537, 80
      %v2584 = vpop.permute.xlu0 %2583
      %2585 = vrot.lane.b32.xlu0 %v2486, 80
      %v2586 = vpop.permute.xlu0 %2585
      %2587 = vrot.lane.b32.xlu0 %v2538, 80
      %v2588 = vpop.permute.xlu0 %2587
      %2589 = vrot.lane.b32.xlu0 %v2489, 80
      %v2590 = vpop.permute.xlu0 %2589
      %2591 = vrot.lane.b32.xlu0 %v2539, 80
      %v2592 = vpop.permute.xlu0 %2591
      %2593 = vrot.lane.b32.xlu0 %v2492, 80
      %v2594 = vpop.permute.xlu0 %2593
      %2595 = vrot.lane.b32.xlu0 %v2540, 80
      %v2596 = vpop.permute.xlu0 %2595
      %2597 = vrot.lane.b32.xlu0 %v2495, 80
      %v2598 = vpop.permute.xlu0 %2597
      %2599 = vrot.lane.b32.xlu0 %v2541, 80
      %v2600 = vpop.permute.xlu0 %2599
      %2601 = vrot.lane.b32.xlu0 %v2498, 80
      %v2602 = vpop.permute.xlu0 %2601
      %2603 = vrot.lane.b32.xlu0 %v2542, 80
      %v2604 = vpop.permute.xlu0 %2603
      %2605 = vrot.lane.b32.xlu0 %v2501, 80
      %v2606 = vpop.permute.xlu0 %2605
      %2607 = vrot.lane.b32.xlu0 %v2543, 80
      %v2608 = vpop.permute.xlu0 %2607
      %2609 = vrot.lane.b32.xlu0 %v2504, 80
      %v2610 = vpop.permute.xlu0 %2609
      %2611 = vrot.lane.b32.xlu0 %v2544, 80
      %v2612 = vpop.permute.xlu0 %2611
      %2613 = vrot.lane.b32.xlu0 %v2507, 80
      %v2614 = vpop.permute.xlu0 %2613
      %2615 = vrot.lane.b32.xlu0 %v2545, 80
      %v2616 = vpop.permute.xlu0 %2615
      %2617 = vrot.lane.b32.xlu0 %v2510, 80
      %v2618 = vpop.permute.xlu0 %2617
      %2619 = vrot.lane.b32.xlu0 %v2546, 80
      %v2620 = vpop.permute.xlu0 %2619
      %2621 = vrot.lane.b32.xlu0 %v2513, 80
      %v2622 = vpop.permute.xlu0 %2621
      %2623 = vrot.lane.b32.xlu0 %v2547, 80
      %v2624 = vpop.permute.xlu0 %2623
      %2625 = vrot.lane.b32.xlu0 %v2516, 80
      %v2626 = vpop.permute.xlu0 %2625
      %2627 = vrot.lane.b32.xlu0 %v2548, 80
      %v2628 = vpop.permute.xlu0 %2627
      %v2661 = vadd.f32 %v2436, %v2566
      %v2662 = vadd.f32 %v2437, %v2568
      %v2663 = vadd.f32 %v2438, %v2570
      %v2664 = vadd.f32 %v2439, %v2572
      %v2665 = vadd.f32 %v2440, %v2574
      %v2666 = vadd.f32 %v2441, %v2576
      %v2667 = vadd.f32 %v2442, %v2578
      %v2668 = vadd.f32 %v2443, %v2580
      %v2669 = vadd.f32 %v2444, %v2582
      %v2670 = vadd.f32 %v2445, %v2584
      %v2671 = vadd.f32 %v2446, %v2586
      %v2672 = vadd.f32 %v2447, %v2588
      %v2673 = vadd.f32 %v2448, %v2590
      %v2674 = vadd.f32 %v2449, %v2592
      %v2675 = vadd.f32 %v2450, %v2594
      %v2676 = vadd.f32 %v2451, %v2596
      %v2677 = vadd.f32 %v2452, %v2598
      %v2678 = vadd.f32 %v2453, %v2600
      %v2679 = vadd.f32 %v2454, %v2602
      %v2680 = vadd.f32 %v2455, %v2604
      %v2681 = vadd.f32 %v2456, %v2606
      %v2682 = vadd.f32 %v2457, %v2608
      %v2683 = vadd.f32 %v2458, %v2610
      %v2684 = vadd.f32 %v2459, %v2612
      %v2685 = vadd.f32 %v2460, %v2614
      %v2686 = vadd.f32 %v2461, %v2616
      %v2687 = vadd.f32 %v2462, %v2618
      %v2688 = vadd.f32 %v2463, %v2620
      %v2689 = vadd.f32 %v2464, %v2622
      %v2690 = vadd.f32 %v2465, %v2624
      %v2691 = vadd.f32 %v2466, %v2626
      %v2692 = vadd.f32 %v2467, %v2628
      %2693 = vrot.lane.b32.xlu0 %v1245, 72
      %v2694 = vpop.permute.xlu0 %2693
      %2695 = vrot.lane.b32.xlu0 %v1248, 72
      %v2696 = vpop.permute.xlu0 %2695
      %2697 = vrot.lane.b32.xlu0 %v1251, 72
      %v2698 = vpop.permute.xlu0 %2697
      %2699 = vrot.lane.b32.xlu0 %v1254, 72
      %v2700 = vpop.permute.xlu0 %2699
      %2701 = vrot.lane.b32.xlu0 %v1257, 72
      %v2702 = vpop.permute.xlu0 %2701
      %2703 = vrot.lane.b32.xlu0 %v1260, 72
      %v2704 = vpop.permute.xlu0 %2703
      %2705 = vrot.lane.b32.xlu0 %v1263, 72
      %v2706 = vpop.permute.xlu0 %2705
      %2707 = vrot.lane.b32.xlu0 %v1266, 72
      %v2708 = vpop.permute.xlu0 %2707
      %2709 = vrot.lane.b32.xlu0 %v1269, 72
      %v2710 = vpop.permute.xlu0 %2709
      %2711 = vrot.lane.b32.xlu0 %v1272, 72
      %v2712 = vpop.permute.xlu0 %2711
      %2713 = vrot.lane.b32.xlu0 %v1275, 72
      %v2714 = vpop.permute.xlu0 %2713
      %2715 = vrot.lane.b32.xlu0 %v1278, 72
      %v2716 = vpop.permute.xlu0 %2715
      %2717 = vrot.lane.b32.xlu0 %v1281, 72
      %v2718 = vpop.permute.xlu0 %2717
      %2719 = vrot.lane.b32.xlu0 %v1284, 72
      %v2720 = vpop.permute.xlu0 %2719
      %2721 = vrot.lane.b32.xlu0 %v1287, 72
      %v2722 = vpop.permute.xlu0 %2721
      %2723 = vrot.lane.b32.xlu0 %v1290, 72
      %v2724 = vpop.permute.xlu0 %2723
      %2725 = vrot.lane.b32.xlu0 %v1293, 72
      %v2726 = vpop.permute.xlu0 %2725
      %2727 = vrot.lane.b32.xlu0 %v1296, 72
      %v2728 = vpop.permute.xlu0 %2727
      %2729 = vrot.lane.b32.xlu0 %v1299, 72
      %v2730 = vpop.permute.xlu0 %2729
      %2731 = vrot.lane.b32.xlu0 %v1302, 72
      %v2732 = vpop.permute.xlu0 %2731
      %2733 = vrot.lane.b32.xlu0 %v1305, 72
      %v2734 = vpop.permute.xlu0 %2733
      %2735 = vrot.lane.b32.xlu0 %v1308, 72
      %v2736 = vpop.permute.xlu0 %2735
      %2737 = vrot.lane.b32.xlu0 %v1311, 72
      %v2738 = vpop.permute.xlu0 %2737
      %2739 = vrot.lane.b32.xlu0 %v1314, 72
      %v2740 = vpop.permute.xlu0 %2739
      %2741 = vrot.lane.b32.xlu0 %v1317, 72
      %v2742 = vpop.permute.xlu0 %2741
      %2743 = vrot.lane.b32.xlu0 %v1320, 72
      %v2744 = vpop.permute.xlu0 %2743
      %v2771 = vadd.f32 %v2661, 0.0
      %v2772 = vadd.f32 %v2662, 0.0
      %v2773 = vadd.f32 %v2663, 0.0
      %v2774 = vadd.f32 %v2664, 0.0
      %v2775 = vadd.f32 %v2665, 0.0
      %v2776 = vadd.f32 %v2666, 0.0
      %v2777 = vadd.f32 %v2667, %v2694
      %v2778 = vadd.f32 %v2668, %v2696
      %v2779 = vadd.f32 %v2669, %v2698
      %v2780 = vadd.f32 %v2670, %v2700
      %v2781 = vadd.f32 %v2671, %v2702
      %v2782 = vadd.f32 %v2672, %v2704
      %v2783 = vadd.f32 %v2673, %v2706
      %v2784 = vadd.f32 %v2674, %v2708
      %v2785 = vadd.f32 %v2675, %v2710
      %v2786 = vadd.f32 %v2676, %v2712
      %v2787 = vadd.f32 %v2677, %v2714
      %v2788 = vadd.f32 %v2678, %v2716
      %v2789 = vadd.f32 %v2679, %v2718
      %v2790 = vadd.f32 %v2680, %v2720
      %v2791 = vadd.f32 %v2681, %v2722
      %v2792 = vadd.f32 %v2682, %v2724
      %v2793 = vadd.f32 %v2683, %v2726
      %v2794 = vadd.f32 %v2684, %v2728
      %v2795 = vadd.f32 %v2685, %v2730
      %v2796 = vadd.f32 %v2686, %v2732
      %v2797 = vadd.f32 %v2687, %v2734
      %v2798 = vadd.f32 %v2688, %v2736
      %v2799 = vadd.f32 %v2689, %v2738
      %v2800 = vadd.f32 %v2690, %v2740
      %v2801 = vadd.f32 %v2691, %v2742
      %v2802 = vadd.f32 %v2692, %v2744
      %2803 = vrot.lane.b32.xlu0 %v1245, 64
      %v2804 = vpop.permute.xlu0 %2803
      %2805 = vrot.lane.b32.xlu0 %v1248, 64
      %v2806 = vpop.permute.xlu0 %2805
      %2807 = vrot.lane.b32.xlu0 %v1251, 64
      %v2808 = vpop.permute.xlu0 %2807
      %2809 = vrot.lane.b32.xlu0 %v1254, 64
      %v2810 = vpop.permute.xlu0 %2809
      %2811 = vrot.lane.b32.xlu0 %v1257, 64
      %v2812 = vpop.permute.xlu0 %2811
      %2813 = vrot.lane.b32.xlu0 %v1260, 64
      %v2814 = vpop.permute.xlu0 %2813
      %2815 = vrot.lane.b32.xlu0 %v1263, 64
      %v2816 = vpop.permute.xlu0 %2815
      %2817 = vrot.lane.b32.xlu0 %v1266, 64
      %v2818 = vpop.permute.xlu0 %2817
      %2819 = vrot.lane.b32.xlu0 %v1269, 64
      %v2820 = vpop.permute.xlu0 %2819
      %2821 = vrot.lane.b32.xlu0 %v1272, 64
      %v2822 = vpop.permute.xlu0 %2821
      %2823 = vrot.lane.b32.xlu0 %v1275, 64
      %v2824 = vpop.permute.xlu0 %2823
      %2825 = vrot.lane.b32.xlu0 %v1278, 64
      %v2826 = vpop.permute.xlu0 %2825
      %2827 = vrot.lane.b32.xlu0 %v1281, 64
      %v2828 = vpop.permute.xlu0 %2827
      %2829 = vrot.lane.b32.xlu0 %v1284, 64
      %v2830 = vpop.permute.xlu0 %2829
      %2831 = vrot.lane.b32.xlu0 %v1287, 64
      %v2832 = vpop.permute.xlu0 %2831
      %2833 = vrot.lane.b32.xlu0 %v1290, 64
      %v2834 = vpop.permute.xlu0 %2833
      %2835 = vrot.lane.b32.xlu0 %v1293, 64
      %v2836 = vpop.permute.xlu0 %2835
      %2837 = vrot.lane.b32.xlu0 %v1296, 64
      %v2838 = vpop.permute.xlu0 %2837
      %2839 = vrot.lane.b32.xlu0 %v1299, 64
      %v2840 = vpop.permute.xlu0 %2839
      %2841 = vrot.lane.b32.xlu0 %v1302, 64
      %v2842 = vpop.permute.xlu0 %2841
      %2843 = vrot.lane.b32.xlu0 %v1305, 64
      %v2844 = vpop.permute.xlu0 %2843
      %2845 = vrot.lane.b32.xlu0 %v1308, 64
      %v2846 = vpop.permute.xlu0 %2845
      %2847 = vrot.lane.b32.xlu0 %v1311, 64
      %v2848 = vpop.permute.xlu0 %2847
      %2849 = vrot.lane.b32.xlu0 %v1314, 64
      %v2850 = vpop.permute.xlu0 %2849
      %2851 = vrot.lane.b32.xlu0 %v1317, 64
      %v2852 = vpop.permute.xlu0 %2851
      %2853 = vrot.lane.b32.xlu0 %v1320, 64
      %v2854 = vpop.permute.xlu0 %2853
      %2855 = vrot.lane.b32.xlu0 %v1323, 64
      %v2856 = vpop.permute.xlu0 %2855
      %2857 = vrot.lane.b32.xlu0 %v1326, 64
      %v2858 = vpop.permute.xlu0 %2857
      %v2887 = vadd.f32 %v2771, 0.0
      %v2888 = vadd.f32 %v2772, 0.0
      %v2889 = vadd.f32 %v2773, 0.0
      %v2890 = vadd.f32 %v2774, 0.0
      %v2891 = vadd.f32 %v2775, %v2804
      %v2892 = vadd.f32 %v2776, %v2806
      %v2893 = vadd.f32 %v2777, %v2808
      %v2894 = vadd.f32 %v2778, %v2810
      %v2895 = vadd.f32 %v2779, %v2812
      %v2896 = vadd.f32 %v2780, %v2814
      %v2897 = vadd.f32 %v2781, %v2816
      %v2898 = vadd.f32 %v2782, %v2818
      %v2899 = vadd.f32 %v2783, %v2820
      %v2900 = vadd.f32 %v2784, %v2822
      %v2901 = vadd.f32 %v2785, %v2824
      %v2902 = vadd.f32 %v2786, %v2826
      %v2903 = vadd.f32 %v2787, %v2828
      %v2904 = vadd.f32 %v2788, %v2830
      %v2905 = vadd.f32 %v2789, %v2832
      %v2906 = vadd.f32 %v2790, %v2834
      %v2907 = vadd.f32 %v2791, %v2836
      %v2908 = vadd.f32 %v2792, %v2838
      %v2909 = vadd.f32 %v2793, %v2840
      %v2910 = vadd.f32 %v2794, %v2842
      %v2911 = vadd.f32 %v2795, %v2844
      %v2912 = vadd.f32 %v2796, %v2846
      %v2913 = vadd.f32 %v2797, %v2848
      %v2914 = vadd.f32 %v2798, %v2850
      %v2915 = vadd.f32 %v2799, %v2852
      %v2916 = vadd.f32 %v2800, %v2854
      %v2917 = vadd.f32 %v2801, %v2856
      %v2918 = vadd.f32 %v2802, %v2858
      %2919 = vrot.lane.b32.xlu0 %v1245, 56
      %v2920 = vpop.permute.xlu0 %2919
      %2921 = vrot.lane.b32.xlu0 %v1248, 56
      %v2922 = vpop.permute.xlu0 %2921
      %2923 = vrot.lane.b32.xlu0 %v1251, 56
      %v2924 = vpop.permute.xlu0 %2923
      %2925 = vrot.lane.b32.xlu0 %v1254, 56
      %v2926 = vpop.permute.xlu0 %2925
      %2927 = vrot.lane.b32.xlu0 %v1257, 56
      %v2928 = vpop.permute.xlu0 %2927
      %2929 = vrot.lane.b32.xlu0 %v1260, 56
      %v2930 = vpop.permute.xlu0 %2929
      %2931 = vrot.lane.b32.xlu0 %v1263, 56
      %v2932 = vpop.permute.xlu0 %2931
      %2933 = vrot.lane.b32.xlu0 %v1266, 56
      %v2934 = vpop.permute.xlu0 %2933
      %2935 = vrot.lane.b32.xlu0 %v1269, 56
      %v2936 = vpop.permute.xlu0 %2935
      %2937 = vrot.lane.b32.xlu0 %v1272, 56
      %v2938 = vpop.permute.xlu0 %2937
      %2939 = vrot.lane.b32.xlu0 %v1275, 56
      %v2940 = vpop.permute.xlu0 %2939
      %2941 = vrot.lane.b32.xlu0 %v1278, 56
      %v2942 = vpop.permute.xlu0 %2941
      %2943 = vrot.lane.b32.xlu0 %v1281, 56
      %v2944 = vpop.permute.xlu0 %2943
      %2945 = vrot.lane.b32.xlu0 %v1284, 56
      %v2946 = vpop.permute.xlu0 %2945
      %2947 = vrot.lane.b32.xlu0 %v1287, 56
      %v2948 = vpop.permute.xlu0 %2947
      %2949 = vrot.lane.b32.xlu0 %v1290, 56
      %v2950 = vpop.permute.xlu0 %2949
      %2951 = vrot.lane.b32.xlu0 %v1293, 56
      %v2952 = vpop.permute.xlu0 %2951
      %2953 = vrot.lane.b32.xlu0 %v1296, 56
      %v2954 = vpop.permute.xlu0 %2953
      %2955 = vrot.lane.b32.xlu0 %v1299, 56
      %v2956 = vpop.permute.xlu0 %2955
      %2957 = vrot.lane.b32.xlu0 %v1302, 56
      %v2958 = vpop.permute.xlu0 %2957
      %2959 = vrot.lane.b32.xlu0 %v1305, 56
      %v2960 = vpop.permute.xlu0 %2959
      %2961 = vrot.lane.b32.xlu0 %v1308, 56
      %v2962 = vpop.permute.xlu0 %2961
      %2963 = vrot.lane.b32.xlu0 %v1311, 56
      %v2964 = vpop.permute.xlu0 %2963
      %2965 = vrot.lane.b32.xlu0 %v1314, 56
      %v2966 = vpop.permute.xlu0 %2965
      %2967 = vrot.lane.b32.xlu0 %v1317, 56
      %v2968 = vpop.permute.xlu0 %2967
      %2969 = vrot.lane.b32.xlu0 %v1320, 56
      %v2970 = vpop.permute.xlu0 %2969
      %2971 = vrot.lane.b32.xlu0 %v1323, 56
      %v2972 = vpop.permute.xlu0 %2971
      %2973 = vrot.lane.b32.xlu0 %v1326, 56
      %v2974 = vpop.permute.xlu0 %2973
      %2975 = vrot.lane.b32.xlu0 %v1329, 56
      %v2976 = vpop.permute.xlu0 %2975
      %2977 = vrot.lane.b32.xlu0 %v1332, 56
      %v2978 = vpop.permute.xlu0 %2977
      %v3009 = vadd.f32 %v2887, 0.0
      %v3010 = vadd.f32 %v2888, 0.0
      %v3011 = vadd.f32 %v2889, %v2920
      %v3012 = vadd.f32 %v2890, %v2922
      %v3013 = vadd.f32 %v2891, %v2924
      %v3014 = vadd.f32 %v2892, %v2926
      %v3015 = vadd.f32 %v2893, %v2928
      %v3016 = vadd.f32 %v2894, %v2930
      %v3017 = vadd.f32 %v2895, %v2932
      %v3018 = vadd.f32 %v2896, %v2934
      %v3019 = vadd.f32 %v2897, %v2936
      %v3020 = vadd.f32 %v2898, %v2938
      %v3021 = vadd.f32 %v2899, %v2940
      %v3022 = vadd.f32 %v2900, %v2942
      %v3023 = vadd.f32 %v2901, %v2944
      %v3024 = vadd.f32 %v2902, %v2946
      %v3025 = vadd.f32 %v2903, %v2948
      %v3026 = vadd.f32 %v2904, %v2950
      %v3027 = vadd.f32 %v2905, %v2952
      %v3028 = vadd.f32 %v2906, %v2954
      %v3029 = vadd.f32 %v2907, %v2956
      %v3030 = vadd.f32 %v2908, %v2958
      %v3031 = vadd.f32 %v2909, %v2960
      %v3032 = vadd.f32 %v2910, %v2962
      %v3033 = vadd.f32 %v2911, %v2964
      %v3034 = vadd.f32 %v2912, %v2966
      %v3035 = vadd.f32 %v2913, %v2968
      %v3036 = vadd.f32 %v2914, %v2970
      %v3037 = vadd.f32 %v2915, %v2972
      %v3038 = vadd.f32 %v2916, %v2974
      %v3039 = vadd.f32 %v2917, %v2976
      %v3040 = vadd.f32 %v2918, %v2978
      %3041 = vrot.lane.b32.xlu0 %v1245, 48
      %v3042 = vpop.permute.xlu0 %3041
      %3043 = vrot.lane.b32.xlu0 %v1248, 48
      %v3044 = vpop.permute.xlu0 %3043
      %3045 = vrot.lane.b32.xlu0 %v1251, 48
      %v3046 = vpop.permute.xlu0 %3045
      %3047 = vrot.lane.b32.xlu0 %v1254, 48
      %v3048 = vpop.permute.xlu0 %3047
      %3049 = vrot.lane.b32.xlu0 %v1257, 48
      %v3050 = vpop.permute.xlu0 %3049
      %3051 = vrot.lane.b32.xlu0 %v1260, 48
      %v3052 = vpop.permute.xlu0 %3051
      %3053 = vrot.lane.b32.xlu0 %v1263, 48
      %v3054 = vpop.permute.xlu0 %3053
      %3055 = vrot.lane.b32.xlu0 %v1266, 48
      %v3056 = vpop.permute.xlu0 %3055
      %3057 = vrot.lane.b32.xlu0 %v1269, 48
      %v3058 = vpop.permute.xlu0 %3057
      %3059 = vrot.lane.b32.xlu0 %v1272, 48
      %v3060 = vpop.permute.xlu0 %3059
      %3061 = vrot.lane.b32.xlu0 %v1275, 48
      %v3062 = vpop.permute.xlu0 %3061
      %3063 = vrot.lane.b32.xlu0 %v1278, 48
      %v3064 = vpop.permute.xlu0 %3063
      %3065 = vrot.lane.b32.xlu0 %v1281, 48
      %v3066 = vpop.permute.xlu0 %3065
      %3067 = vrot.lane.b32.xlu0 %v1284, 48
      %v3068 = vpop.permute.xlu0 %3067
      %3069 = vrot.lane.b32.xlu0 %v1287, 48
      %v3070 = vpop.permute.xlu0 %3069
      %3071 = vrot.lane.b32.xlu0 %v1290, 48
      %v3072 = vpop.permute.xlu0 %3071
      %3073 = vrot.lane.b32.xlu0 %v1293, 48
      %v3074 = vpop.permute.xlu0 %3073
      %3075 = vrot.lane.b32.xlu0 %v1296, 48
      %v3076 = vpop.permute.xlu0 %3075
      %3077 = vrot.lane.b32.xlu0 %v1299, 48
      %v3078 = vpop.permute.xlu0 %3077
      %3079 = vrot.lane.b32.xlu0 %v1302, 48
      %v3080 = vpop.permute.xlu0 %3079
      %3081 = vrot.lane.b32.xlu0 %v1305, 48
      %v3082 = vpop.permute.xlu0 %3081
      %3083 = vrot.lane.b32.xlu0 %v1308, 48
      %v3084 = vpop.permute.xlu0 %3083
      %3085 = vrot.lane.b32.xlu0 %v1311, 48
      %v3086 = vpop.permute.xlu0 %3085
      %3087 = vrot.lane.b32.xlu0 %v1314, 48
      %v3088 = vpop.permute.xlu0 %3087
      %3089 = vrot.lane.b32.xlu0 %v1317, 48
      %v3090 = vpop.permute.xlu0 %3089
      %3091 = vrot.lane.b32.xlu0 %v1320, 48
      %v3092 = vpop.permute.xlu0 %3091
      %3093 = vrot.lane.b32.xlu0 %v1323, 48
      %v3094 = vpop.permute.xlu0 %3093
      %3095 = vrot.lane.b32.xlu0 %v1326, 48
      %v3096 = vpop.permute.xlu0 %3095
      %3097 = vrot.lane.b32.xlu0 %v1329, 48
      %v3098 = vpop.permute.xlu0 %3097
      %3099 = vrot.lane.b32.xlu0 %v1332, 48
      %v3100 = vpop.permute.xlu0 %3099
      %3101 = vrot.lane.b32.xlu0 %v1335, 48
      %v3102 = vpop.permute.xlu0 %3101
      %3103 = vrot.lane.b32.xlu0 %v1338, 48
      %v3104 = vpop.permute.xlu0 %3103
      %v3137 = vadd.f32 %v3009, %v3042
      %v3138 = vadd.f32 %v3010, %v3044
      %v3139 = vadd.f32 %v3011, %v3046
      %v3140 = vadd.f32 %v3012, %v3048
      %v3141 = vadd.f32 %v3013, %v3050
      %v3142 = vadd.f32 %v3014, %v3052
      %v3143 = vadd.f32 %v3015, %v3054
      %v3144 = vadd.f32 %v3016, %v3056
      %v3145 = vadd.f32 %v3017, %v3058
      %v3146 = vadd.f32 %v3018, %v3060
      %v3147 = vadd.f32 %v3019, %v3062
      %v3148 = vadd.f32 %v3020, %v3064
      %v3149 = vadd.f32 %v3021, %v3066
      %v3150 = vadd.f32 %v3022, %v3068
      %v3151 = vadd.f32 %v3023, %v3070
      %v3152 = vadd.f32 %v3024, %v3072
      %v3153 = vadd.f32 %v3025, %v3074
      %v3154 = vadd.f32 %v3026, %v3076
      %v3155 = vadd.f32 %v3027, %v3078
      %v3156 = vadd.f32 %v3028, %v3080
      %v3157 = vadd.f32 %v3029, %v3082
      %v3158 = vadd.f32 %v3030, %v3084
      %v3159 = vadd.f32 %v3031, %v3086
      %v3160 = vadd.f32 %v3032, %v3088
      %v3161 = vadd.f32 %v3033, %v3090
      %v3162 = vadd.f32 %v3034, %v3092
      %v3163 = vadd.f32 %v3035, %v3094
      %v3164 = vadd.f32 %v3036, %v3096
      %v3165 = vadd.f32 %v3037, %v3098
      %v3166 = vadd.f32 %v3038, %v3100
      %v3167 = vadd.f32 %v3039, %v3102
      %v3168 = vadd.f32 %v3040, %v3104
      %3170 = vrot.lane.b32.xlu0 %v1251, 40
      %v3171 = vpop.permute.xlu0 %3170
      %3172 = vrot.lane.b32.xlu0 %v1254, 40
      %v3173 = vpop.permute.xlu0 %3172
      %3174 = vrot.lane.b32.xlu0 %v1257, 40
      %v3175 = vpop.permute.xlu0 %3174
      %3176 = vrot.lane.b32.xlu0 %v1260, 40
      %v3177 = vpop.permute.xlu0 %3176
      %3178 = vrot.lane.b32.xlu0 %v1263, 40
      %v3179 = vpop.permute.xlu0 %3178
      %3180 = vrot.lane.b32.xlu0 %v1266, 40
      %v3181 = vpop.permute.xlu0 %3180
      %3182 = vrot.lane.b32.xlu0 %v1269, 40
      %v3183 = vpop.permute.xlu0 %3182
      %3184 = vrot.lane.b32.xlu0 %v1272, 40
      %v3185 = vpop.permute.xlu0 %3184
      %3186 = vrot.lane.b32.xlu0 %v1275, 40
      %v3187 = vpop.permute.xlu0 %3186
      %3188 = vrot.lane.b32.xlu0 %v1278, 40
      %v3189 = vpop.permute.xlu0 %3188
      %3190 = vrot.lane.b32.xlu0 %v1281, 40
      %v3191 = vpop.permute.xlu0 %3190
      %3192 = vrot.lane.b32.xlu0 %v1284, 40
      %v3193 = vpop.permute.xlu0 %3192
      %3194 = vrot.lane.b32.xlu0 %v1287, 40
      %v3195 = vpop.permute.xlu0 %3194
      %3196 = vrot.lane.b32.xlu0 %v1290, 40
      %v3197 = vpop.permute.xlu0 %3196
      %3198 = vrot.lane.b32.xlu0 %v1293, 40
      %v3199 = vpop.permute.xlu0 %3198
      %3200 = vrot.lane.b32.xlu0 %v1296, 40
      %v3201 = vpop.permute.xlu0 %3200
      %3202 = vrot.lane.b32.xlu0 %v1299, 40
      %v3203 = vpop.permute.xlu0 %3202
      %3204 = vrot.lane.b32.xlu0 %v1302, 40
      %v3205 = vpop.permute.xlu0 %3204
      %3206 = vrot.lane.b32.xlu0 %v1305, 40
      %v3207 = vpop.permute.xlu0 %3206
      %3208 = vrot.lane.b32.xlu0 %v1308, 40
      %v3209 = vpop.permute.xlu0 %3208
      %3210 = vrot.lane.b32.xlu0 %v1311, 40
      %v3211 = vpop.permute.xlu0 %3210
      %3212 = vrot.lane.b32.xlu0 %v1314, 40
      %v3213 = vpop.permute.xlu0 %3212
      %3214 = vrot.lane.b32.xlu0 %v1317, 40
      %v3215 = vpop.permute.xlu0 %3214
      %3216 = vrot.lane.b32.xlu0 %v1320, 40
      %v3217 = vpop.permute.xlu0 %3216
      %3218 = vrot.lane.b32.xlu0 %v1323, 40
      %v3219 = vpop.permute.xlu0 %3218
      %3220 = vrot.lane.b32.xlu0 %v1326, 40
      %v3221 = vpop.permute.xlu0 %3220
      %3222 = vrot.lane.b32.xlu0 %v1329, 40
      %v3223 = vpop.permute.xlu0 %3222
      %3224 = vrot.lane.b32.xlu0 %v1332, 40
      %v3225 = vpop.permute.xlu0 %3224
      %3226 = vrot.lane.b32.xlu0 %v1335, 40
      %v3227 = vpop.permute.xlu0 %3226
      %3228 = vrot.lane.b32.xlu0 %v1338, 40
      %v3229 = vpop.permute.xlu0 %3228
      %3230 = vrot.lane.b32.xlu0 0.0, 40
      %v3231 = vpop.permute.xlu0 %3230
      %v3263 = vadd.f32 %v3137, %v3171
      %v3264 = vadd.f32 %v3138, %v3173
      %v3265 = vadd.f32 %v3139, %v3175
      %v3266 = vadd.f32 %v3140, %v3177
      %v3267 = vadd.f32 %v3141, %v3179
      %v3268 = vadd.f32 %v3142, %v3181
      %v3269 = vadd.f32 %v3143, %v3183
      %v3270 = vadd.f32 %v3144, %v3185
      %v3271 = vadd.f32 %v3145, %v3187
      %v3272 = vadd.f32 %v3146, %v3189
      %v3273 = vadd.f32 %v3147, %v3191
      %v3274 = vadd.f32 %v3148, %v3193
      %v3275 = vadd.f32 %v3149, %v3195
      %v3276 = vadd.f32 %v3150, %v3197
      %v3277 = vadd.f32 %v3151, %v3199
      %v3278 = vadd.f32 %v3152, %v3201
      %v3279 = vadd.f32 %v3153, %v3203
      %v3280 = vadd.f32 %v3154, %v3205
      %v3281 = vadd.f32 %v3155, %v3207
      %v3282 = vadd.f32 %v3156, %v3209
      %v3283 = vadd.f32 %v3157, %v3211
      %v3284 = vadd.f32 %v3158, %v3213
      %v3285 = vadd.f32 %v3159, %v3215
      %v3286 = vadd.f32 %v3160, %v3217
      %v3287 = vadd.f32 %v3161, %v3219
      %v3288 = vadd.f32 %v3162, %v3221
      %v3289 = vadd.f32 %v3163, %v3223
      %v3290 = vadd.f32 %v3164, %v3225
      %v3291 = vadd.f32 %v3165, %v3227
      %v3292 = vadd.f32 %v3166, %v3229
      %v3293 = vadd.f32 %v3167, %v3231
      %v3294 = vadd.f32 %v3168, %v3231
      %3295 = vrot.lane.b32.xlu0 %v1257, 32
      %v3296 = vpop.permute.xlu0 %3295
      %3297 = vrot.lane.b32.xlu0 %v1260, 32
      %v3298 = vpop.permute.xlu0 %3297
      %3299 = vrot.lane.b32.xlu0 %v1263, 32
      %v3300 = vpop.permute.xlu0 %3299
      %3301 = vrot.lane.b32.xlu0 %v1266, 32
      %v3302 = vpop.permute.xlu0 %3301
      %3303 = vrot.lane.b32.xlu0 %v1269, 32
      %v3304 = vpop.permute.xlu0 %3303
      %3305 = vrot.lane.b32.xlu0 %v1272, 32
      %v3306 = vpop.permute.xlu0 %3305
      %3307 = vrot.lane.b32.xlu0 %v1275, 32
      %v3308 = vpop.permute.xlu0 %3307
      %3309 = vrot.lane.b32.xlu0 %v1278, 32
      %v3310 = vpop.permute.xlu0 %3309
      %3311 = vrot.lane.b32.xlu0 %v1281, 32
      %v3312 = vpop.permute.xlu0 %3311
      %3313 = vrot.lane.b32.xlu0 %v1284, 32
      %v3314 = vpop.permute.xlu0 %3313
      %3315 = vrot.lane.b32.xlu0 %v1287, 32
      %v3316 = vpop.permute.xlu0 %3315
      %3317 = vrot.lane.b32.xlu0 %v1290, 32
      %v3318 = vpop.permute.xlu0 %3317
      %3319 = vrot.lane.b32.xlu0 %v1293, 32
      %v3320 = vpop.permute.xlu0 %3319
      %3321 = vrot.lane.b32.xlu0 %v1296, 32
      %v3322 = vpop.permute.xlu0 %3321
      %3323 = vrot.lane.b32.xlu0 %v1299, 32
      %v3324 = vpop.permute.xlu0 %3323
      %3325 = vrot.lane.b32.xlu0 %v1302, 32
      %v3326 = vpop.permute.xlu0 %3325
      %3327 = vrot.lane.b32.xlu0 %v1305, 32
      %v3328 = vpop.permute.xlu0 %3327
      %3329 = vrot.lane.b32.xlu0 %v1308, 32
      %v3330 = vpop.permute.xlu0 %3329
      %3331 = vrot.lane.b32.xlu0 %v1311, 32
      %v3332 = vpop.permute.xlu0 %3331
      %3333 = vrot.lane.b32.xlu0 %v1314, 32
      %v3334 = vpop.permute.xlu0 %3333
      %3335 = vrot.lane.b32.xlu0 %v1317, 32
      %v3336 = vpop.permute.xlu0 %3335
      %3337 = vrot.lane.b32.xlu0 %v1320, 32
      %v3338 = vpop.permute.xlu0 %3337
      %3339 = vrot.lane.b32.xlu0 %v1323, 32
      %v3340 = vpop.permute.xlu0 %3339
      %3341 = vrot.lane.b32.xlu0 %v1326, 32
      %v3342 = vpop.permute.xlu0 %3341
      %3343 = vrot.lane.b32.xlu0 %v1329, 32
      %v3344 = vpop.permute.xlu0 %3343
      %3345 = vrot.lane.b32.xlu0 %v1332, 32
      %v3346 = vpop.permute.xlu0 %3345
      %3347 = vrot.lane.b32.xlu0 %v1335, 32
      %v3348 = vpop.permute.xlu0 %3347
      %3349 = vrot.lane.b32.xlu0 %v1338, 32
      %v3350 = vpop.permute.xlu0 %3349
      %3351 = vrot.lane.b32.xlu0 0.0, 32
      %v3352 = vpop.permute.xlu0 %3351
      %v3382 = vadd.f32 %v3263, %v3296
      %v3383 = vadd.f32 %v3264, %v3298
      %v3384 = vadd.f32 %v3265, %v3300
      %v3385 = vadd.f32 %v3266, %v3302
      %v3386 = vadd.f32 %v3267, %v3304
      %v3387 = vadd.f32 %v3268, %v3306
      %v3388 = vadd.f32 %v3269, %v3308
      %v3389 = vadd.f32 %v3270, %v3310
      %v3390 = vadd.f32 %v3271, %v3312
      %v3391 = vadd.f32 %v3272, %v3314
      %v3392 = vadd.f32 %v3273, %v3316
      %v3393 = vadd.f32 %v3274, %v3318
      %v3394 = vadd.f32 %v3275, %v3320
      %v3395 = vadd.f32 %v3276, %v3322
      %v3396 = vadd.f32 %v3277, %v3324
      %v3397 = vadd.f32 %v3278, %v3326
      %v3398 = vadd.f32 %v3279, %v3328
      %v3399 = vadd.f32 %v3280, %v3330
      %v3400 = vadd.f32 %v3281, %v3332
      %v3401 = vadd.f32 %v3282, %v3334
      %v3402 = vadd.f32 %v3283, %v3336
      %v3403 = vadd.f32 %v3284, %v3338
      %v3404 = vadd.f32 %v3285, %v3340
      %v3405 = vadd.f32 %v3286, %v3342
      %v3406 = vadd.f32 %v3287, %v3344
      %v3407 = vadd.f32 %v3288, %v3346
      %v3408 = vadd.f32 %v3289, %v3348
      %v3409 = vadd.f32 %v3290, %v3350
      %v3410 = vadd.f32 %v3291, %v3352
      %v3411 = vadd.f32 %v3292, %v3352
      %v3412 = vadd.f32 %v3293, %v3352
      %v3413 = vadd.f32 %v3294, %v3352
      %3414 = vrot.lane.b32.xlu0 %v1263, 24
      %v3415 = vpop.permute.xlu0 %3414
      %3416 = vrot.lane.b32.xlu0 %v1266, 24
      %v3417 = vpop.permute.xlu0 %3416
      %3418 = vrot.lane.b32.xlu0 %v1269, 24
      %v3419 = vpop.permute.xlu0 %3418
      %3420 = vrot.lane.b32.xlu0 %v1272, 24
      %v3421 = vpop.permute.xlu0 %3420
      %3422 = vrot.lane.b32.xlu0 %v1275, 24
      %v3423 = vpop.permute.xlu0 %3422
      %3424 = vrot.lane.b32.xlu0 %v1278, 24
      %v3425 = vpop.permute.xlu0 %3424
      %3426 = vrot.lane.b32.xlu0 %v1281, 24
      %v3427 = vpop.permute.xlu0 %3426
      %3428 = vrot.lane.b32.xlu0 %v1284, 24
      %v3429 = vpop.permute.xlu0 %3428
      %3430 = vrot.lane.b32.xlu0 %v1287, 24
      %v3431 = vpop.permute.xlu0 %3430
      %3432 = vrot.lane.b32.xlu0 %v1290, 24
      %v3433 = vpop.permute.xlu0 %3432
      %3434 = vrot.lane.b32.xlu0 %v1293, 24
      %v3435 = vpop.permute.xlu0 %3434
      %3436 = vrot.lane.b32.xlu0 %v1296, 24
      %v3437 = vpop.permute.xlu0 %3436
      %3438 = vrot.lane.b32.xlu0 %v1299, 24
      %v3439 = vpop.permute.xlu0 %3438
      %3440 = vrot.lane.b32.xlu0 %v1302, 24
      %v3441 = vpop.permute.xlu0 %3440
      %3442 = vrot.lane.b32.xlu0 %v1305, 24
      %v3443 = vpop.permute.xlu0 %3442
      %3444 = vrot.lane.b32.xlu0 %v1308, 24
      %v3445 = vpop.permute.xlu0 %3444
      %3446 = vrot.lane.b32.xlu0 %v1311, 24
      %v3447 = vpop.permute.xlu0 %3446
      %3448 = vrot.lane.b32.xlu0 %v1314, 24
      %v3449 = vpop.permute.xlu0 %3448
      %3450 = vrot.lane.b32.xlu0 %v1317, 24
      %v3451 = vpop.permute.xlu0 %3450
      %3452 = vrot.lane.b32.xlu0 %v1320, 24
      %v3453 = vpop.permute.xlu0 %3452
      %3454 = vrot.lane.b32.xlu0 %v1323, 24
      %v3455 = vpop.permute.xlu0 %3454
      %3456 = vrot.lane.b32.xlu0 %v1326, 24
      %v3457 = vpop.permute.xlu0 %3456
      %3458 = vrot.lane.b32.xlu0 %v1329, 24
      %v3459 = vpop.permute.xlu0 %3458
      %3460 = vrot.lane.b32.xlu0 %v1332, 24
      %v3461 = vpop.permute.xlu0 %3460
      %3462 = vrot.lane.b32.xlu0 %v1335, 24
      %v3463 = vpop.permute.xlu0 %3462
      %3464 = vrot.lane.b32.xlu0 %v1338, 24
      %v3465 = vpop.permute.xlu0 %3464
      %3466 = vrot.lane.b32.xlu0 0.0, 24
      %v3467 = vpop.permute.xlu0 %3466
      %v3495 = vadd.f32 %v3382, %v3415
      %v3496 = vadd.f32 %v3383, %v3417
      %v3497 = vadd.f32 %v3384, %v3419
      %v3498 = vadd.f32 %v3385, %v3421
      %v3499 = vadd.f32 %v3386, %v3423
      %v3500 = vadd.f32 %v3387, %v3425
      %v3501 = vadd.f32 %v3388, %v3427
      %v3502 = vadd.f32 %v3389, %v3429
      %v3503 = vadd.f32 %v3390, %v3431
      %v3504 = vadd.f32 %v3391, %v3433
      %v3505 = vadd.f32 %v3392, %v3435
      %v3506 = vadd.f32 %v3393, %v3437
      %v3507 = vadd.f32 %v3394, %v3439
      %v3508 = vadd.f32 %v3395, %v3441
      %v3509 = vadd.f32 %v3396, %v3443
      %v3510 = vadd.f32 %v3397, %v3445
      %v3511 = vadd.f32 %v3398, %v3447
      %v3512 = vadd.f32 %v3399, %v3449
      %v3513 = vadd.f32 %v3400, %v3451
      %v3514 = vadd.f32 %v3401, %v3453
      %v3515 = vadd.f32 %v3402, %v3455
      %v3516 = vadd.f32 %v3403, %v3457
      %v3517 = vadd.f32 %v3404, %v3459
      %v3518 = vadd.f32 %v3405, %v3461
      %v3519 = vadd.f32 %v3406, %v3463
      %v3520 = vadd.f32 %v3407, %v3465
      %v3521 = vadd.f32 %v3408, %v3467
      %v3522 = vadd.f32 %v3409, %v3467
      %v3523 = vadd.f32 %v3410, %v3467
      %v3524 = vadd.f32 %v3411, %v3467
      %v3525 = vadd.f32 %v3412, %v3467
      %v3526 = vadd.f32 %v3413, %v3467
      %v3527 = vrot.slane %v3499, 4
      %vm3528 = vcmask 1047556
      %v3529 = vsel %vm3528, %v3527, %v3495
      %v3530 = vrot.slane %v3495, 4
      %v3531 = vsel %vm3528, %v3499, %v3530
      %v3533 = vunpack.c.l.s4 1983009808
      %v3534 = vunpack.c.0.s8 %v3533
      %v3535 = vperm.slane %v3529, %v3534
      %v3537 = vunpack.c.l.s4 1983009808
      %v3538 = vunpack.c.0.s8 %v3537
      %v3539 = vperm.slane %v3531, %v3538
      %v3540 = vrot.slane %v3501, 4
      %v3541 = vsel %vm3528, %v3540, %v3497
      %v3542 = vrot.slane %v3497, 4
      %v3543 = vsel %vm3528, %v3501, %v3542
      %v3545 = vunpack.c.l.s4 1983009808
      %v3546 = vunpack.c.0.s8 %v3545
      %v3547 = vperm.slane %v3541, %v3546
      %v3549 = vunpack.c.l.s4 1983009808
      %v3550 = vunpack.c.0.s8 %v3549
      %v3551 = vperm.slane %v3543, %v3550
      %v3552 = vrot.slane %v3507, 4
      %v3553 = vsel %vm3528, %v3552, %v3503
      %v3554 = vrot.slane %v3503, 4
      %v3555 = vsel %vm3528, %v3507, %v3554
      %v3557 = vunpack.c.l.s4 1983009808
      %v3558 = vunpack.c.0.s8 %v3557
      %v3559 = vperm.slane %v3553, %v3558
      %v3561 = vunpack.c.l.s4 1983009808
      %v3562 = vunpack.c.0.s8 %v3561
      %v3563 = vperm.slane %v3555, %v3562
      %v3564 = vrot.slane %v3509, 4
      %v3565 = vsel %vm3528, %v3564, %v3505
      %v3566 = vrot.slane %v3505, 4
      %v3567 = vsel %vm3528, %v3509, %v3566
      %v3569 = vunpack.c.l.s4 1983009808
      %v3570 = vunpack.c.0.s8 %v3569
      %v3571 = vperm.slane %v3565, %v3570
      %v3573 = vunpack.c.l.s4 1983009808
      %v3574 = vunpack.c.0.s8 %v3573
      %v3575 = vperm.slane %v3567, %v3574
      %v3576 = vrot.slane %v3547, 4
      %v3577 = vsel %vm3528, %v3576, %v3535
      %v3578 = vrot.slane %v3535, 4
      %v3579 = vsel %vm3528, %v3547, %v3578
      %v3581 = vunpack.c.l.s4 1934713408
      %v3582 = vunpack.c.0.s8 %v3581
      %v3583 = vperm.slane %v3577, %v3582
      %v3585 = vunpack.c.l.s4 1934713408
      %v3586 = vunpack.c.0.s8 %v3585
      %v3587 = vperm.slane %v3579, %v3586
      %v3588 = vrot.slane %v3551, 4
      %v3589 = vsel %vm3528, %v3588, %v3539
      %v3590 = vrot.slane %v3539, 4
      %v3591 = vsel %vm3528, %v3551, %v3590
      %v3593 = vunpack.c.l.s4 1934713408
      %v3594 = vunpack.c.0.s8 %v3593
      %v3595 = vperm.slane %v3589, %v3594
      %v3597 = vunpack.c.l.s4 1934713408
      %v3598 = vunpack.c.0.s8 %v3597
      %v3599 = vperm.slane %v3591, %v3598
      %v3600 = vrot.slane %v3571, 4
      %v3601 = vsel %vm3528, %v3600, %v3559
      %v3602 = vrot.slane %v3559, 4
      %v3603 = vsel %vm3528, %v3571, %v3602
      %v3605 = vunpack.c.l.s4 1934713408
      %v3606 = vunpack.c.0.s8 %v3605
      %v3607 = vperm.slane %v3601, %v3606
      %v3609 = vunpack.c.l.s4 1934713408
      %v3610 = vunpack.c.0.s8 %v3609
      %v3611 = vperm.slane %v3603, %v3610
      %v3612 = vrot.slane %v3575, 4
      %v3613 = vsel %vm3528, %v3612, %v3563
      %v3614 = vrot.slane %v3563, 4
      %v3615 = vsel %vm3528, %v3575, %v3614
      %v3617 = vunpack.c.l.s4 1934713408
      %v3618 = vunpack.c.0.s8 %v3617
      %v3619 = vperm.slane %v3613, %v3618
      %v3621 = vunpack.c.l.s4 1934713408
      %v3622 = vunpack.c.0.s8 %v3621
      %v3623 = vperm.slane %v3615, %v3622
      %v3624 = vrot.slane %v3607, 4
      %v3625 = vsel %vm3528, %v3624, %v3583
      %v3626 = vrot.slane %v3583, 4
      %v3627 = vsel %vm3528, %v3607, %v3626
      %v3628 = vrot.slane %v3611, 4
      %v3629 = vsel %vm3528, %v3628, %v3587
      %v3630 = vrot.slane %v3587, 4
      %v3631 = vsel %vm3528, %v3611, %v3630
      %v3632 = vrot.slane %v3619, 4
      %v3633 = vsel %vm3528, %v3632, %v3595
      %v3634 = vrot.slane %v3595, 4
      %v3635 = vsel %vm3528, %v3619, %v3634
      %v3636 = vrot.slane %v3623, 4
      %v3637 = vsel %vm3528, %v3636, %v3599
      %v3638 = vrot.slane %v3599, 4
      %v3639 = vsel %vm3528, %v3623, %v3638
      %v3640 = vrot.slane %v3515, 4
      %v3641 = vsel %vm3528, %v3640, %v3511
      %v3642 = vrot.slane %v3511, 4
      %v3643 = vsel %vm3528, %v3515, %v3642
      %v3645 = vunpack.c.l.s4 1983009808
      %v3646 = vunpack.c.0.s8 %v3645
      %v3647 = vperm.slane %v3641, %v3646
      %v3649 = vunpack.c.l.s4 1983009808
      %v3650 = vunpack.c.0.s8 %v3649
      %v3651 = vperm.slane %v3643, %v3650
      %v3652 = vrot.slane %v3517, 4
      %v3653 = vsel %vm3528, %v3652, %v3513
      %v3654 = vrot.slane %v3513, 4
      %v3655 = vsel %vm3528, %v3517, %v3654
      %v3657 = vunpack.c.l.s4 1983009808
      %v3658 = vunpack.c.0.s8 %v3657
      %v3659 = vperm.slane %v3653, %v3658
      %v3661 = vunpack.c.l.s4 1983009808
      %v3662 = vunpack.c.0.s8 %v3661
      %v3663 = vperm.slane %v3655, %v3662
      %v3664 = vrot.slane %v3523, 4
      %v3665 = vsel %vm3528, %v3664, %v3519
      %v3666 = vrot.slane %v3519, 4
      %v3667 = vsel %vm3528, %v3523, %v3666
      %v3669 = vunpack.c.l.s4 1983009808
      %v3670 = vunpack.c.0.s8 %v3669
      %v3671 = vperm.slane %v3665, %v3670
      %v3673 = vunpack.c.l.s4 1983009808
      %v3674 = vunpack.c.0.s8 %v3673
      %v3675 = vperm.slane %v3667, %v3674
      %v3676 = vrot.slane %v3525, 4
      %v3677 = vsel %vm3528, %v3676, %v3521
      %v3678 = vrot.slane %v3521, 4
      %v3679 = vsel %vm3528, %v3525, %v3678
      %v3681 = vunpack.c.l.s4 1983009808
      %v3682 = vunpack.c.0.s8 %v3681
      %v3683 = vperm.slane %v3677, %v3682
      %v3685 = vunpack.c.l.s4 1983009808
      %v3686 = vunpack.c.0.s8 %v3685
      %v3687 = vperm.slane %v3679, %v3686
      %v3688 = vrot.slane %v3659, 4
      %v3689 = vsel %vm3528, %v3688, %v3647
      %v3690 = vrot.slane %v3647, 4
      %v3691 = vsel %vm3528, %v3659, %v3690
      %v3693 = vunpack.c.l.s4 1934713408
      %v3694 = vunpack.c.0.s8 %v3693
      %v3695 = vperm.slane %v3689, %v3694
      %v3697 = vunpack.c.l.s4 1934713408
      %v3698 = vunpack.c.0.s8 %v3697
      %v3699 = vperm.slane %v3691, %v3698
      %v3700 = vrot.slane %v3663, 4
      %v3701 = vsel %vm3528, %v3700, %v3651
      %v3702 = vrot.slane %v3651, 4
      %v3703 = vsel %vm3528, %v3663, %v3702
      %v3705 = vunpack.c.l.s4 1934713408
      %v3706 = vunpack.c.0.s8 %v3705
      %v3707 = vperm.slane %v3701, %v3706
      %v3709 = vunpack.c.l.s4 1934713408
      %v3710 = vunpack.c.0.s8 %v3709
      %v3711 = vperm.slane %v3703, %v3710
      %v3712 = vrot.slane %v3683, 4
      %v3713 = vsel %vm3528, %v3712, %v3671
      %v3714 = vrot.slane %v3671, 4
      %v3715 = vsel %vm3528, %v3683, %v3714
      %v3717 = vunpack.c.l.s4 1934713408
      %v3718 = vunpack.c.0.s8 %v3717
      %v3719 = vperm.slane %v3713, %v3718
      %v3721 = vunpack.c.l.s4 1934713408
      %v3722 = vunpack.c.0.s8 %v3721
      %v3723 = vperm.slane %v3715, %v3722
      %v3724 = vrot.slane %v3687, 4
      %v3725 = vsel %vm3528, %v3724, %v3675
      %v3726 = vrot.slane %v3675, 4
      %v3727 = vsel %vm3528, %v3687, %v3726
      %v3729 = vunpack.c.l.s4 1934713408
      %v3730 = vunpack.c.0.s8 %v3729
      %v3731 = vperm.slane %v3725, %v3730
      %v3733 = vunpack.c.l.s4 1934713408
      %v3734 = vunpack.c.0.s8 %v3733
      %v3735 = vperm.slane %v3727, %v3734
      %v3736 = vrot.slane %v3719, 4
      %v3737 = vsel %vm3528, %v3736, %v3695
      %v3738 = vrot.slane %v3695, 4
      %v3739 = vsel %vm3528, %v3719, %v3738
      %v3740 = vrot.slane %v3723, 4
      %v3741 = vsel %vm3528, %v3740, %v3699
      %v3742 = vrot.slane %v3699, 4
      %v3743 = vsel %vm3528, %v3723, %v3742
      %v3744 = vrot.slane %v3731, 4
      %v3745 = vsel %vm3528, %v3744, %v3707
      %v3746 = vrot.slane %v3707, 4
      %v3747 = vsel %vm3528, %v3731, %v3746
      %v3748 = vrot.slane %v3735, 4
      %v3749 = vsel %vm3528, %v3748, %v3711
      %v3750 = vrot.slane %v3711, 4
      %v3751 = vsel %vm3528, %v3735, %v3750
      %v3752 = vrot.slane %v3500, 4
      %v3753 = vsel %vm3528, %v3752, %v3496
      %v3754 = vrot.slane %v3496, 4
      %v3755 = vsel %vm3528, %v3500, %v3754
      %v3757 = vunpack.c.l.s4 1983009808
      %v3758 = vunpack.c.0.s8 %v3757
      %v3759 = vperm.slane %v3753, %v3758
      %v3761 = vunpack.c.l.s4 1983009808
      %v3762 = vunpack.c.0.s8 %v3761
      %v3763 = vperm.slane %v3755, %v3762
      %v3764 = vrot.slane %v3502, 4
      %v3765 = vsel %vm3528, %v3764, %v3498
      %v3766 = vrot.slane %v3498, 4
      %v3767 = vsel %vm3528, %v3502, %v3766
      %v3769 = vunpack.c.l.s4 1983009808
      %v3770 = vunpack.c.0.s8 %v3769
      %v3771 = vperm.slane %v3765, %v3770
      %v3773 = vunpack.c.l.s4 1983009808
      %v3774 = vunpack.c.0.s8 %v3773
      %v3775 = vperm.slane %v3767, %v3774
      %v3776 = vrot.slane %v3508, 4
      %v3777 = vsel %vm3528, %v3776, %v3504
      %v3778 = vrot.slane %v3504, 4
      %v3779 = vsel %vm3528, %v3508, %v3778
      %v3781 = vunpack.c.l.s4 1983009808
      %v3782 = vunpack.c.0.s8 %v3781
      %v3783 = vperm.slane %v3777, %v3782
      %v3785 = vunpack.c.l.s4 1983009808
      %v3786 = vunpack.c.0.s8 %v3785
      %v3787 = vperm.slane %v3779, %v3786
      %v3788 = vrot.slane %v3510, 4
      %v3789 = vsel %vm3528, %v3788, %v3506
      %v3790 = vrot.slane %v3506, 4
      %v3791 = vsel %vm3528, %v3510, %v3790
      %v3793 = vunpack.c.l.s4 1983009808
      %v3794 = vunpack.c.0.s8 %v3793
      %v3795 = vperm.slane %v3789, %v3794
      %v3797 = vunpack.c.l.s4 1983009808
      %v3798 = vunpack.c.0.s8 %v3797
      %v3799 = vperm.slane %v3791, %v3798
      %v3800 = vrot.slane %v3771, 4
      %v3801 = vsel %vm3528, %v3800, %v3759
      %v3802 = vrot.slane %v3759, 4
      %v3803 = vsel %vm3528, %v3771, %v3802
      %v3805 = vunpack.c.l.s4 1934713408
      %v3806 = vunpack.c.0.s8 %v3805
      %v3807 = vperm.slane %v3801, %v3806
      %v3809 = vunpack.c.l.s4 1934713408
      %v3810 = vunpack.c.0.s8 %v3809
      %v3811 = vperm.slane %v3803, %v3810
      %v3812 = vrot.slane %v3775, 4
      %v3813 = vsel %vm3528, %v3812, %v3763
      %v3814 = vrot.slane %v3763, 4
      %v3815 = vsel %vm3528, %v3775, %v3814
      %v3817 = vunpack.c.l.s4 1934713408
      %v3818 = vunpack.c.0.s8 %v3817
      %v3819 = vperm.slane %v3813, %v3818
      %v3821 = vunpack.c.l.s4 1934713408
      %v3822 = vunpack.c.0.s8 %v3821
      %v3823 = vperm.slane %v3815, %v3822
      %v3824 = vrot.slane %v3795, 4
      %v3825 = vsel %vm3528, %v3824, %v3783
      %v3826 = vrot.slane %v3783, 4
      %v3827 = vsel %vm3528, %v3795, %v3826
      %v3829 = vunpack.c.l.s4 1934713408
      %v3830 = vunpack.c.0.s8 %v3829
      %v3831 = vperm.slane %v3825, %v3830
      %v3833 = vunpack.c.l.s4 1934713408
      %v3834 = vunpack.c.0.s8 %v3833
      %v3835 = vperm.slane %v3827, %v3834
      %v3836 = vrot.slane %v3799, 4
      %v3837 = vsel %vm3528, %v3836, %v3787
      %v3838 = vrot.slane %v3787, 4
      %v3839 = vsel %vm3528, %v3799, %v3838
      %v3841 = vunpack.c.l.s4 1934713408
      %v3842 = vunpack.c.0.s8 %v3841
      %v3843 = vperm.slane %v3837, %v3842
      %v3845 = vunpack.c.l.s4 1934713408
      %v3846 = vunpack.c.0.s8 %v3845
      %v3847 = vperm.slane %v3839, %v3846
      %v3848 = vrot.slane %v3831, 4
      %v3849 = vsel %vm3528, %v3848, %v3807
      %v3850 = vrot.slane %v3807, 4
      %v3851 = vsel %vm3528, %v3831, %v3850
      %v3852 = vrot.slane %v3835, 4
      %v3853 = vsel %vm3528, %v3852, %v3811
      %v3854 = vrot.slane %v3811, 4
      %v3855 = vsel %vm3528, %v3835, %v3854
      %v3856 = vrot.slane %v3843, 4
      %v3857 = vsel %vm3528, %v3856, %v3819
      %v3858 = vrot.slane %v3819, 4
      %v3859 = vsel %vm3528, %v3843, %v3858
      %v3860 = vrot.slane %v3847, 4
      %v3861 = vsel %vm3528, %v3860, %v3823
      %v3862 = vrot.slane %v3823, 4
      %v3863 = vsel %vm3528, %v3847, %v3862
      %v3864 = vrot.slane %v3516, 4
      %v3865 = vsel %vm3528, %v3864, %v3512
      %v3866 = vrot.slane %v3512, 4
      %v3867 = vsel %vm3528, %v3516, %v3866
      %v3869 = vunpack.c.l.s4 1983009808
      %v3870 = vunpack.c.0.s8 %v3869
      %v3871 = vperm.slane %v3865, %v3870
      %v3873 = vunpack.c.l.s4 1983009808
      %v3874 = vunpack.c.0.s8 %v3873
      %v3875 = vperm.slane %v3867, %v3874
      %v3876 = vrot.slane %v3518, 4
      %v3877 = vsel %vm3528, %v3876, %v3514
      %v3878 = vrot.slane %v3514, 4
      %v3879 = vsel %vm3528, %v3518, %v3878
      %v3881 = vunpack.c.l.s4 1983009808
      %v3882 = vunpack.c.0.s8 %v3881
      %v3883 = vperm.slane %v3877, %v3882
      %v3885 = vunpack.c.l.s4 1983009808
      %v3886 = vunpack.c.0.s8 %v3885
      %v3887 = vperm.slane %v3879, %v3886
      %v3888 = vrot.slane %v3524, 4
      %v3889 = vsel %vm3528, %v3888, %v3520
      %v3890 = vrot.slane %v3520, 4
      %v3891 = vsel %vm3528, %v3524, %v3890
      %v3893 = vunpack.c.l.s4 1983009808
      %v3894 = vunpack.c.0.s8 %v3893
      %v3895 = vperm.slane %v3889, %v3894
      %v3897 = vunpack.c.l.s4 1983009808
      %v3898 = vunpack.c.0.s8 %v3897
      %v3899 = vperm.slane %v3891, %v3898
      %v3900 = vrot.slane %v3526, 4
      %v3901 = vsel %vm3528, %v3900, %v3522
      %v3902 = vrot.slane %v3522, 4
      %v3903 = vsel %vm3528, %v3526, %v3902
      %v3905 = vunpack.c.l.s4 1983009808
      %v3906 = vunpack.c.0.s8 %v3905
      %v3907 = vperm.slane %v3901, %v3906
      %v3909 = vunpack.c.l.s4 1983009808
      %v3910 = vunpack.c.0.s8 %v3909
      %v3911 = vperm.slane %v3903, %v3910
      %v3912 = vrot.slane %v3883, 4
      %v3913 = vsel %vm3528, %v3912, %v3871
      %v3914 = vrot.slane %v3871, 4
      %v3915 = vsel %vm3528, %v3883, %v3914
      %v3917 = vunpack.c.l.s4 1934713408
      %v3918 = vunpack.c.0.s8 %v3917
      %v3919 = vperm.slane %v3913, %v3918
      %v3921 = vunpack.c.l.s4 1934713408
      %v3922 = vunpack.c.0.s8 %v3921
      %v3923 = vperm.slane %v3915, %v3922
      %v3924 = vrot.slane %v3887, 4
      %v3925 = vsel %vm3528, %v3924, %v3875
      %v3926 = vrot.slane %v3875, 4
      %v3927 = vsel %vm3528, %v3887, %v3926
      %v3929 = vunpack.c.l.s4 1934713408
      %v3930 = vunpack.c.0.s8 %v3929
      %v3931 = vperm.slane %v3925, %v3930
      %v3933 = vunpack.c.l.s4 1934713408
      %v3934 = vunpack.c.0.s8 %v3933
      %v3935 = vperm.slane %v3927, %v3934
      %v3936 = vrot.slane %v3907, 4
      %v3937 = vsel %vm3528, %v3936, %v3895
      %v3938 = vrot.slane %v3895, 4
      %v3939 = vsel %vm3528, %v3907, %v3938
      %v3941 = vunpack.c.l.s4 1934713408
      %v3942 = vunpack.c.0.s8 %v3941
      %v3943 = vperm.slane %v3937, %v3942
      %v3945 = vunpack.c.l.s4 1934713408
      %v3946 = vunpack.c.0.s8 %v3945
      %v3947 = vperm.slane %v3939, %v3946
      %v3948 = vrot.slane %v3911, 4
      %v3949 = vsel %vm3528, %v3948, %v3899
      %v3950 = vrot.slane %v3899, 4
      %v3951 = vsel %vm3528, %v3911, %v3950
      %v3953 = vunpack.c.l.s4 1934713408
      %v3954 = vunpack.c.0.s8 %v3953
      %v3955 = vperm.slane %v3949, %v3954
      %v3957 = vunpack.c.l.s4 1934713408
      %v3958 = vunpack.c.0.s8 %v3957
      %v3959 = vperm.slane %v3951, %v3958
      %v3960 = vrot.slane %v3943, 4
      %v3961 = vsel %vm3528, %v3960, %v3919
      %v3962 = vrot.slane %v3919, 4
      %v3963 = vsel %vm3528, %v3943, %v3962
      %v3964 = vrot.slane %v3947, 4
      %v3965 = vsel %vm3528, %v3964, %v3923
      %v3966 = vrot.slane %v3923, 4
      %v3967 = vsel %vm3528, %v3947, %v3966
      %v3968 = vrot.slane %v3955, 4
      %v3969 = vsel %vm3528, %v3968, %v3931
      %v3970 = vrot.slane %v3931, 4
      %v3971 = vsel %vm3528, %v3955, %v3970
      %v3972 = vrot.slane %v3959, 4
      %v3973 = vsel %vm3528, %v3972, %v3935
      %v3974 = vrot.slane %v3935, 4
      %v3975 = vsel %vm3528, %v3959, %v3974
      %3978 = vrot.lane.b32.xlu0 %v3627, 8
      %v3979 = vpop.permute.xlu0 %3978
      %3980 = vrot.lane.b32.xlu0 %v3739, 8
      %v3981 = vpop.permute.xlu0 %3980
      %3986 = vrot.lane.b32.xlu0 %v3629, 16
      %v3987 = vpop.permute.xlu0 %3986
      %3988 = vrot.lane.b32.xlu0 %v3741, 16
      %v3989 = vpop.permute.xlu0 %3988
      %3994 = vrot.lane.b32.xlu0 %v3631, 24
      %v3995 = vpop.permute.xlu0 %3994
      %3996 = vrot.lane.b32.xlu0 %v3743, 24
      %v3997 = vpop.permute.xlu0 %3996
      %4002 = vrot.lane.b32.xlu0 %v3633, 32
      %v4003 = vpop.permute.xlu0 %4002
      %4004 = vrot.lane.b32.xlu0 %v3745, 32
      %v4005 = vpop.permute.xlu0 %4004
      %4010 = vrot.lane.b32.xlu0 %v3635, 40
      %v4011 = vpop.permute.xlu0 %4010
      %4012 = vrot.lane.b32.xlu0 %v3747, 40
      %v4013 = vpop.permute.xlu0 %4012
      %4018 = vrot.lane.b32.xlu0 %v3637, 48
      %v4019 = vpop.permute.xlu0 %4018
      %4020 = vrot.lane.b32.xlu0 %v3749, 48
      %v4021 = vpop.permute.xlu0 %4020
      %4026 = vrot.lane.b32.xlu0 %v3639, 56
      %v4027 = vpop.permute.xlu0 %4026
      %4028 = vrot.lane.b32.xlu0 %v3751, 56
      %v4029 = vpop.permute.xlu0 %4028
      %4034 = vrot.lane.b32.xlu0 %v3849, 64
      %v4035 = vpop.permute.xlu0 %4034
      %4036 = vrot.lane.b32.xlu0 %v3961, 64
      %v4037 = vpop.permute.xlu0 %4036
      %4042 = vrot.lane.b32.xlu0 %v3851, 72
      %v4043 = vpop.permute.xlu0 %4042
      %4044 = vrot.lane.b32.xlu0 %v3963, 72
      %v4045 = vpop.permute.xlu0 %4044
      %4050 = vrot.lane.b32.xlu0 %v3853, 80
      %v4051 = vpop.permute.xlu0 %4050
      %4052 = vrot.lane.b32.xlu0 %v3965, 80
      %v4053 = vpop.permute.xlu0 %4052
      %4058 = vrot.lane.b32.xlu0 %v3855, 88
      %v4059 = vpop.permute.xlu0 %4058
      %4060 = vrot.lane.b32.xlu0 %v3967, 88
      %v4061 = vpop.permute.xlu0 %4060
      %4066 = vrot.lane.b32.xlu0 %v3857, 96
      %v4067 = vpop.permute.xlu0 %4066
      %4068 = vrot.lane.b32.xlu0 %v3969, 96
      %v4069 = vpop.permute.xlu0 %4068
      %4074 = vrot.lane.b32.xlu0 %v3859, 104
      %v4075 = vpop.permute.xlu0 %4074
      %4076 = vrot.lane.b32.xlu0 %v3971, 104
      %v4077 = vpop.permute.xlu0 %4076
      %4082 = vrot.lane.b32.xlu0 %v3861, 112
      %v4083 = vpop.permute.xlu0 %4082
      %4084 = vrot.lane.b32.xlu0 %v3973, 112
      %v4085 = vpop.permute.xlu0 %4084
      %4090 = vrot.lane.b32.xlu0 %v3863, 120
      %v4091 = vpop.permute.xlu0 %4090
      %4092 = vrot.lane.b32.xlu0 %v3975, 120
      %v4093 = vpop.permute.xlu0 %4092
      %vm4096 = vcmask 64512
      %v4097 = vsel %vm4096, %v3625, %v3979
      %v4098 = vsel %vm4096, %v3737, %v3981
      %vm4099 = vcmask 130048
      %v4100 = vsel %vm4099, %v4097, %v3987
      %v4101 = vsel %vm4099, %v4098, %v3989
      %vm4102 = vcmask 195584
      %v4103 = vsel %vm4102, %v4100, %v3995
      %v4104 = vsel %vm4102, %v4101, %v3997
      %vm4105 = vcmask 261120
      %v4106 = vsel %vm4105, %v4103, %v4003
      %v4107 = vsel %vm4105, %v4104, %v4005
      %vm4108 = vcmask 326656
      %v4109 = vsel %vm4108, %v4106, %v4011
      %v4110 = vsel %vm4108, %v4107, %v4013
      %vm4111 = vcmask 392192
      %v4112 = vsel %vm4111, %v4109, %v4019
      %v4113 = vsel %vm4111, %v4110, %v4021
      %vm4114 = vcmask 457728
      %v4115 = vsel %vm4114, %v4112, %v4027
      %v4116 = vsel %vm4114, %v4113, %v4029
      %vm4117 = vcmask 523264
      %v4118 = vsel %vm4117, %v4115, %v4035
      %v4119 = vsel %vm4117, %v4116, %v4037
      %vm4120 = vcmask 588800
      %v4121 = vsel %vm4120, %v4118, %v4043
      %v4122 = vsel %vm4120, %v4119, %v4045
      %vm4123 = vcmask 654336
      %v4124 = vsel %vm4123, %v4121, %v4051
      %v4125 = vsel %vm4123, %v4122, %v4053
      %vm4126 = vcmask 719872
      %v4127 = vsel %vm4126, %v4124, %v4059
      %v4128 = vsel %vm4126, %v4125, %v4061
      %vm4129 = vcmask 785408
      %v4130 = vsel %vm4129, %v4127, %v4067
      %v4131 = vsel %vm4129, %v4128, %v4069
      %vm4132 = vcmask 850944
      %v4133 = vsel %vm4132, %v4130, %v4075
      %v4134 = vsel %vm4132, %v4131, %v4077
      %vm4135 = vcmask 916480
      %v4136 = vsel %vm4135, %v4133, %v4083
      %v4137 = vsel %vm4135, %v4134, %v4085
      %vm4138 = vcmask 982016
      %v4139 = vsel %vm4138, %v4136, %v4091
      %v4140 = vsel %vm4138, %v4137, %v4093
      %4141 = vst [vmem:[%s197] sm:$0xff] %v4139
      %4142 = vst [vmem:[%s197 + $0x8] sm:$0xff] %v4140
      %p4143 = scmp.lt.s32.totalorder %s15, 1
      %s4144 = scalar_select %p4143, %s15, 1
      %s4145 = smul.addr %s4144, 2
      %s4146 = smul.addr %s4145, 8
      %s4147 = scalar_lea.vmem %s4, %s4146
      // Predicated region
      $region37: #{gc_forward.1} parent=35 // pred_check
        %p4148 = pneg %p122
      $region38: #{gc_forward.1} parent=35 // pred_check_branch
        %4150 = sbr.rel (%p4148) target = $region40
      $region39: #{gc_forward.1} parent=35 // pred_region
        _
      $region40: #{gc_forward.1} parent=35 // pred_fallthru
        _
    $region36: #{gc_forward.1} parent=5 // pred_fallthru
      _
    %p4151 = scmp.le.s32.totalorder 2, %s10
    // Predicated region
    $region41: #{gc_forward.1} parent=5 // pred_check
      %p4152 = pneg %p4151
    $region42: #{gc_forward.1} parent=5 // pred_check_branch
      %4154 = sbr.rel (%p4152) target = $region44
    $region43: #{gc_forward.1} parent=5 // pred_region
      %s4155 = ssub.s32 %s10, 2
      // Predicated region
      $region45: #{gc_forward.1} parent=43 // pred_check
        %p4156 = pneg %p128
      $region46: #{gc_forward.1} parent=43 // pred_check_branch
        %4158 = sbr.rel (%p4156) target = $region48
      $region47: #{gc_forward.1} parent=43 // pred_region
        %p4159 = scmp.lt.s32.totalorder %s16, 1
        %s4160 = scalar_select %p4159, %s16, 1
        %s4161 = smul.addr %s4160, 2
        %s4162 = smul.addr %s4161, 8
        %s4163 = scalar_lea.vmem %s4, %s4162
      $region48: #{gc_forward.1} parent=43 // pred_fallthru
        _
    $region44: #{gc_forward.1} parent=5 // pred_fallthru
      _
  $region6: #{gc_forward.1} parent=0 // loop_footer
    %s14 = sadd.s32 1, %s10
  $region7: #{gc_forward.1} parent=0 // loop_footer_branch
    %9 = sbr.rel target = $region3
  $region8: #{gc_forward.1} parent=0 // loop_exit
    _

</llo_original>
